<compile_context>
chip_gen: v6e
topology: v6e:2x2x1
jax: 0.10.0
libtpu: 0.0.40
codegen_flags: <defaults>
</compile_context>

<pallas_src>
import jax
import jax.numpy as jnp
from jax.experimental import pallas as pl
from jax.experimental.pallas import tpu as pltpu

# ---------------- config (small shapes consistent with the module) ----------------
BATCH_SIZE = 2
VOCAB_SIZE = 50
EMBEDDING_DIM = 16
NUM_ID_FEATURE_MAP = 8
SENT_LEN = 16
NUM_CLASSES = 4
BN_EPS = 1e-5

# pyramid depth: while num_seq > 2: append ResnetBlock; num_seq //= 2
NUM_BLOCKS = 0
_n = SENT_LEN
while _n > 2:
    NUM_BLOCKS += 1
    _n //= 2
NUM_SEQ = _n                       # 2
N_UNITS = 2 + 2 * NUM_BLOCKS       # conv_block(2) + 2 convs per pyramid block = 8


# ---------------- fused kernel: one grid step == one batch element ----------------
def _dpcnn_kernel(ids_ref, emb_ref, rw_ref, rb_ref,
                  bns_ref, bnb_ref, cw_ref, cb_ref,
                  fw1_ref, fb1_ref, fw2_ref, fb2_ref,
                  out_ref):
    f32 = jnp.float32

    def shift_mats(L):
        # Exact one-hot shift matrices: (S_prev @ x)[l] = x[l-1] (zero row at l == 0),
        # (S_next @ x)[l] = x[l+1] (zero row at l == L-1).  The zero rows ARE the conv's
        # zero padding (padding=1), applied to the post-activation tensor as in PyTorch.
        r = jax.lax.broadcasted_iota(jnp.int32, (L, L), 0)
        c = jax.lax.broadcasted_iota(jnp.int32, (L, L), 1)
        return (c == r - 1).astype(f32), (c == r + 1).astype(f32)

    def pool_mats(L):
        # Exact stride-2 window selectors: (S_j @ x)[l] = x[2l + j]; when 2l + j == L the row
        # is all zeros, reproducing ConstantPad1d((0,1), value=0) before MaxPool1d(3, stride=2).
        Lo = L // 2
        r = jax.lax.broadcasted_iota(jnp.int32, (Lo, L), 0)
        c = jax.lax.broadcasted_iota(jnp.int32, (Lo, L), 1)
        return tuple((c == 2 * r + j).astype(f32) for j in range(3))

    def conv_k3(x, s_prev, s_next, w, b):
        # Conv1d(k=3, padding=1) over a channels-last (L, Cin) tile as ONE weight matmul:
        # shift+pad on the idle MXU, taps concatenated on the lane axis, contracted against
        # w of shape (3*Cin, Cout).
        x_prev = jnp.dot(s_prev, x, preferred_element_type=f32)
        x_next = jnp.dot(s_next, x, preferred_element_type=f32)
        taps = jnp.concatenate([x_prev, x, x_next], axis=-1)          # (L, 3*Cin)
        return jnp.dot(taps, w, preferred_element_type=f32) + b       # (L, Cout)

    def maxpool3_s2(x, sels):
        # ConstantPad1d((0,1), 0) + MaxPool1d(kernel_size=3, stride=2).
        w0 = jnp.dot(sels[0], x, preferred_element_type=f32)
        w1 = jnp.dot(sels[1], x, preferred_element_type=f32)
        w2 = jnp.dot(sels[2], x, preferred_element_type=f32)
        return jnp.maximum(jnp.maximum(w0, w1), w2)

    def bn_relu_conv(a, s_prev, s_next, u):
        # (inference-mode BatchNorm1d -> ReLU -> Conv1d) unit u of the stacked weights.
        h = jnp.maximum(a * bns_ref[u] + bnb_ref[u], 0.0)
        return conv_k3(h, s_prev, s_next, cw_ref[u], cb_ref[u])

    # 1. embedding lookup: one-hot @ table on the MXU.  (x.permute(0,2,1) of the reference is
    #    absorbed by keeping activations channels-last (L, C) throughout.)
    ids = ids_ref[...]                                                 # (L, 1) int32
    vio = jax.lax.broadcasted_iota(jnp.int32, (SENT_LEN, VOCAB_SIZE), 1)
    onehot = (ids == vio).astype(f32)
    x = jnp.dot(onehot, emb_ref[...], preferred_element_type=f32)      # (L, E)

    # 2. region embedding: Conv1d -> BN(folded into w/b) -> ReLU -> Dropout(identity)
    sp, sn = shift_mats(SENT_LEN)
    x = jnp.maximum(conv_k3(x, sp, sn, rw_ref[...], rb_ref[...]), 0.0)  # (L, C)

    # 3. conv block: (BN -> ReLU -> Conv1d) x 2, no residual
    x = bn_relu_conv(x, sp, sn, 0)
    x = bn_relu_conv(x, sp, sn, 1)

    # 4. pyramid ResNet blocks: sc = maxpool(x); x = conv(conv(sc)) + sc
    L = SENT_LEN
    u = 2
    for _ in range(NUM_BLOCKS):
        sc = maxpool3_s2(x, pool_mats(L))
        L //= 2
        sp, sn = shift_mats(L)
        h = bn_relu_conv(sc, sp, sn, u)
        h = bn_relu_conv(h, sp, sn, u + 1)
        x = h + sc
        u += 2

    # 5. permute(0,2,1) + view(B, -1): channels-last flatten (l-major, c-minor), realized by the
    #    stacked fc1 weight (num_seq, C, NC).  fc: Linear(+BN folded) -> ReLU -> Dropout(id) -> Linear.
    h = fb1_ref[...]                                                   # (1, NC)
    for l in range(NUM_SEQ):
        h = h + jnp.dot(x[l:l + 1, :], fw1_ref[l], preferred_element_type=f32)
    h = jnp.maximum(h, 0.0)
    out = jnp.dot(h, fw2_ref[...], preferred_element_type=f32) + fb2_ref[...]
    out_ref[...] = out.reshape(1, 1, NUM_CLASSES)


# ---------------- wrapper: single pallas_call, grid over batch ----------------
def dpcnn_forward(tokens, p):
    B = tokens.shape[0]
    ids = tokens.reshape(B * SENT_LEN, 1).astype(jnp.int32)

    def full_spec(a):
        nd = a.ndim
        return pl.BlockSpec(a.shape, lambda b, _nd=nd: (0,) * _nd)   # VMEM-resident full block

    weights = (p['emb'], p['region_w'], p['region_b'],
               p['bn_s'], p['bn_b'], p['conv_w'], p['conv_b'],
               p['fc_w1'], p['fc_b1'], p['fc_w2'], p['fc_b2'])

    out = pl.pallas_call(
        _dpcnn_kernel,
        grid=(B,),
        in_specs=[pl.BlockSpec((SENT_LEN, 1), lambda b: (b, 0))]
                 + [full_spec(w) for w in weights],
        out_specs=pl.BlockSpec((1, 1, NUM_CLASSES), lambda b: (b, 0, 0)),
        out_shape=jax.ShapeDtypeStruct((B, 1, NUM_CLASSES), jnp.float32),
        compiler_params=pltpu.CompilerParams(dimension_semantics=("parallel",)),
    )(ids, *weights)
    return out.reshape(B, NUM_CLASSES)


# ---------------- parameters ----------------
def bn_fold(gamma, beta, mean, var):
    scale = gamma / jnp.sqrt(var + BN_EPS)
    return scale, beta - mean * scale


def bn_default(c):
    # Fresh nn.BatchNorm1d buffers: gamma=1, beta=0, running_mean=0, running_var=1.
    return bn_fold(jnp.ones((c,), jnp.float32), jnp.zeros((c,), jnp.float32),
                   jnp.zeros((c,), jnp.float32), jnp.ones((c,), jnp.float32))


def init_params(key):
    keys = iter(jax.random.split(key, 64))

    def nrm(shape, s=0.1):
        return jax.random.normal(next(keys), shape, jnp.float32) * s

    C, E, NC = NUM_ID_FEATURE_MAP, EMBEDDING_DIM, NUM_CLASSES
    p = {}
    p['emb'] = nrm((VOCAB_SIZE, E), 1.0)

    # region_embedding: Conv1d(E->C, k=3, p=1); PyTorch weight (C, E, 3) stored as (3*E, C)
    # (row k*E + i == w[:, i, k]); its inference-mode BN is folded in (affine before ReLU).
    rw = nrm((3, E, C)).reshape(3 * E, C)
    rb = nrm((C,))
    s, b = bn_default(C)
    p['region_w'] = rw * s[None, :]
    p['region_b'] = (rb * s + b).reshape(1, C)

    # Stacked (BatchNorm -> ReLU -> Conv1d(C->C, k=3, p=1)) units:
    # [conv_block.conv1, conv_block.conv2, block0.convA, block0.convB, ...].
    # The pre-activation BN cannot fold into the conv (ReLU in between) -> folded (scale, bias).
    bn_s, bn_b, conv_w, conv_b = [], [], [], []
    for _ in range(N_UNITS):
        s, b = bn_default(C)
        bn_s.append(s.reshape(1, C))
        bn_b.append(b.reshape(1, C))
        conv_w.append(nrm((3, C, C)).reshape(3 * C, C))
        conv_b.append(nrm((C,)).reshape(1, C))
    p['bn_s'] = jnp.stack(bn_s)       # (N_UNITS, 1, C)
    p['bn_b'] = jnp.stack(bn_b)       # (N_UNITS, 1, C)
    p['conv_w'] = jnp.stack(conv_w)   # (N_UNITS, 3*C, C)
    p['conv_b'] = jnp.stack(conv_b)   # (N_UNITS, 1, C)

    # fc head: Linear(C*num_seq -> NC) with its BN folded in, then Linear(NC -> NC).
    # Linear weights stored transposed (in, out); fc1 reshaped to (num_seq, C, NC) to match the
    # channels-last flatten order (== PyTorch permute(0,2,1).contiguous().view(B, -1)).
    w1 = nrm((NUM_SEQ * C, NC))
    b1 = nrm((NC,))
    s, b = bn_default(NC)
    p['fc_w1'] = (w1 * s[None, :]).reshape(NUM_SEQ, C, NC)
    p['fc_b1'] = (b1 * s + b).reshape(1, NC)
    p['fc_w2'] = nrm((NC, NC))
    p['fc_b2'] = nrm((NC,)).reshape(1, NC)
    return p


if __name__ == "__main__":
    key = jax.random.PRNGKey(0)
    kp, kx = jax.random.split(key)
    params = init_params(kp)
    tokens = jax.random.randint(kx, (BATCH_SIZE, SENT_LEN), 0, VOCAB_SIZE, dtype=jnp.int32)

    out = jax.jit(dpcnn_forward)(tokens, params)
    out = jax.block_until_ready(out)
    assert out.shape == (BATCH_SIZE, NUM_CLASSES)
    assert bool(jnp.all(jnp.isfinite(out)))
    print("KERNEL_OK")
</pallas_src>

<mosaic_0001>
module attributes {stable_mosaic.version = 11 : i64} {
  func.func @_dpcnn_kernel(%arg0: i32, %arg1: memref<16x1xi32, #tpu.memory_space<vmem>>, %arg2: memref<50x16xf32, #tpu.memory_space<vmem>>, %arg3: memref<48x8xf32, #tpu.memory_space<vmem>>, %arg4: memref<1x8xf32, #tpu.memory_space<vmem>>, %arg5: memref<8x1x8xf32, #tpu.memory_space<vmem>>, %arg6: memref<8x1x8xf32, #tpu.memory_space<vmem>>, %arg7: memref<8x24x8xf32, #tpu.memory_space<vmem>>, %arg8: memref<8x1x8xf32, #tpu.memory_space<vmem>>, %arg9: memref<2x8x4xf32, #tpu.memory_space<vmem>>, %arg10: memref<1x4xf32, #tpu.memory_space<vmem>>, %arg11: memref<4x4xf32, #tpu.memory_space<vmem>>, %arg12: memref<1x4xf32, #tpu.memory_space<vmem>>, %arg13: memref<1x1x4xf32, #tpu.memory_space<vmem>>) attributes {dimension_semantics = [#tpu.dimension_semantics<parallel>], iteration_bounds = array<i64: 2>, scalar_prefetch = 0 : i64, scratch_operands = 0 : i64, tpu.core_type = #tpu.core_type<tc>, window_params = [{transform_indices = @transform_0, window_bounds = array<i64: 16, 1>}, {pipeline_mode = #tpu.pipeline_mode<synchronous>, transform_indices = @transform_1, window_bounds = array<i64: 50, 16>}, {pipeline_mode = #tpu.pipeline_mode<synchronous>, transform_indices = @transform_2, window_bounds = array<i64: 48, 8>}, {pipeline_mode = #tpu.pipeline_mode<synchronous>, transform_indices = @transform_3, window_bounds = array<i64: 1, 8>}, {pipeline_mode = #tpu.pipeline_mode<synchronous>, transform_indices = @transform_4, window_bounds = array<i64: 8, 1, 8>}, {pipeline_mode = #tpu.pipeline_mode<synchronous>, transform_indices = @transform_5, window_bounds = array<i64: 8, 1, 8>}, {pipeline_mode = #tpu.pipeline_mode<synchronous>, transform_indices = @transform_6, window_bounds = array<i64: 8, 24, 8>}, {pipeline_mode = #tpu.pipeline_mode<synchronous>, transform_indices = @transform_7, window_bounds = array<i64: 8, 1, 8>}, {pipeline_mode = #tpu.pipeline_mode<synchronous>, transform_indices = @transform_8, window_bounds = array<i64: 2, 8, 4>}, {pipeline_mode = #tpu.pipeline_mode<synchronous>, transform_indices = @transform_9, window_bounds = array<i64: 1, 4>}, {pipeline_mode = #tpu.pipeline_mode<synchronous>, transform_indices = @transform_10, window_bounds = array<i64: 4, 4>}, {pipeline_mode = #tpu.pipeline_mode<synchronous>, transform_indices = @transform_11, window_bounds = array<i64: 1, 4>}, {transform_indices = @transform_12, window_bounds = array<i64: 1, 1, 4>}]} {
    %c0 = arith.constant 0 : index
    %c0_0 = arith.constant 0 : index
    %0 = vector.load %arg1[%c0, %c0_0] : memref<16x1xi32, #tpu.memory_space<vmem>>, vector<16x1xi32>
    %1 = tpu.iota {dimensions = array<i32: 1>} : vector<16x50xi32>
    %2 = vector.broadcast %0 : vector<16x1xi32> to vector<16x50xi32>
    %3 = arith.cmpi eq, %2, %1 : vector<16x50xi32>
    %4 = arith.extui %3 : vector<16x50xi1> to vector<16x50xi32>
    %5 = arith.sitofp %4 : vector<16x50xi32> to vector<16x50xf32>
    %c0_1 = arith.constant 0 : index
    %c0_2 = arith.constant 0 : index
    %6 = vector.load %arg2[%c0_1, %c0_2] : memref<50x16xf32, #tpu.memory_space<vmem>>, vector<50x16xf32>
    %cst = arith.constant dense<0.000000e+00> : vector<16x16xf32>
    %7 = tpu.matmul %5, %6, %cst {dimension_numbers = #tpu.dot_dimension_numbers<[1], [0], [0], [1], [0, 0, 1, 1], [], []>} : vector<16x50xf32>, vector<50x16xf32>, vector<16x16xf32> -> vector<16x16xf32>
    %8 = tpu.iota {dimensions = array<i32: 0>} : vector<16x16xi32>
    %9 = tpu.iota {dimensions = array<i32: 1>} : vector<16x16xi32>
    %c1_i32 = arith.constant 1 : i32
    %10 = vector.broadcast %c1_i32 : i32 to vector<16x16xi32>
    %11 = arith.subi %8, %10 : vector<16x16xi32>
    %12 = arith.cmpi eq, %9, %11 : vector<16x16xi32>
    %13 = arith.extui %12 : vector<16x16xi1> to vector<16x16xi32>
    %14 = arith.sitofp %13 : vector<16x16xi32> to vector<16x16xf32>
    %c1_i32_3 = arith.constant 1 : i32
    %15 = vector.broadcast %c1_i32_3 : i32 to vector<16x16xi32>
    %16 = arith.addi %8, %15 : vector<16x16xi32>
    %17 = arith.cmpi eq, %9, %16 : vector<16x16xi32>
    %18 = arith.extui %17 : vector<16x16xi1> to vector<16x16xi32>
    %19 = arith.sitofp %18 : vector<16x16xi32> to vector<16x16xf32>
    %c0_4 = arith.constant 0 : index
    %c0_5 = arith.constant 0 : index
    %20 = vector.load %arg3[%c0_4, %c0_5] : memref<48x8xf32, #tpu.memory_space<vmem>>, vector<48x8xf32>
    %c0_6 = arith.constant 0 : index
    %c0_7 = arith.constant 0 : index
    %21 = vector.load %arg4[%c0_6, %c0_7] : memref<1x8xf32, #tpu.memory_space<vmem>>, vector<1x8xf32>
    %cst_8 = arith.constant dense<0.000000e+00> : vector<16x16xf32>
    %22 = tpu.matmul %14, %7, %cst_8 {dimension_numbers = #tpu.dot_dimension_numbers<[1], [0], [0], [1], [0, 0, 1, 1], [], []>} : vector<16x16xf32>, vector<16x16xf32>, vector<16x16xf32> -> vector<16x16xf32>
    %cst_9 = arith.constant dense<0.000000e+00> : vector<16x16xf32>
    %23 = tpu.matmul %19, %7, %cst_9 {dimension_numbers = #tpu.dot_dimension_numbers<[1], [0], [0], [1], [0, 0, 1, 1], [], []>} : vector<16x16xf32>, vector<16x16xf32>, vector<16x16xf32> -> vector<16x16xf32>
    %24 = tpu.concatenate %22, %7, %23 in 1 : vector<16x16xf32>, vector<16x16xf32>, vector<16x16xf32> -> vector<16x48xf32>
    %cst_10 = arith.constant dense<0.000000e+00> : vector<16x8xf32>
    %25 = tpu.matmul %24, %20, %cst_10 {dimension_numbers = #tpu.dot_dimension_numbers<[1], [0], [0], [1], [0, 0, 1, 1], [], []>} : vector<16x48xf32>, vector<48x8xf32>, vector<16x8xf32> -> vector<16x8xf32>
    %26 = vector.broadcast %21 : vector<1x8xf32> to vector<16x8xf32>
    %27 = arith.addf %25, %26 : vector<16x8xf32>
    %cst_11 = arith.constant 0.000000e+00 : f32
    %28 = vector.broadcast %cst_11 : f32 to vector<16x8xf32>
    %29 = arith.maximumf %27, %28 : vector<16x8xf32>
    %c0_12 = arith.constant 0 : index
    %c0_13 = arith.constant 0 : index
    %c0_14 = arith.constant 0 : index
    %30 = vector.load %arg5[%c0_12, %c0_13, %c0_14] : memref<8x1x8xf32, #tpu.memory_space<vmem>>, vector<1x1x8xf32>
    %31 = vector.shape_cast %30 : vector<1x1x8xf32> to vector<1x8xf32>
    %32 = vector.broadcast %31 : vector<1x8xf32> to vector<16x8xf32>
    %33 = arith.mulf %29, %32 : vector<16x8xf32>
    %c0_15 = arith.constant 0 : index
    %c0_16 = arith.constant 0 : index
    %c0_17 = arith.constant 0 : index
    %34 = vector.load %arg6[%c0_15, %c0_16, %c0_17] : memref<8x1x8xf32, #tpu.memory_space<vmem>>, vector<1x1x8xf32>
    %35 = vector.shape_cast %34 : vector<1x1x8xf32> to vector<1x8xf32>
    %36 = vector.broadcast %35 : vector<1x8xf32> to vector<16x8xf32>
    %37 = arith.addf %33, %36 : vector<16x8xf32>
    %cst_18 = arith.constant 0.000000e+00 : f32
    %38 = vector.broadcast %cst_18 : f32 to vector<16x8xf32>
    %39 = arith.maximumf %37, %38 : vector<16x8xf32>
    %c0_19 = arith.constant 0 : index
    %c0_20 = arith.constant 0 : index
    %c0_21 = arith.constant 0 : index
    %40 = vector.load %arg7[%c0_19, %c0_20, %c0_21] : memref<8x24x8xf32, #tpu.memory_space<vmem>>, vector<1x24x8xf32>
    %41 = vector.shape_cast %40 : vector<1x24x8xf32> to vector<24x8xf32>
    %c0_22 = arith.constant 0 : index
    %c0_23 = arith.constant 0 : index
    %c0_24 = arith.constant 0 : index
    %42 = vector.load %arg8[%c0_22, %c0_23, %c0_24] : memref<8x1x8xf32, #tpu.memory_space<vmem>>, vector<1x1x8xf32>
    %43 = vector.shape_cast %42 : vector<1x1x8xf32> to vector<1x8xf32>
    %cst_25 = arith.constant dense<0.000000e+00> : vector<16x8xf32>
    %44 = tpu.matmul %14, %39, %cst_25 {dimension_numbers = #tpu.dot_dimension_numbers<[1], [0], [0], [1], [0, 0, 1, 1], [], []>} : vector<16x16xf32>, vector<16x8xf32>, vector<16x8xf32> -> vector<16x8xf32>
    %cst_26 = arith.constant dense<0.000000e+00> : vector<16x8xf32>
    %45 = tpu.matmul %19, %39, %cst_26 {dimension_numbers = #tpu.dot_dimension_numbers<[1], [0], [0], [1], [0, 0, 1, 1], [], []>} : vector<16x16xf32>, vector<16x8xf32>, vector<16x8xf32> -> vector<16x8xf32>
    %46 = tpu.concatenate %44, %39, %45 in 1 : vector<16x8xf32>, vector<16x8xf32>, vector<16x8xf32> -> vector<16x24xf32>
    %cst_27 = arith.constant dense<0.000000e+00> : vector<16x8xf32>
    %47 = tpu.matmul %46, %41, %cst_27 {dimension_numbers = #tpu.dot_dimension_numbers<[1], [0], [0], [1], [0, 0, 1, 1], [], []>} : vector<16x24xf32>, vector<24x8xf32>, vector<16x8xf32> -> vector<16x8xf32>
    %48 = vector.broadcast %43 : vector<1x8xf32> to vector<16x8xf32>
    %49 = arith.addf %47, %48 : vector<16x8xf32>
    %c1 = arith.constant 1 : index
    %c0_28 = arith.constant 0 : index
    %c0_29 = arith.constant 0 : index
    %50 = vector.load %arg5[%c1, %c0_28, %c0_29] : memref<8x1x8xf32, #tpu.memory_space<vmem>>, vector<1x1x8xf32>
    %51 = vector.shape_cast %50 : vector<1x1x8xf32> to vector<1x8xf32>
    %52 = vector.broadcast %51 : vector<1x8xf32> to vector<16x8xf32>
    %53 = arith.mulf %49, %52 : vector<16x8xf32>
    %c1_30 = arith.constant 1 : index
    %c0_31 = arith.constant 0 : index
    %c0_32 = arith.constant 0 : index
    %54 = vector.load %arg6[%c1_30, %c0_31, %c0_32] : memref<8x1x8xf32, #tpu.memory_space<vmem>>, vector<1x1x8xf32>
    %55 = vector.shape_cast %54 : vector<1x1x8xf32> to vector<1x8xf32>
    %56 = vector.broadcast %55 : vector<1x8xf32> to vector<16x8xf32>
    %57 = arith.addf %53, %56 : vector<16x8xf32>
    %cst_33 = arith.constant 0.000000e+00 : f32
    %58 = vector.broadcast %cst_33 : f32 to vector<16x8xf32>
    %59 = arith.maximumf %57, %58 : vector<16x8xf32>
    %c1_34 = arith.constant 1 : index
    %c0_35 = arith.constant 0 : index
    %c0_36 = arith.constant 0 : index
    %60 = vector.load %arg7[%c1_34, %c0_35, %c0_36] : memref<8x24x8xf32, #tpu.memory_space<vmem>>, vector<1x24x8xf32>
    %61 = vector.shape_cast %60 : vector<1x24x8xf32> to vector<24x8xf32>
    %c1_37 = arith.constant 1 : index
    %c0_38 = arith.constant 0 : index
    %c0_39 = arith.constant 0 : index
    %62 = vector.load %arg8[%c1_37, %c0_38, %c0_39] : memref<8x1x8xf32, #tpu.memory_space<vmem>>, vector<1x1x8xf32>
    %63 = vector.shape_cast %62 : vector<1x1x8xf32> to vector<1x8xf32>
    %cst_40 = arith.constant dense<0.000000e+00> : vector<16x8xf32>
    %64 = tpu.matmul %14, %59, %cst_40 {dimension_numbers = #tpu.dot_dimension_numbers<[1], [0], [0], [1], [0, 0, 1, 1], [], []>} : vector<16x16xf32>, vector<16x8xf32>, vector<16x8xf32> -> vector<16x8xf32>
    %cst_41 = arith.constant dense<0.000000e+00> : vector<16x8xf32>
    %65 = tpu.matmul %19, %59, %cst_41 {dimension_numbers = #tpu.dot_dimension_numbers<[1], [0], [0], [1], [0, 0, 1, 1], [], []>} : vector<16x16xf32>, vector<16x8xf32>, vector<16x8xf32> -> vector<16x8xf32>
    %66 = tpu.concatenate %64, %59, %65 in 1 : vector<16x8xf32>, vector<16x8xf32>, vector<16x8xf32> -> vector<16x24xf32>
    %cst_42 = arith.constant dense<0.000000e+00> : vector<16x8xf32>
    %67 = tpu.matmul %66, %61, %cst_42 {dimension_numbers = #tpu.dot_dimension_numbers<[1], [0], [0], [1], [0, 0, 1, 1], [], []>} : vector<16x24xf32>, vector<24x8xf32>, vector<16x8xf32> -> vector<16x8xf32>
    %68 = vector.broadcast %63 : vector<1x8xf32> to vector<16x8xf32>
    %69 = arith.addf %67, %68 : vector<16x8xf32>
    %70 = tpu.iota {dimensions = array<i32: 0>} : vector<8x16xi32>
    %71 = tpu.iota {dimensions = array<i32: 1>} : vector<8x16xi32>
    %c2_i32 = arith.constant 2 : i32
    %72 = vector.broadcast %c2_i32 : i32 to vector<8x16xi32>
    %73 = arith.muli %72, %70 : vector<8x16xi32>
    %c0_i32 = arith.constant 0 : i32
    %74 = vector.broadcast %c0_i32 : i32 to vector<8x16xi32>
    %75 = arith.addi %73, %74 : vector<8x16xi32>
    %76 = arith.cmpi eq, %71, %75 : vector<8x16xi32>
    %77 = arith.extui %76 : vector<8x16xi1> to vector<8x16xi32>
    %78 = arith.sitofp %77 : vector<8x16xi32> to vector<8x16xf32>
    %c2_i32_43 = arith.constant 2 : i32
    %79 = vector.broadcast %c2_i32_43 : i32 to vector<8x16xi32>
    %80 = arith.muli %79, %70 : vector<8x16xi32>
    %c1_i32_44 = arith.constant 1 : i32
    %81 = vector.broadcast %c1_i32_44 : i32 to vector<8x16xi32>
    %82 = arith.addi %80, %81 : vector<8x16xi32>
    %83 = arith.cmpi eq, %71, %82 : vector<8x16xi32>
    %84 = arith.extui %83 : vector<8x16xi1> to vector<8x16xi32>
    %85 = arith.sitofp %84 : vector<8x16xi32> to vector<8x16xf32>
    %c2_i32_45 = arith.constant 2 : i32
    %86 = vector.broadcast %c2_i32_45 : i32 to vector<8x16xi32>
    %87 = arith.muli %86, %70 : vector<8x16xi32>
    %c2_i32_46 = arith.constant 2 : i32
    %88 = vector.broadcast %c2_i32_46 : i32 to vector<8x16xi32>
    %89 = arith.addi %87, %88 : vector<8x16xi32>
    %90 = arith.cmpi eq, %71, %89 : vector<8x16xi32>
    %91 = arith.extui %90 : vector<8x16xi1> to vector<8x16xi32>
    %92 = arith.sitofp %91 : vector<8x16xi32> to vector<8x16xf32>
    %cst_47 = arith.constant dense<0.000000e+00> : vector<8x8xf32>
    %93 = tpu.matmul %78, %69, %cst_47 {dimension_numbers = #tpu.dot_dimension_numbers<[1], [0], [0], [1], [0, 0, 1, 1], [], []>} : vector<8x16xf32>, vector<16x8xf32>, vector<8x8xf32> -> vector<8x8xf32>
    %cst_48 = arith.constant dense<0.000000e+00> : vector<8x8xf32>
    %94 = tpu.matmul %85, %69, %cst_48 {dimension_numbers = #tpu.dot_dimension_numbers<[1], [0], [0], [1], [0, 0, 1, 1], [], []>} : vector<8x16xf32>, vector<16x8xf32>, vector<8x8xf32> -> vector<8x8xf32>
    %cst_49 = arith.constant dense<0.000000e+00> : vector<8x8xf32>
    %95 = tpu.matmul %92, %69, %cst_49 {dimension_numbers = #tpu.dot_dimension_numbers<[1], [0], [0], [1], [0, 0, 1, 1], [], []>} : vector<8x16xf32>, vector<16x8xf32>, vector<8x8xf32> -> vector<8x8xf32>
    %96 = arith.maximumf %93, %94 : vector<8x8xf32>
    %97 = arith.maximumf %96, %95 : vector<8x8xf32>
    %98 = tpu.iota {dimensions = array<i32: 0>} : vector<8x8xi32>
    %99 = tpu.iota {dimensions = array<i32: 1>} : vector<8x8xi32>
    %c1_i32_50 = arith.constant 1 : i32
    %100 = vector.broadcast %c1_i32_50 : i32 to vector<8x8xi32>
    %101 = arith.subi %98, %100 : vector<8x8xi32>
    %102 = arith.cmpi eq, %99, %101 : vector<8x8xi32>
    %103 = arith.extui %102 : vector<8x8xi1> to vector<8x8xi32>
    %104 = arith.sitofp %103 : vector<8x8xi32> to vector<8x8xf32>
    %c1_i32_51 = arith.constant 1 : i32
    %105 = vector.broadcast %c1_i32_51 : i32 to vector<8x8xi32>
    %106 = arith.addi %98, %105 : vector<8x8xi32>
    %107 = arith.cmpi eq, %99, %106 : vector<8x8xi32>
    %108 = arith.extui %107 : vector<8x8xi1> to vector<8x8xi32>
    %109 = arith.sitofp %108 : vector<8x8xi32> to vector<8x8xf32>
    %c2 = arith.constant 2 : index
    %c0_52 = arith.constant 0 : index
    %c0_53 = arith.constant 0 : index
    %110 = vector.load %arg5[%c2, %c0_52, %c0_53] : memref<8x1x8xf32, #tpu.memory_space<vmem>>, vector<1x1x8xf32>
    %111 = vector.shape_cast %110 : vector<1x1x8xf32> to vector<1x8xf32>
    %112 = vector.broadcast %111 : vector<1x8xf32> to vector<8x8xf32>
    %113 = arith.mulf %97, %112 : vector<8x8xf32>
    %c2_54 = arith.constant 2 : index
    %c0_55 = arith.constant 0 : index
    %c0_56 = arith.constant 0 : index
    %114 = vector.load %arg6[%c2_54, %c0_55, %c0_56] : memref<8x1x8xf32, #tpu.memory_space<vmem>>, vector<1x1x8xf32>
    %115 = vector.shape_cast %114 : vector<1x1x8xf32> to vector<1x8xf32>
    %116 = vector.broadcast %115 : vector<1x8xf32> to vector<8x8xf32>
    %117 = arith.addf %113, %116 : vector<8x8xf32>
    %cst_57 = arith.constant 0.000000e+00 : f32
    %118 = vector.broadcast %cst_57 : f32 to vector<8x8xf32>
    %119 = arith.maximumf %117, %118 : vector<8x8xf32>
    %c2_58 = arith.constant 2 : index
    %c0_59 = arith.constant 0 : index
    %c0_60 = arith.constant 0 : index
    %120 = vector.load %arg7[%c2_58, %c0_59, %c0_60] : memref<8x24x8xf32, #tpu.memory_space<vmem>>, vector<1x24x8xf32>
    %121 = vector.shape_cast %120 : vector<1x24x8xf32> to vector<24x8xf32>
    %c2_61 = arith.constant 2 : index
    %c0_62 = arith.constant 0 : index
    %c0_63 = arith.constant 0 : index
    %122 = vector.load %arg8[%c2_61, %c0_62, %c0_63] : memref<8x1x8xf32, #tpu.memory_space<vmem>>, vector<1x1x8xf32>
    %123 = vector.shape_cast %122 : vector<1x1x8xf32> to vector<1x8xf32>
    %cst_64 = arith.constant dense<0.000000e+00> : vector<8x8xf32>
    %124 = tpu.matmul %104, %119, %cst_64 {dimension_numbers = #tpu.dot_dimension_numbers<[1], [0], [0], [1], [0, 0, 1, 1], [], []>} : vector<8x8xf32>, vector<8x8xf32>, vector<8x8xf32> -> vector<8x8xf32>
    %cst_65 = arith.constant dense<0.000000e+00> : vector<8x8xf32>
    %125 = tpu.matmul %109, %119, %cst_65 {dimension_numbers = #tpu.dot_dimension_numbers<[1], [0], [0], [1], [0, 0, 1, 1], [], []>} : vector<8x8xf32>, vector<8x8xf32>, vector<8x8xf32> -> vector<8x8xf32>
    %126 = tpu.concatenate %124, %119, %125 in 1 : vector<8x8xf32>, vector<8x8xf32>, vector<8x8xf32> -> vector<8x24xf32>
    %cst_66 = arith.constant dense<0.000000e+00> : vector<8x8xf32>
    %127 = tpu.matmul %126, %121, %cst_66 {dimension_numbers = #tpu.dot_dimension_numbers<[1], [0], [0], [1], [0, 0, 1, 1], [], []>} : vector<8x24xf32>, vector<24x8xf32>, vector<8x8xf32> -> vector<8x8xf32>
    %128 = vector.broadcast %123 : vector<1x8xf32> to vector<8x8xf32>
    %129 = arith.addf %127, %128 : vector<8x8xf32>
    %c3 = arith.constant 3 : index
    %c0_67 = arith.constant 0 : index
    %c0_68 = arith.constant 0 : index
    %130 = vector.load %arg5[%c3, %c0_67, %c0_68] : memref<8x1x8xf32, #tpu.memory_space<vmem>>, vector<1x1x8xf32>
    %131 = vector.shape_cast %130 : vector<1x1x8xf32> to vector<1x8xf32>
    %132 = vector.broadcast %131 : vector<1x8xf32> to vector<8x8xf32>
    %133 = arith.mulf %129, %132 : vector<8x8xf32>
    %c3_69 = arith.constant 3 : index
    %c0_70 = arith.constant 0 : index
    %c0_71 = arith.constant 0 : index
    %134 = vector.load %arg6[%c3_69, %c0_70, %c0_71] : memref<8x1x8xf32, #tpu.memory_space<vmem>>, vector<1x1x8xf32>
    %135 = vector.shape_cast %134 : vector<1x1x8xf32> to vector<1x8xf32>
    %136 = vector.broadcast %135 : vector<1x8xf32> to vector<8x8xf32>
    %137 = arith.addf %133, %136 : vector<8x8xf32>
    %cst_72 = arith.constant 0.000000e+00 : f32
    %138 = vector.broadcast %cst_72 : f32 to vector<8x8xf32>
    %139 = arith.maximumf %137, %138 : vector<8x8xf32>
    %c3_73 = arith.constant 3 : index
    %c0_74 = arith.constant 0 : index
    %c0_75 = arith.constant 0 : index
    %140 = vector.load %arg7[%c3_73, %c0_74, %c0_75] : memref<8x24x8xf32, #tpu.memory_space<vmem>>, vector<1x24x8xf32>
    %141 = vector.shape_cast %140 : vector<1x24x8xf32> to vector<24x8xf32>
    %c3_76 = arith.constant 3 : index
    %c0_77 = arith.constant 0 : index
    %c0_78 = arith.constant 0 : index
    %142 = vector.load %arg8[%c3_76, %c0_77, %c0_78] : memref<8x1x8xf32, #tpu.memory_space<vmem>>, vector<1x1x8xf32>
    %143 = vector.shape_cast %142 : vector<1x1x8xf32> to vector<1x8xf32>
    %cst_79 = arith.constant dense<0.000000e+00> : vector<8x8xf32>
    %144 = tpu.matmul %104, %139, %cst_79 {dimension_numbers = #tpu.dot_dimension_numbers<[1], [0], [0], [1], [0, 0, 1, 1], [], []>} : vector<8x8xf32>, vector<8x8xf32>, vector<8x8xf32> -> vector<8x8xf32>
    %cst_80 = arith.constant dense<0.000000e+00> : vector<8x8xf32>
    %145 = tpu.matmul %109, %139, %cst_80 {dimension_numbers = #tpu.dot_dimension_numbers<[1], [0], [0], [1], [0, 0, 1, 1], [], []>} : vector<8x8xf32>, vector<8x8xf32>, vector<8x8xf32> -> vector<8x8xf32>
    %146 = tpu.concatenate %144, %139, %145 in 1 : vector<8x8xf32>, vector<8x8xf32>, vector<8x8xf32> -> vector<8x24xf32>
    %cst_81 = arith.constant dense<0.000000e+00> : vector<8x8xf32>
    %147 = tpu.matmul %146, %141, %cst_81 {dimension_numbers = #tpu.dot_dimension_numbers<[1], [0], [0], [1], [0, 0, 1, 1], [], []>} : vector<8x24xf32>, vector<24x8xf32>, vector<8x8xf32> -> vector<8x8xf32>
    %148 = vector.broadcast %143 : vector<1x8xf32> to vector<8x8xf32>
    %149 = arith.addf %147, %148 : vector<8x8xf32>
    %150 = arith.addf %149, %97 : vector<8x8xf32>
    %151 = tpu.iota {dimensions = array<i32: 0>} : vector<4x8xi32>
    %152 = tpu.iota {dimensions = array<i32: 1>} : vector<4x8xi32>
    %c2_i32_82 = arith.constant 2 : i32
    %153 = vector.broadcast %c2_i32_82 : i32 to vector<4x8xi32>
    %154 = arith.muli %153, %151 : vector<4x8xi32>
    %c0_i32_83 = arith.constant 0 : i32
    %155 = vector.broadcast %c0_i32_83 : i32 to vector<4x8xi32>
    %156 = arith.addi %154, %155 : vector<4x8xi32>
    %157 = arith.cmpi eq, %152, %156 : vector<4x8xi32>
    %158 = arith.extui %157 : vector<4x8xi1> to vector<4x8xi32>
    %159 = arith.sitofp %158 : vector<4x8xi32> to vector<4x8xf32>
    %c2_i32_84 = arith.constant 2 : i32
    %160 = vector.broadcast %c2_i32_84 : i32 to vector<4x8xi32>
    %161 = arith.muli %160, %151 : vector<4x8xi32>
    %c1_i32_85 = arith.constant 1 : i32
    %162 = vector.broadcast %c1_i32_85 : i32 to vector<4x8xi32>
    %163 = arith.addi %161, %162 : vector<4x8xi32>
    %164 = arith.cmpi eq, %152, %163 : vector<4x8xi32>
    %165 = arith.extui %164 : vector<4x8xi1> to vector<4x8xi32>
    %166 = arith.sitofp %165 : vector<4x8xi32> to vector<4x8xf32>
    %c2_i32_86 = arith.constant 2 : i32
    %167 = vector.broadcast %c2_i32_86 : i32 to vector<4x8xi32>
    %168 = arith.muli %167, %151 : vector<4x8xi32>
    %c2_i32_87 = arith.constant 2 : i32
    %169 = vector.broadcast %c2_i32_87 : i32 to vector<4x8xi32>
    %170 = arith.addi %168, %169 : vector<4x8xi32>
    %171 = arith.cmpi eq, %152, %170 : vector<4x8xi32>
    %172 = arith.extui %171 : vector<4x8xi1> to vector<4x8xi32>
    %173 = arith.sitofp %172 : vector<4x8xi32> to vector<4x8xf32>
    %cst_88 = arith.constant dense<0.000000e+00> : vector<4x8xf32>
    %174 = tpu.matmul %159, %150, %cst_88 {dimension_numbers = #tpu.dot_dimension_numbers<[1], [0], [0], [1], [0, 0, 1, 1], [], []>} : vector<4x8xf32>, vector<8x8xf32>, vector<4x8xf32> -> vector<4x8xf32>
    %cst_89 = arith.constant dense<0.000000e+00> : vector<4x8xf32>
    %175 = tpu.matmul %166, %150, %cst_89 {dimension_numbers = #tpu.dot_dimension_numbers<[1], [0], [0], [1], [0, 0, 1, 1], [], []>} : vector<4x8xf32>, vector<8x8xf32>, vector<4x8xf32> -> vector<4x8xf32>
    %cst_90 = arith.constant dense<0.000000e+00> : vector<4x8xf32>
    %176 = tpu.matmul %173, %150, %cst_90 {dimension_numbers = #tpu.dot_dimension_numbers<[1], [0], [0], [1], [0, 0, 1, 1], [], []>} : vector<4x8xf32>, vector<8x8xf32>, vector<4x8xf32> -> vector<4x8xf32>
    %177 = arith.maximumf %174, %175 : vector<4x8xf32>
    %178 = arith.maximumf %177, %176 : vector<4x8xf32>
    %179 = tpu.iota {dimensions = array<i32: 0>} : vector<4x4xi32>
    %180 = tpu.iota {dimensions = array<i32: 1>} : vector<4x4xi32>
    %c1_i32_91 = arith.constant 1 : i32
    %181 = vector.broadcast %c1_i32_91 : i32 to vector<4x4xi32>
    %182 = arith.subi %179, %181 : vector<4x4xi32>
    %183 = arith.cmpi eq, %180, %182 : vector<4x4xi32>
    %184 = arith.extui %183 : vector<4x4xi1> to vector<4x4xi32>
    %185 = arith.sitofp %184 : vector<4x4xi32> to vector<4x4xf32>
    %c1_i32_92 = arith.constant 1 : i32
    %186 = vector.broadcast %c1_i32_92 : i32 to vector<4x4xi32>
    %187 = arith.addi %179, %186 : vector<4x4xi32>
    %188 = arith.cmpi eq, %180, %187 : vector<4x4xi32>
    %189 = arith.extui %188 : vector<4x4xi1> to vector<4x4xi32>
    %190 = arith.sitofp %189 : vector<4x4xi32> to vector<4x4xf32>
    %c4 = arith.constant 4 : index
    %c0_93 = arith.constant 0 : index
    %c0_94 = arith.constant 0 : index
    %191 = vector.load %arg5[%c4, %c0_93, %c0_94] : memref<8x1x8xf32, #tpu.memory_space<vmem>>, vector<1x1x8xf32>
    %192 = vector.shape_cast %191 : vector<1x1x8xf32> to vector<1x8xf32>
    %193 = vector.broadcast %192 : vector<1x8xf32> to vector<4x8xf32>
    %194 = arith.mulf %178, %193 : vector<4x8xf32>
    %c4_95 = arith.constant 4 : index
    %c0_96 = arith.constant 0 : index
    %c0_97 = arith.constant 0 : index
    %195 = vector.load %arg6[%c4_95, %c0_96, %c0_97] : memref<8x1x8xf32, #tpu.memory_space<vmem>>, vector<1x1x8xf32>
    %196 = vector.shape_cast %195 : vector<1x1x8xf32> to vector<1x8xf32>
    %197 = vector.broadcast %196 : vector<1x8xf32> to vector<4x8xf32>
    %198 = arith.addf %194, %197 : vector<4x8xf32>
    %cst_98 = arith.constant 0.000000e+00 : f32
    %199 = vector.broadcast %cst_98 : f32 to vector<4x8xf32>
    %200 = arith.maximumf %198, %199 : vector<4x8xf32>
    %c4_99 = arith.constant 4 : index
    %c0_100 = arith.constant 0 : index
    %c0_101 = arith.constant 0 : index
    %201 = vector.load %arg7[%c4_99, %c0_100, %c0_101] : memref<8x24x8xf32, #tpu.memory_space<vmem>>, vector<1x24x8xf32>
    %202 = vector.shape_cast %201 : vector<1x24x8xf32> to vector<24x8xf32>
    %c4_102 = arith.constant 4 : index
    %c0_103 = arith.constant 0 : index
    %c0_104 = arith.constant 0 : index
    %203 = vector.load %arg8[%c4_102, %c0_103, %c0_104] : memref<8x1x8xf32, #tpu.memory_space<vmem>>, vector<1x1x8xf32>
    %204 = vector.shape_cast %203 : vector<1x1x8xf32> to vector<1x8xf32>
    %cst_105 = arith.constant dense<0.000000e+00> : vector<4x8xf32>
    %205 = tpu.matmul %185, %200, %cst_105 {dimension_numbers = #tpu.dot_dimension_numbers<[1], [0], [0], [1], [0, 0, 1, 1], [], []>} : vector<4x4xf32>, vector<4x8xf32>, vector<4x8xf32> -> vector<4x8xf32>
    %cst_106 = arith.constant dense<0.000000e+00> : vector<4x8xf32>
    %206 = tpu.matmul %190, %200, %cst_106 {dimension_numbers = #tpu.dot_dimension_numbers<[1], [0], [0], [1], [0, 0, 1, 1], [], []>} : vector<4x4xf32>, vector<4x8xf32>, vector<4x8xf32> -> vector<4x8xf32>
    %207 = tpu.concatenate %205, %200, %206 in 1 : vector<4x8xf32>, vector<4x8xf32>, vector<4x8xf32> -> vector<4x24xf32>
    %cst_107 = arith.constant dense<0.000000e+00> : vector<4x8xf32>
    %208 = tpu.matmul %207, %202, %cst_107 {dimension_numbers = #tpu.dot_dimension_numbers<[1], [0], [0], [1], [0, 0, 1, 1], [], []>} : vector<4x24xf32>, vector<24x8xf32>, vector<4x8xf32> -> vector<4x8xf32>
    %209 = vector.broadcast %204 : vector<1x8xf32> to vector<4x8xf32>
    %210 = arith.addf %208, %209 : vector<4x8xf32>
    %c5 = arith.constant 5 : index
    %c0_108 = arith.constant 0 : index
    %c0_109 = arith.constant 0 : index
    %211 = vector.load %arg5[%c5, %c0_108, %c0_109] : memref<8x1x8xf32, #tpu.memory_space<vmem>>, vector<1x1x8xf32>
    %212 = vector.shape_cast %211 : vector<1x1x8xf32> to vector<1x8xf32>
    %213 = vector.broadcast %212 : vector<1x8xf32> to vector<4x8xf32>
    %214 = arith.mulf %210, %213 : vector<4x8xf32>
    %c5_110 = arith.constant 5 : index
    %c0_111 = arith.constant 0 : index
    %c0_112 = arith.constant 0 : index
    %215 = vector.load %arg6[%c5_110, %c0_111, %c0_112] : memref<8x1x8xf32, #tpu.memory_space<vmem>>, vector<1x1x8xf32>
    %216 = vector.shape_cast %215 : vector<1x1x8xf32> to vector<1x8xf32>
    %217 = vector.broadcast %216 : vector<1x8xf32> to vector<4x8xf32>
    %218 = arith.addf %214, %217 : vector<4x8xf32>
    %cst_113 = arith.constant 0.000000e+00 : f32
    %219 = vector.broadcast %cst_113 : f32 to vector<4x8xf32>
    %220 = arith.maximumf %218, %219 : vector<4x8xf32>
    %c5_114 = arith.constant 5 : index
    %c0_115 = arith.constant 0 : index
    %c0_116 = arith.constant 0 : index
    %221 = vector.load %arg7[%c5_114, %c0_115, %c0_116] : memref<8x24x8xf32, #tpu.memory_space<vmem>>, vector<1x24x8xf32>
    %222 = vector.shape_cast %221 : vector<1x24x8xf32> to vector<24x8xf32>
    %c5_117 = arith.constant 5 : index
    %c0_118 = arith.constant 0 : index
    %c0_119 = arith.constant 0 : index
    %223 = vector.load %arg8[%c5_117, %c0_118, %c0_119] : memref<8x1x8xf32, #tpu.memory_space<vmem>>, vector<1x1x8xf32>
    %224 = vector.shape_cast %223 : vector<1x1x8xf32> to vector<1x8xf32>
    %cst_120 = arith.constant dense<0.000000e+00> : vector<4x8xf32>
    %225 = tpu.matmul %185, %220, %cst_120 {dimension_numbers = #tpu.dot_dimension_numbers<[1], [0], [0], [1], [0, 0, 1, 1], [], []>} : vector<4x4xf32>, vector<4x8xf32>, vector<4x8xf32> -> vector<4x8xf32>
    %cst_121 = arith.constant dense<0.000000e+00> : vector<4x8xf32>
    %226 = tpu.matmul %190, %220, %cst_121 {dimension_numbers = #tpu.dot_dimension_numbers<[1], [0], [0], [1], [0, 0, 1, 1], [], []>} : vector<4x4xf32>, vector<4x8xf32>, vector<4x8xf32> -> vector<4x8xf32>
    %227 = tpu.concatenate %225, %220, %226 in 1 : vector<4x8xf32>, vector<4x8xf32>, vector<4x8xf32> -> vector<4x24xf32>
    %cst_122 = arith.constant dense<0.000000e+00> : vector<4x8xf32>
    %228 = tpu.matmul %227, %222, %cst_122 {dimension_numbers = #tpu.dot_dimension_numbers<[1], [0], [0], [1], [0, 0, 1, 1], [], []>} : vector<4x24xf32>, vector<24x8xf32>, vector<4x8xf32> -> vector<4x8xf32>
    %229 = vector.broadcast %224 : vector<1x8xf32> to vector<4x8xf32>
    %230 = arith.addf %228, %229 : vector<4x8xf32>
    %231 = arith.addf %230, %178 : vector<4x8xf32>
    %232 = tpu.iota {dimensions = array<i32: 0>} : vector<2x4xi32>
    %233 = tpu.iota {dimensions = array<i32: 1>} : vector<2x4xi32>
    %c2_i32_123 = arith.constant 2 : i32
    %234 = vector.broadcast %c2_i32_123 : i32 to vector<2x4xi32>
    %235 = arith.muli %234, %232 : vector<2x4xi32>
    %c0_i32_124 = arith.constant 0 : i32
    %236 = vector.broadcast %c0_i32_124 : i32 to vector<2x4xi32>
    %237 = arith.addi %235, %236 : vector<2x4xi32>
    %238 = arith.cmpi eq, %233, %237 : vector<2x4xi32>
    %239 = arith.extui %238 : vector<2x4xi1> to vector<2x4xi32>
    %240 = arith.sitofp %239 : vector<2x4xi32> to vector<2x4xf32>
    %c2_i32_125 = arith.constant 2 : i32
    %241 = vector.broadcast %c2_i32_125 : i32 to vector<2x4xi32>
    %242 = arith.muli %241, %232 : vector<2x4xi32>
    %c1_i32_126 = arith.constant 1 : i32
    %243 = vector.broadcast %c1_i32_126 : i32 to vector<2x4xi32>
    %244 = arith.addi %242, %243 : vector<2x4xi32>
    %245 = arith.cmpi eq, %233, %244 : vector<2x4xi32>
    %246 = arith.extui %245 : vector<2x4xi1> to vector<2x4xi32>
    %247 = arith.sitofp %246 : vector<2x4xi32> to vector<2x4xf32>
    %c2_i32_127 = arith.constant 2 : i32
    %248 = vector.broadcast %c2_i32_127 : i32 to vector<2x4xi32>
    %249 = arith.muli %248, %232 : vector<2x4xi32>
    %c2_i32_128 = arith.constant 2 : i32
    %250 = vector.broadcast %c2_i32_128 : i32 to vector<2x4xi32>
    %251 = arith.addi %249, %250 : vector<2x4xi32>
    %252 = arith.cmpi eq, %233, %251 : vector<2x4xi32>
    %253 = arith.extui %252 : vector<2x4xi1> to vector<2x4xi32>
    %254 = arith.sitofp %253 : vector<2x4xi32> to vector<2x4xf32>
    %cst_129 = arith.constant dense<0.000000e+00> : vector<2x8xf32>
    %255 = tpu.matmul %240, %231, %cst_129 {dimension_numbers = #tpu.dot_dimension_numbers<[1], [0], [0], [1], [0, 0, 1, 1], [], []>} : vector<2x4xf32>, vector<4x8xf32>, vector<2x8xf32> -> vector<2x8xf32>
    %cst_130 = arith.constant dense<0.000000e+00> : vector<2x8xf32>
    %256 = tpu.matmul %247, %231, %cst_130 {dimension_numbers = #tpu.dot_dimension_numbers<[1], [0], [0], [1], [0, 0, 1, 1], [], []>} : vector<2x4xf32>, vector<4x8xf32>, vector<2x8xf32> -> vector<2x8xf32>
    %cst_131 = arith.constant dense<0.000000e+00> : vector<2x8xf32>
    %257 = tpu.matmul %254, %231, %cst_131 {dimension_numbers = #tpu.dot_dimension_numbers<[1], [0], [0], [1], [0, 0, 1, 1], [], []>} : vector<2x4xf32>, vector<4x8xf32>, vector<2x8xf32> -> vector<2x8xf32>
    %258 = arith.maximumf %255, %256 : vector<2x8xf32>
    %259 = arith.maximumf %258, %257 : vector<2x8xf32>
    %260 = tpu.iota {dimensions = array<i32: 0>} : vector<2x2xi32>
    %261 = tpu.iota {dimensions = array<i32: 1>} : vector<2x2xi32>
    %c1_i32_132 = arith.constant 1 : i32
    %262 = vector.broadcast %c1_i32_132 : i32 to vector<2x2xi32>
    %263 = arith.subi %260, %262 : vector<2x2xi32>
    %264 = arith.cmpi eq, %261, %263 : vector<2x2xi32>
    %265 = arith.extui %264 : vector<2x2xi1> to vector<2x2xi32>
    %266 = arith.sitofp %265 : vector<2x2xi32> to vector<2x2xf32>
    %c1_i32_133 = arith.constant 1 : i32
    %267 = vector.broadcast %c1_i32_133 : i32 to vector<2x2xi32>
    %268 = arith.addi %260, %267 : vector<2x2xi32>
    %269 = arith.cmpi eq, %261, %268 : vector<2x2xi32>
    %270 = arith.extui %269 : vector<2x2xi1> to vector<2x2xi32>
    %271 = arith.sitofp %270 : vector<2x2xi32> to vector<2x2xf32>
    %c6 = arith.constant 6 : index
    %c0_134 = arith.constant 0 : index
    %c0_135 = arith.constant 0 : index
    %272 = vector.load %arg5[%c6, %c0_134, %c0_135] : memref<8x1x8xf32, #tpu.memory_space<vmem>>, vector<1x1x8xf32>
    %273 = vector.shape_cast %272 : vector<1x1x8xf32> to vector<1x8xf32>
    %274 = vector.broadcast %273 : vector<1x8xf32> to vector<2x8xf32>
    %275 = arith.mulf %259, %274 : vector<2x8xf32>
    %c6_136 = arith.constant 6 : index
    %c0_137 = arith.constant 0 : index
    %c0_138 = arith.constant 0 : index
    %276 = vector.load %arg6[%c6_136, %c0_137, %c0_138] : memref<8x1x8xf32, #tpu.memory_space<vmem>>, vector<1x1x8xf32>
    %277 = vector.shape_cast %276 : vector<1x1x8xf32> to vector<1x8xf32>
    %278 = vector.broadcast %277 : vector<1x8xf32> to vector<2x8xf32>
    %279 = arith.addf %275, %278 : vector<2x8xf32>
    %cst_139 = arith.constant 0.000000e+00 : f32
    %280 = vector.broadcast %cst_139 : f32 to vector<2x8xf32>
    %281 = arith.maximumf %279, %280 : vector<2x8xf32>
    %c6_140 = arith.constant 6 : index
    %c0_141 = arith.constant 0 : index
    %c0_142 = arith.constant 0 : index
    %282 = vector.load %arg7[%c6_140, %c0_141, %c0_142] : memref<8x24x8xf32, #tpu.memory_space<vmem>>, vector<1x24x8xf32>
    %283 = vector.shape_cast %282 : vector<1x24x8xf32> to vector<24x8xf32>
    %c6_143 = arith.constant 6 : index
    %c0_144 = arith.constant 0 : index
    %c0_145 = arith.constant 0 : index
    %284 = vector.load %arg8[%c6_143, %c0_144, %c0_145] : memref<8x1x8xf32, #tpu.memory_space<vmem>>, vector<1x1x8xf32>
    %285 = vector.shape_cast %284 : vector<1x1x8xf32> to vector<1x8xf32>
    %cst_146 = arith.constant dense<0.000000e+00> : vector<2x8xf32>
    %286 = tpu.matmul %266, %281, %cst_146 {dimension_numbers = #tpu.dot_dimension_numbers<[1], [0], [0], [1], [0, 0, 1, 1], [], []>} : vector<2x2xf32>, vector<2x8xf32>, vector<2x8xf32> -> vector<2x8xf32>
    %cst_147 = arith.constant dense<0.000000e+00> : vector<2x8xf32>
    %287 = tpu.matmul %271, %281, %cst_147 {dimension_numbers = #tpu.dot_dimension_numbers<[1], [0], [0], [1], [0, 0, 1, 1], [], []>} : vector<2x2xf32>, vector<2x8xf32>, vector<2x8xf32> -> vector<2x8xf32>
    %288 = tpu.concatenate %286, %281, %287 in 1 : vector<2x8xf32>, vector<2x8xf32>, vector<2x8xf32> -> vector<2x24xf32>
    %cst_148 = arith.constant dense<0.000000e+00> : vector<2x8xf32>
    %289 = tpu.matmul %288, %283, %cst_148 {dimension_numbers = #tpu.dot_dimension_numbers<[1], [0], [0], [1], [0, 0, 1, 1], [], []>} : vector<2x24xf32>, vector<24x8xf32>, vector<2x8xf32> -> vector<2x8xf32>
    %290 = vector.broadcast %285 : vector<1x8xf32> to vector<2x8xf32>
    %291 = arith.addf %289, %290 : vector<2x8xf32>
    %c7 = arith.constant 7 : index
    %c0_149 = arith.constant 0 : index
    %c0_150 = arith.constant 0 : index
    %292 = vector.load %arg5[%c7, %c0_149, %c0_150] : memref<8x1x8xf32, #tpu.memory_space<vmem>>, vector<1x1x8xf32>
    %293 = vector.shape_cast %292 : vector<1x1x8xf32> to vector<1x8xf32>
    %294 = vector.broadcast %293 : vector<1x8xf32> to vector<2x8xf32>
    %295 = arith.mulf %291, %294 : vector<2x8xf32>
    %c7_151 = arith.constant 7 : index
    %c0_152 = arith.constant 0 : index
    %c0_153 = arith.constant 0 : index
    %296 = vector.load %arg6[%c7_151, %c0_152, %c0_153] : memref<8x1x8xf32, #tpu.memory_space<vmem>>, vector<1x1x8xf32>
    %297 = vector.shape_cast %296 : vector<1x1x8xf32> to vector<1x8xf32>
    %298 = vector.broadcast %297 : vector<1x8xf32> to vector<2x8xf32>
    %299 = arith.addf %295, %298 : vector<2x8xf32>
    %cst_154 = arith.constant 0.000000e+00 : f32
    %300 = vector.broadcast %cst_154 : f32 to vector<2x8xf32>
    %301 = arith.maximumf %299, %300 : vector<2x8xf32>
    %c7_155 = arith.constant 7 : index
    %c0_156 = arith.constant 0 : index
    %c0_157 = arith.constant 0 : index
    %302 = vector.load %arg7[%c7_155, %c0_156, %c0_157] : memref<8x24x8xf32, #tpu.memory_space<vmem>>, vector<1x24x8xf32>
    %303 = vector.shape_cast %302 : vector<1x24x8xf32> to vector<24x8xf32>
    %c7_158 = arith.constant 7 : index
    %c0_159 = arith.constant 0 : index
    %c0_160 = arith.constant 0 : index
    %304 = vector.load %arg8[%c7_158, %c0_159, %c0_160] : memref<8x1x8xf32, #tpu.memory_space<vmem>>, vector<1x1x8xf32>
    %305 = vector.shape_cast %304 : vector<1x1x8xf32> to vector<1x8xf32>
    %cst_161 = arith.constant dense<0.000000e+00> : vector<2x8xf32>
    %306 = tpu.matmul %266, %301, %cst_161 {dimension_numbers = #tpu.dot_dimension_numbers<[1], [0], [0], [1], [0, 0, 1, 1], [], []>} : vector<2x2xf32>, vector<2x8xf32>, vector<2x8xf32> -> vector<2x8xf32>
    %cst_162 = arith.constant dense<0.000000e+00> : vector<2x8xf32>
    %307 = tpu.matmul %271, %301, %cst_162 {dimension_numbers = #tpu.dot_dimension_numbers<[1], [0], [0], [1], [0, 0, 1, 1], [], []>} : vector<2x2xf32>, vector<2x8xf32>, vector<2x8xf32> -> vector<2x8xf32>
    %308 = tpu.concatenate %306, %301, %307 in 1 : vector<2x8xf32>, vector<2x8xf32>, vector<2x8xf32> -> vector<2x24xf32>
    %cst_163 = arith.constant dense<0.000000e+00> : vector<2x8xf32>
    %309 = tpu.matmul %308, %303, %cst_163 {dimension_numbers = #tpu.dot_dimension_numbers<[1], [0], [0], [1], [0, 0, 1, 1], [], []>} : vector<2x24xf32>, vector<24x8xf32>, vector<2x8xf32> -> vector<2x8xf32>
    %310 = vector.broadcast %305 : vector<1x8xf32> to vector<2x8xf32>
    %311 = arith.addf %309, %310 : vector<2x8xf32>
    %312 = arith.addf %311, %259 : vector<2x8xf32>
    %c0_164 = arith.constant 0 : index
    %c0_165 = arith.constant 0 : index
    %313 = vector.load %arg10[%c0_164, %c0_165] : memref<1x4xf32, #tpu.memory_space<vmem>>, vector<1x4xf32>
    %314 = vector.extract_strided_slice %312 {offsets = [0, 0], sizes = [1, 8], strides = [1, 1]} : vector<2x8xf32> to vector<1x8xf32>
    %c0_166 = arith.constant 0 : index
    %c0_167 = arith.constant 0 : index
    %c0_168 = arith.constant 0 : index
    %315 = vector.load %arg9[%c0_166, %c0_167, %c0_168] : memref<2x8x4xf32, #tpu.memory_space<vmem>>, vector<1x8x4xf32>
    %316 = vector.shape_cast %315 : vector<1x8x4xf32> to vector<8x4xf32>
    %cst_169 = arith.constant dense<0.000000e+00> : vector<1x4xf32>
    %317 = tpu.matmul %314, %316, %cst_169 {dimension_numbers = #tpu.dot_dimension_numbers<[1], [0], [0], [1], [0, 0, 1, 1], [], []>} : vector<1x8xf32>, vector<8x4xf32>, vector<1x4xf32> -> vector<1x4xf32>
    %318 = arith.addf %313, %317 : vector<1x4xf32>
    %319 = vector.extract_strided_slice %312 {offsets = [1, 0], sizes = [1, 8], strides = [1, 1]} : vector<2x8xf32> to vector<1x8xf32>
    %c1_170 = arith.constant 1 : index
    %c0_171 = arith.constant 0 : index
    %c0_172 = arith.constant 0 : index
    %320 = vector.load %arg9[%c1_170, %c0_171, %c0_172] : memref<2x8x4xf32, #tpu.memory_space<vmem>>, vector<1x8x4xf32>
    %321 = vector.shape_cast %320 : vector<1x8x4xf32> to vector<8x4xf32>
    %cst_173 = arith.constant dense<0.000000e+00> : vector<1x4xf32>
    %322 = tpu.matmul %319, %321, %cst_173 {dimension_numbers = #tpu.dot_dimension_numbers<[1], [0], [0], [1], [0, 0, 1, 1], [], []>} : vector<1x8xf32>, vector<8x4xf32>, vector<1x4xf32> -> vector<1x4xf32>
    %323 = arith.addf %318, %322 : vector<1x4xf32>
    %cst_174 = arith.constant 0.000000e+00 : f32
    %324 = vector.broadcast %cst_174 : f32 to vector<1x4xf32>
    %325 = arith.maximumf %323, %324 : vector<1x4xf32>
    %c0_175 = arith.constant 0 : index
    %c0_176 = arith.constant 0 : index
    %326 = vector.load %arg11[%c0_175, %c0_176] : memref<4x4xf32, #tpu.memory_space<vmem>>, vector<4x4xf32>
    %cst_177 = arith.constant dense<0.000000e+00> : vector<1x4xf32>
    %327 = tpu.matmul %325, %326, %cst_177 {dimension_numbers = #tpu.dot_dimension_numbers<[1], [0], [0], [1], [0, 0, 1, 1], [], []>} : vector<1x4xf32>, vector<4x4xf32>, vector<1x4xf32> -> vector<1x4xf32>
    %c0_178 = arith.constant 0 : index
    %c0_179 = arith.constant 0 : index
    %328 = vector.load %arg12[%c0_178, %c0_179] : memref<1x4xf32, #tpu.memory_space<vmem>>, vector<1x4xf32>
    %329 = arith.addf %327, %328 : vector<1x4xf32>
    %330 = vector.shape_cast %329 : vector<1x4xf32> to vector<1x1x4xf32>
    %c0_180 = arith.constant 0 : index
    %c0_181 = arith.constant 0 : index
    %c0_182 = arith.constant 0 : index
    %331 = vector.load %arg13[%c0_180, %c0_181, %c0_182] : memref<1x1x4xf32, #tpu.memory_space<vmem>>, vector<1x1x4xf32>
    tpu.vector_store %arg13[%c0_180, %c0_181, %c0_182], %330 {strides = array<i32>} : memref<1x1x4xf32, #tpu.memory_space<vmem>>, vector<1x1x4xf32>,
    return
  }
  func.func @transform_0(%arg0: i32) -> (i32, i32) {
    %c0_i32 = arith.constant 0 : i32
    %c0_i32_0 = arith.constant 0 : i32
    return %arg0, %c0_i32 : i32, i32
  }
  func.func @transform_1(%arg0: i32) -> (i32, i32) {
    %c0_i32 = arith.constant 0 : i32
    %c0_i32_0 = arith.constant 0 : i32
    %c0_i32_1 = arith.constant 0 : i32
    return %c0_i32, %c0_i32_0 : i32, i32
  }
  func.func @transform_2(%arg0: i32) -> (i32, i32) {
    %c0_i32 = arith.constant 0 : i32
    %c0_i32_0 = arith.constant 0 : i32
    %c0_i32_1 = arith.constant 0 : i32
    return %c0_i32, %c0_i32_0 : i32, i32
  }
  func.func @transform_3(%arg0: i32) -> (i32, i32) {
    %c0_i32 = arith.constant 0 : i32
    %c0_i32_0 = arith.constant 0 : i32
    %c0_i32_1 = arith.constant 0 : i32
    return %c0_i32, %c0_i32_0 : i32, i32
  }
  func.func @transform_4(%arg0: i32) -> (i32, i32, i32) {
    %c0_i32 = arith.constant 0 : i32
    %c0_i32_0 = arith.constant 0 : i32
    %c0_i32_1 = arith.constant 0 : i32
    %c0_i32_2 = arith.constant 0 : i32
    return %c0_i32, %c0_i32_0, %c0_i32_1 : i32, i32, i32
  }
  func.func @transform_5(%arg0: i32) -> (i32, i32, i32) {
    %c0_i32 = arith.constant 0 : i32
    %c0_i32_0 = arith.constant 0 : i32
    %c0_i32_1 = arith.constant 0 : i32
    %c0_i32_2 = arith.constant 0 : i32
    return %c0_i32, %c0_i32_0, %c0_i32_1 : i32, i32, i32
  }
  func.func @transform_6(%arg0: i32) -> (i32, i32, i32) {
    %c0_i32 = arith.constant 0 : i32
    %c0_i32_0 = arith.constant 0 : i32
    %c0_i32_1 = arith.constant 0 : i32
    %c0_i32_2 = arith.constant 0 : i32
    return %c0_i32, %c0_i32_0, %c0_i32_1 : i32, i32, i32
  }
  func.func @transform_7(%arg0: i32) -> (i32, i32, i32) {
    %c0_i32 = arith.constant 0 : i32
    %c0_i32_0 = arith.constant 0 : i32
    %c0_i32_1 = arith.constant 0 : i32
    %c0_i32_2 = arith.constant 0 : i32
    return %c0_i32, %c0_i32_0, %c0_i32_1 : i32, i32, i32
  }
  func.func @transform_8(%arg0: i32) -> (i32, i32, i32) {
    %c0_i32 = arith.constant 0 : i32
    %c0_i32_0 = arith.constant 0 : i32
    %c0_i32_1 = arith.constant 0 : i32
    %c0_i32_2 = arith.constant 0 : i32
    return %c0_i32, %c0_i32_0, %c0_i32_1 : i32, i32, i32
  }
  func.func @transform_9(%arg0: i32) -> (i32, i32) {
    %c0_i32 = arith.constant 0 : i32
    %c0_i32_0 = arith.constant 0 : i32
    %c0_i32_1 = arith.constant 0 : i32
    return %c0_i32, %c0_i32_0 : i32, i32
  }
  func.func @transform_10(%arg0: i32) -> (i32, i32) {
    %c0_i32 = arith.constant 0 : i32
    %c0_i32_0 = arith.constant 0 : i32
    %c0_i32_1 = arith.constant 0 : i32
    return %c0_i32, %c0_i32_0 : i32, i32
  }
  func.func @transform_11(%arg0: i32) -> (i32, i32) {
    %c0_i32 = arith.constant 0 : i32
    %c0_i32_0 = arith.constant 0 : i32
    %c0_i32_1 = arith.constant 0 : i32
    return %c0_i32, %c0_i32_0 : i32, i32
  }
  func.func @transform_12(%arg0: i32) -> (i32, i32, i32) {
    %c0_i32 = arith.constant 0 : i32
    %c0_i32_0 = arith.constant 0 : i32
    %c0_i32_1 = arith.constant 0 : i32
    return %arg0, %c0_i32, %c0_i32_0 : i32, i32, i32
  }
}

</mosaic_0001>

<llo_original>
// kernel: dpcnn_forward.1
$region0: #{dpcnn_forward.1}
  #allocation0 [shape = 'u32[]', space=smem, size = 0x4, offset = 0x4, fixed_abs, tag = 'smem constant byte address 0x4 - core index']
  #allocation1 [shape = 'u32[144,128]{1,0:T(1,128)}', space=vmem, size = 0x12000, scoped, tag = 'internal scratch']
  %s0 = inlined_call_operand.vmem [shape: s32[32,1], index: 0, kind: input, shape index: {}]
  %s1 = inlined_call_operand.vmem [shape: f32[50,16], index: 1, kind: input, shape index: {}]
  %s2 = inlined_call_operand.vmem [shape: f32[48,8], index: 2, kind: input, shape index: {}]
  %s3 = inlined_call_operand.vmem [shape: f32[1,8], index: 3, kind: input, shape index: {}]
  %s4 = inlined_call_operand.vmem [shape: f32[8,1,8], index: 4, kind: input, shape index: {}]
  %s5 = inlined_call_operand.vmem [shape: f32[8,1,8], index: 5, kind: input, shape index: {}]
  %s6 = inlined_call_operand.vmem [shape: f32[8,24,8], index: 6, kind: input, shape index: {}]
  %s7 = inlined_call_operand.vmem [shape: f32[8,1,8], index: 7, kind: input, shape index: {}]
  %s8 = inlined_call_operand.vmem [shape: f32[2,8,4], index: 8, kind: input, shape index: {}]
  %s9 = inlined_call_operand.vmem [shape: f32[1,4], index: 9, kind: input, shape index: {}]
  %s10 = inlined_call_operand.vmem [shape: f32[4,4], index: 10, kind: input, shape index: {}]
  %s11 = inlined_call_operand.vmem [shape: f32[1,4], index: 11, kind: input, shape index: {}]
  %s12 = inlined_call_operand.hbm [shape: f32[2,1,4], index: 12, kind: output, shape index: {}]
  %s13 = sld [smem:[#allocation0]]
  $region81: #{dpcnn_forward.1} parent=0
    _
  %s15 = ssub.s32 1, %s13
  %s16 = scalar_select 0, %s15, %s13
  $region1: #{dpcnn_forward.1} parent=0
    #allocation2 [shape = 'u8[1024]{0}', space=vmem, size = 0x400, scoped, tag = 'output window, operand 0']
    #allocation3 [shape = 's32[2]{0}', space=sflag, size = 0x8, scoped, tag = 'scoped memory for dpcnn_forward.1']
    %17 = vsyncpa [#allocation3], 0
    %s18 = scalar_lea.sflag [#allocation3], 1
    %19 = vsyncpa %s18, 0
    loop: start=0, step=1, limit=4
    $region2: #{dpcnn_forward.1} parent=1 // loop_pre_header
      _
    $region3: #{dpcnn_forward.1} parent=1 // loop_header
      %s21 = sphi 0, %s25
      %p22 = scmp.ge.s32.totalorder %s21, 4
      %s31 = sphi 0, %s33
      %s34 = sphi 0, %s31
      %s35 = sphi 0, %s34
      %s51 = sphi 0, %s35
      %s55 = sphi 0, %s55
      %s57 = sphi 0, %s55
      %s58 = sphi 0, %s57
      %s72 = sphi 0, %s58
      %s76 = sphi 0, %s76
      %s78 = sphi 0, %s76
      %s79 = sphi 0, %s78
      %s93 = sphi 0, %s79
      %s97 = sphi 0, %s97
      %s99 = sphi 0, %s97
      %s100 = sphi 0, %s99
      %s114 = sphi 0, %s100
      %s118 = sphi 0, %s118
      %s120 = sphi 0, %s118
      %s121 = sphi 0, %s120
      %s135 = sphi 0, %s121
      %s139 = sphi 0, %s139
      %s141 = sphi 0, %s139
      %s142 = sphi 0, %s141
      %s156 = sphi 0, %s142
      %s160 = sphi 0, %s160
      %s162 = sphi 0, %s160
      %s163 = sphi 0, %s162
      %s177 = sphi 0, %s163
      %s181 = sphi 0, %s181
      %s183 = sphi 0, %s181
      %s184 = sphi 0, %s183
      %s198 = sphi 0, %s184
      %s202 = sphi 0, %s202
      %s204 = sphi 0, %s202
      %s205 = sphi 0, %s204
      %s219 = sphi 0, %s205
      %s223 = sphi 0, %s223
      %s225 = sphi 0, %s223
      %s226 = sphi 0, %s225
      %s240 = sphi 0, %s226
      %s244 = sphi 0, %s244
      %s246 = sphi 0, %s244
      %s247 = sphi 0, %s246
      %s261 = sphi 0, %s247
      %s265 = sphi 0, %s265
      %s267 = sphi 0, %s265
      %s268 = sphi 0, %s267
      %s282 = sphi 0, %s268
      %s288 = sphi 0, %s290
      %s291 = sphi 0, %s288
      %s292 = sphi 0, %s291
      %s308 = sphi 0, %s292
    $region4: #{dpcnn_forward.1} parent=1 // loop_header_branch
      %24 = sbr.rel (%p22) target = $region8
    $region5: #{dpcnn_forward.1} parent=1 // loop_body
      %s26 = ssub.s32 %s21, 1
      %s27 = ssub.s32 %s21, 2
      %s28 = sadd.s32 %s21, 1
      %s29 = ssub.s32 %s21, %s28
      %p30 = scmp.eq.s32.totalorder %s29, 0
      %s32 = sadd.s32 %s31, 1
      %s33 = scalar_select %p30, %s31, %s32
      %p36 = pneg %p30
      %p37 = scmp.eq.s32.totalorder %s21, 1
      %p38 = por %p36, %p37
      %p39 = scmp.ne.s32.totalorder %s31, %s34
      %p40 = scmp.eq.s32.totalorder %s21, 0
      %p41 = por %p39, %p40
      %p42 = scmp.ne.s32.totalorder %s31, %s34
      %p43 = scmp.eq.s32.totalorder %s26, 1
      %p44 = por %p42, %p43
      %p45 = scmp.ne.s32.totalorder %s34, %s35
      %p46 = scmp.eq.s32.totalorder %s26, 0
      %p47 = por %p45, %p46
      %p48 = scmp.ne.s32.totalorder %s34, %s35
      %p49 = scmp.eq.s32.totalorder %s27, 1
      %p50 = por %p48, %p49
      %p52 = scmp.ne.s32.totalorder %s35, %s51
      %p53 = scmp.eq.s32.totalorder %s27, 0
      %p54 = por %p52, %p53
      %s56 = sadd.s32 %s55, 1
      %p59 = scmp.eq.s32.totalorder %s21, 1
      %p60 = scmp.ne.s32.totalorder %s55, %s57
      %p61 = scmp.eq.s32.totalorder %s21, 0
      %p62 = por %p60, %p61
      %p63 = scmp.ne.s32.totalorder %s55, %s57
      %p64 = scmp.eq.s32.totalorder %s26, 1
      %p65 = por %p63, %p64
      %p66 = scmp.ne.s32.totalorder %s57, %s58
      %p67 = scmp.eq.s32.totalorder %s26, 0
      %p68 = por %p66, %p67
      %p69 = scmp.ne.s32.totalorder %s57, %s58
      %p70 = scmp.eq.s32.totalorder %s27, 1
      %p71 = por %p69, %p70
      %p73 = scmp.ne.s32.totalorder %s58, %s72
      %p74 = scmp.eq.s32.totalorder %s27, 0
      %p75 = por %p73, %p74
      %s77 = sadd.s32 %s76, 1
      %p80 = scmp.eq.s32.totalorder %s21, 1
      %p81 = scmp.ne.s32.totalorder %s76, %s78
      %p82 = scmp.eq.s32.totalorder %s21, 0
      %p83 = por %p81, %p82
      %p84 = scmp.ne.s32.totalorder %s76, %s78
      %p85 = scmp.eq.s32.totalorder %s26, 1
      %p86 = por %p84, %p85
      %p87 = scmp.ne.s32.totalorder %s78, %s79
      %p88 = scmp.eq.s32.totalorder %s26, 0
      %p89 = por %p87, %p88
      %p90 = scmp.ne.s32.totalorder %s78, %s79
      %p91 = scmp.eq.s32.totalorder %s27, 1
      %p92 = por %p90, %p91
      %p94 = scmp.ne.s32.totalorder %s79, %s93
      %p95 = scmp.eq.s32.totalorder %s27, 0
      %p96 = por %p94, %p95
      %s98 = sadd.s32 %s97, 1
      %p101 = scmp.eq.s32.totalorder %s21, 1
      %p102 = scmp.ne.s32.totalorder %s97, %s99
      %p103 = scmp.eq.s32.totalorder %s21, 0
      %p104 = por %p102, %p103
      %p105 = scmp.ne.s32.totalorder %s97, %s99
      %p106 = scmp.eq.s32.totalorder %s26, 1
      %p107 = por %p105, %p106
      %p108 = scmp.ne.s32.totalorder %s99, %s100
      %p109 = scmp.eq.s32.totalorder %s26, 0
      %p110 = por %p108, %p109
      %p111 = scmp.ne.s32.totalorder %s99, %s100
      %p112 = scmp.eq.s32.totalorder %s27, 1
      %p113 = por %p111, %p112
      %p115 = scmp.ne.s32.totalorder %s100, %s114
      %p116 = scmp.eq.s32.totalorder %s27, 0
      %p117 = por %p115, %p116
      %s119 = sadd.s32 %s118, 1
      %p122 = scmp.eq.s32.totalorder %s21, 1
      %p123 = scmp.ne.s32.totalorder %s118, %s120
      %p124 = scmp.eq.s32.totalorder %s21, 0
      %p125 = por %p123, %p124
      %p126 = scmp.ne.s32.totalorder %s118, %s120
      %p127 = scmp.eq.s32.totalorder %s26, 1
      %p128 = por %p126, %p127
      %p129 = scmp.ne.s32.totalorder %s120, %s121
      %p130 = scmp.eq.s32.totalorder %s26, 0
      %p131 = por %p129, %p130
      %p132 = scmp.ne.s32.totalorder %s120, %s121
      %p133 = scmp.eq.s32.totalorder %s27, 1
      %p134 = por %p132, %p133
      %p136 = scmp.ne.s32.totalorder %s121, %s135
      %p137 = scmp.eq.s32.totalorder %s27, 0
      %p138 = por %p136, %p137
      %s140 = sadd.s32 %s139, 1
      %p143 = scmp.eq.s32.totalorder %s21, 1
      %p144 = scmp.ne.s32.totalorder %s139, %s141
      %p145 = scmp.eq.s32.totalorder %s21, 0
      %p146 = por %p144, %p145
      %p147 = scmp.ne.s32.totalorder %s139, %s141
      %p148 = scmp.eq.s32.totalorder %s26, 1
      %p149 = por %p147, %p148
      %p150 = scmp.ne.s32.totalorder %s141, %s142
      %p151 = scmp.eq.s32.totalorder %s26, 0
      %p152 = por %p150, %p151
      %p153 = scmp.ne.s32.totalorder %s141, %s142
      %p154 = scmp.eq.s32.totalorder %s27, 1
      %p155 = por %p153, %p154
      %p157 = scmp.ne.s32.totalorder %s142, %s156
      %p158 = scmp.eq.s32.totalorder %s27, 0
      %p159 = por %p157, %p158
      %s161 = sadd.s32 %s160, 1
      %p164 = scmp.eq.s32.totalorder %s21, 1
      %p165 = scmp.ne.s32.totalorder %s160, %s162
      %p166 = scmp.eq.s32.totalorder %s21, 0
      %p167 = por %p165, %p166
      %p168 = scmp.ne.s32.totalorder %s160, %s162
      %p169 = scmp.eq.s32.totalorder %s26, 1
      %p170 = por %p168, %p169
      %p171 = scmp.ne.s32.totalorder %s162, %s163
      %p172 = scmp.eq.s32.totalorder %s26, 0
      %p173 = por %p171, %p172
      %p174 = scmp.ne.s32.totalorder %s162, %s163
      %p175 = scmp.eq.s32.totalorder %s27, 1
      %p176 = por %p174, %p175
      %p178 = scmp.ne.s32.totalorder %s163, %s177
      %p179 = scmp.eq.s32.totalorder %s27, 0
      %p180 = por %p178, %p179
      %s182 = sadd.s32 %s181, 1
      %p185 = scmp.eq.s32.totalorder %s21, 1
      %p186 = scmp.ne.s32.totalorder %s181, %s183
      %p187 = scmp.eq.s32.totalorder %s21, 0
      %p188 = por %p186, %p187
      %p189 = scmp.ne.s32.totalorder %s181, %s183
      %p190 = scmp.eq.s32.totalorder %s26, 1
      %p191 = por %p189, %p190
      %p192 = scmp.ne.s32.totalorder %s183, %s184
      %p193 = scmp.eq.s32.totalorder %s26, 0
      %p194 = por %p192, %p193
      %p195 = scmp.ne.s32.totalorder %s183, %s184
      %p196 = scmp.eq.s32.totalorder %s27, 1
      %p197 = por %p195, %p196
      %p199 = scmp.ne.s32.totalorder %s184, %s198
      %p200 = scmp.eq.s32.totalorder %s27, 0
      %p201 = por %p199, %p200
      %s203 = sadd.s32 %s202, 1
      %p206 = scmp.eq.s32.totalorder %s21, 1
      %p207 = scmp.ne.s32.totalorder %s202, %s204
      %p208 = scmp.eq.s32.totalorder %s21, 0
      %p209 = por %p207, %p208
      %p210 = scmp.ne.s32.totalorder %s202, %s204
      %p211 = scmp.eq.s32.totalorder %s26, 1
      %p212 = por %p210, %p211
      %p213 = scmp.ne.s32.totalorder %s204, %s205
      %p214 = scmp.eq.s32.totalorder %s26, 0
      %p215 = por %p213, %p214
      %p216 = scmp.ne.s32.totalorder %s204, %s205
      %p217 = scmp.eq.s32.totalorder %s27, 1
      %p218 = por %p216, %p217
      %p220 = scmp.ne.s32.totalorder %s205, %s219
      %p221 = scmp.eq.s32.totalorder %s27, 0
      %p222 = por %p220, %p221
      %s224 = sadd.s32 %s223, 1
      %p227 = scmp.eq.s32.totalorder %s21, 1
      %p228 = scmp.ne.s32.totalorder %s223, %s225
      %p229 = scmp.eq.s32.totalorder %s21, 0
      %p230 = por %p228, %p229
      %p231 = scmp.ne.s32.totalorder %s223, %s225
      %p232 = scmp.eq.s32.totalorder %s26, 1
      %p233 = por %p231, %p232
      %p234 = scmp.ne.s32.totalorder %s225, %s226
      %p235 = scmp.eq.s32.totalorder %s26, 0
      %p236 = por %p234, %p235
      %p237 = scmp.ne.s32.totalorder %s225, %s226
      %p238 = scmp.eq.s32.totalorder %s27, 1
      %p239 = por %p237, %p238
      %p241 = scmp.ne.s32.totalorder %s226, %s240
      %p242 = scmp.eq.s32.totalorder %s27, 0
      %p243 = por %p241, %p242
      %s245 = sadd.s32 %s244, 1
      %p248 = scmp.eq.s32.totalorder %s21, 1
      %p249 = scmp.ne.s32.totalorder %s244, %s246
      %p250 = scmp.eq.s32.totalorder %s21, 0
      %p251 = por %p249, %p250
      %p252 = scmp.ne.s32.totalorder %s244, %s246
      %p253 = scmp.eq.s32.totalorder %s26, 1
      %p254 = por %p252, %p253
      %p255 = scmp.ne.s32.totalorder %s246, %s247
      %p256 = scmp.eq.s32.totalorder %s26, 0
      %p257 = por %p255, %p256
      %p258 = scmp.ne.s32.totalorder %s246, %s247
      %p259 = scmp.eq.s32.totalorder %s27, 1
      %p260 = por %p258, %p259
      %p262 = scmp.ne.s32.totalorder %s247, %s261
      %p263 = scmp.eq.s32.totalorder %s27, 0
      %p264 = por %p262, %p263
      %s266 = sadd.s32 %s265, 1
      %p269 = scmp.eq.s32.totalorder %s21, 1
      %p270 = scmp.ne.s32.totalorder %s265, %s267
      %p271 = scmp.eq.s32.totalorder %s21, 0
      %p272 = por %p270, %p271
      %p273 = scmp.ne.s32.totalorder %s265, %s267
      %p274 = scmp.eq.s32.totalorder %s26, 1
      %p275 = por %p273, %p274
      %p276 = scmp.ne.s32.totalorder %s267, %s268
      %p277 = scmp.eq.s32.totalorder %s26, 0
      %p278 = por %p276, %p277
      %p279 = scmp.ne.s32.totalorder %s267, %s268
      %p280 = scmp.eq.s32.totalorder %s27, 1
      %p281 = por %p279, %p280
      %p283 = scmp.ne.s32.totalorder %s268, %s282
      %p284 = scmp.eq.s32.totalorder %s27, 0
      %p285 = por %p283, %p284
      %s286 = ssub.s32 %s21, %s28
      %p287 = scmp.eq.s32.totalorder %s286, 0
      %s289 = sadd.s32 %s288, 1
      %s290 = scalar_select %p287, %s288, %s289
      %p293 = pneg %p287
      %p294 = scmp.eq.s32.totalorder %s21, 1
      %p295 = por %p293, %p294
      %p296 = scmp.ne.s32.totalorder %s288, %s291
      %p297 = scmp.eq.s32.totalorder %s21, 0
      %p298 = por %p296, %p297
      %p299 = scmp.ne.s32.totalorder %s288, %s291
      %p300 = scmp.eq.s32.totalorder %s26, 1
      %p301 = por %p299, %p300
      %p302 = scmp.ne.s32.totalorder %s291, %s292
      %p303 = scmp.eq.s32.totalorder %s26, 0
      %p304 = por %p302, %p303
      %p305 = scmp.ne.s32.totalorder %s291, %s292
      %p306 = scmp.eq.s32.totalorder %s27, 1
      %p307 = por %p305, %p306
      %p309 = scmp.ne.s32.totalorder %s292, %s308
      %p310 = scmp.eq.s32.totalorder %s27, 0
      %p311 = por %p309, %p310
      %p312 = scmp.le.s32.totalorder 1, %s21
      %p313 = scmp.lt.s32.totalorder %s21, 3
      %p314 = pnand %p312, %p313
      %p315 = pneg %p314
      // Predicated region
      $region9: #{dpcnn_forward.1} parent=5 // pred_check
        _
      $region10: #{dpcnn_forward.1} parent=5 // pred_check_branch
        %317 = sbr.rel (%p314) target = $region12
      $region11: #{dpcnn_forward.1} parent=5 // pred_region
        %s318 = ssub.s32 %s21, 1
        // Predicated region
        $region13: #{dpcnn_forward.1} parent=11 // pred_check
          %p319 = pneg %p68
        $region14: #{dpcnn_forward.1} parent=11 // pred_check_branch
          %321 = sbr.rel (%p319) target = $region16
        $region15: #{dpcnn_forward.1} parent=11 // pred_region
          _
        $region16: #{dpcnn_forward.1} parent=11 // pred_fallthru
          _
        // Predicated region
        $region17: #{dpcnn_forward.1} parent=11 // pred_check
          %p322 = pneg %p89
        $region18: #{dpcnn_forward.1} parent=11 // pred_check_branch
          %324 = sbr.rel (%p322) target = $region20
        $region19: #{dpcnn_forward.1} parent=11 // pred_region
          _
        $region20: #{dpcnn_forward.1} parent=11 // pred_fallthru
          _
        // Predicated region
        $region21: #{dpcnn_forward.1} parent=11 // pred_check
          %p325 = pneg %p110
        $region22: #{dpcnn_forward.1} parent=11 // pred_check_branch
          %327 = sbr.rel (%p325) target = $region24
        $region23: #{dpcnn_forward.1} parent=11 // pred_region
          _
        $region24: #{dpcnn_forward.1} parent=11 // pred_fallthru
          _
        // Predicated region
        $region25: #{dpcnn_forward.1} parent=11 // pred_check
          %p328 = pneg %p131
        $region26: #{dpcnn_forward.1} parent=11 // pred_check_branch
          %330 = sbr.rel (%p328) target = $region28
        $region27: #{dpcnn_forward.1} parent=11 // pred_region
          _
        $region28: #{dpcnn_forward.1} parent=11 // pred_fallthru
          _
        // Predicated region
        $region29: #{dpcnn_forward.1} parent=11 // pred_check
          %p331 = pneg %p152
        $region30: #{dpcnn_forward.1} parent=11 // pred_check_branch
          %333 = sbr.rel (%p331) target = $region32
        $region31: #{dpcnn_forward.1} parent=11 // pred_region
          _
        $region32: #{dpcnn_forward.1} parent=11 // pred_fallthru
          _
        // Predicated region
        $region33: #{dpcnn_forward.1} parent=11 // pred_check
          %p334 = pneg %p173
        $region34: #{dpcnn_forward.1} parent=11 // pred_check_branch
          %336 = sbr.rel (%p334) target = $region36
        $region35: #{dpcnn_forward.1} parent=11 // pred_region
          _
        $region36: #{dpcnn_forward.1} parent=11 // pred_fallthru
          _
        // Predicated region
        $region37: #{dpcnn_forward.1} parent=11 // pred_check
          %p337 = pneg %p194
        $region38: #{dpcnn_forward.1} parent=11 // pred_check_branch
          %339 = sbr.rel (%p337) target = $region40
        $region39: #{dpcnn_forward.1} parent=11 // pred_region
          _
        $region40: #{dpcnn_forward.1} parent=11 // pred_fallthru
          _
        // Predicated region
        $region41: #{dpcnn_forward.1} parent=11 // pred_check
          %p340 = pneg %p215
        $region42: #{dpcnn_forward.1} parent=11 // pred_check_branch
          %342 = sbr.rel (%p340) target = $region44
        $region43: #{dpcnn_forward.1} parent=11 // pred_region
          _
        $region44: #{dpcnn_forward.1} parent=11 // pred_fallthru
          _
        // Predicated region
        $region45: #{dpcnn_forward.1} parent=11 // pred_check
          %p343 = pneg %p236
        $region46: #{dpcnn_forward.1} parent=11 // pred_check_branch
          %345 = sbr.rel (%p343) target = $region48
        $region47: #{dpcnn_forward.1} parent=11 // pred_region
          _
        $region48: #{dpcnn_forward.1} parent=11 // pred_fallthru
          _
        // Predicated region
        $region49: #{dpcnn_forward.1} parent=11 // pred_check
          %p346 = pneg %p257
        $region50: #{dpcnn_forward.1} parent=11 // pred_check_branch
          %348 = sbr.rel (%p346) target = $region52
        $region51: #{dpcnn_forward.1} parent=11 // pred_region
          _
        $region52: #{dpcnn_forward.1} parent=11 // pred_fallthru
          _
        // Predicated region
        $region53: #{dpcnn_forward.1} parent=11 // pred_check
          %p349 = pneg %p278
        $region54: #{dpcnn_forward.1} parent=11 // pred_check_branch
          %351 = sbr.rel (%p349) target = $region56
        $region55: #{dpcnn_forward.1} parent=11 // pred_region
          _
        $region56: #{dpcnn_forward.1} parent=11 // pred_fallthru
          _
      $region12: #{dpcnn_forward.1} parent=5 // pred_fallthru
        _
      %p352 = scmp.lt.s32.totalorder %s21, 2
      // Predicated region
      $region57: #{dpcnn_forward.1} parent=5 // pred_check
        %p353 = pneg %p352
      $region58: #{dpcnn_forward.1} parent=5 // pred_check_branch
        %355 = sbr.rel (%p353) target = $region60
      $region59: #{dpcnn_forward.1} parent=5 // pred_region
        // Predicated region
        $region61: #{dpcnn_forward.1} parent=59 // pred_check
          %p356 = pneg %p41
        $region62: #{dpcnn_forward.1} parent=59 // pred_check_branch
          %358 = sbr.rel (%p356) target = $region64
        $region63: #{dpcnn_forward.1} parent=59 // pred_region
          %s359 = smul.u32 2, %s21
          %p360 = scmp.lt.s32.totalorder %s359, 3
          %s361 = scalar_select %p360, %s359, 3
          %s362 = smul.addr %s361, 8
          %s363 = scalar_lea.vmem %s0, %s362
          %s364 = smul.u32 2, %s21
        $region64: #{dpcnn_forward.1} parent=59 // pred_fallthru
          _
      $region60: #{dpcnn_forward.1} parent=5 // pred_fallthru
        _
      %p365 = scmp.le.s32.totalorder 1, %s21
      %p366 = scmp.lt.s32.totalorder %s21, 3
      %p367 = pnand %p365, %p366
      %p368 = pneg %p367
      // Predicated region
      $region65: #{dpcnn_forward.1} parent=5 // pred_check
        _
      $region66: #{dpcnn_forward.1} parent=5 // pred_check_branch
        %370 = sbr.rel (%p367) target = $region68
      $region67: #{dpcnn_forward.1} parent=5 // pred_region
        %s371 = ssub.s32 %s21, 1
        %s372 = smul.u32 2, %s26
        %p373 = scmp.lt.s32.totalorder %s372, 3
        %s374 = scalar_select %p373, %s372, 3
        %s375 = smul.addr %s374, 8
        %s376 = scalar_lea.vmem %s0, %s375
        %p377 = pneg %p47
        %p378 = pneg %p44
        %p379 = pneg %p68
        %p380 = pneg %p65
        %p381 = pneg %p89
        %p382 = pneg %p86
        %p383 = pneg %p110
        %p384 = pneg %p107
        %p385 = pneg %p131
        %p386 = pneg %p128
        %p387 = pneg %p152
        %p388 = pneg %p149
        %p389 = pneg %p173
        %p390 = pneg %p170
        %p391 = pneg %p194
        %p392 = pneg %p191
        %p393 = pneg %p215
        %p394 = pneg %p212
        %p395 = pneg %p236
        %p396 = pneg %p233
        %p397 = pneg %p257
        %p398 = pneg %p254
        %p399 = pneg %p278
        %p400 = pneg %p275
        %p401 = pneg %p304
        %p402 = pneg %p301
        %s403 = sand.u32 %s291, 1
        %s404 = scalar_lea.sflag [#allocation3], %s403
        %s405 = sand.u32 %s291, 1
        %s406 = scalar_lea.vmem [#allocation2], %s405
        %s407 = smul.u32 2, %s26
        %p408 = scmp.lt.s32.totalorder %s407, 3
        %s409 = scalar_select %p408, %s407, 3
        %s410 = smul.addr %s409, 8
        %s411 = scalar_lea.vmem %s0, %s410
        %s412 = smul.u32 2, %s26
        %v413 = vld [vmem:[%s411] sm:$0xff]
        %v414 = vld [vmem:[%s411 + $0x8] sm:$0xff]
        %v415 = vlaneseq
        %v416 = vand.u32 %v415, 127
        %417 = vset.pattern.permute.xlu0 0
        %418 = vperm.xlu0 %417, %v413
        %v419 = vpop.permute.xlu0 %418
        %420 = vset.pattern.permute.xlu0 0
        %421 = vperm.xlu0 %420, %v414
        %v422 = vpop.permute.xlu0 %421
        %vm423 = vcmp.eq.s32.totalorder %v419, %v416
        %vm424 = vcmp.eq.s32.totalorder %v422, %v416
        %v425 = vsel %vm423, 1, 0
        %v426 = vsel %vm424, 1, 0
        %v427 = vcvt.s32.f32 %v425
        %v428 = vcvt.s32.f32 %v426
        %v429 = vld [vmem:[%s1] sm:$0xff]
        %v430 = vld [vmem:[%s1 + $0x8] sm:$0xff]
        %v431 = vld [vmem:[%s1 + $0x10] sm:$0xff]
        %v432 = vld [vmem:[%s1 + $0x18] sm:$0xff]
        %v433 = vld [vmem:[%s1 + $0x20] sm:$0xff]
        %v434 = vld [vmem:[%s1 + $0x28] sm:$0xff]
        %v435 = vld [vmem:[%s1 + $0x30] sm:$0x3]
        %vm436 = vcmask 408576
        %v438 = vsel %vm436, %v427, 0
        %v441 = vsel %vm436, %v428, 0
        %vm443 = vcmask 1041408
        %v445 = vsel %vm443, %v435, 0
        %447 = vmatprep.subr.mxu0 0.0
        %448 = vmatpush1.msra.mxu0 0.0
        %449 = vmatprep.subr.mxu0 0.0
        %450 = vmatpush1.msra.mxu0 0.0
        %451 = vmatprep.subr.mxu0 0.0
        %452 = vmatpush1.msra.mxu0 0.0
        %453 = vmatprep.subr.mxu0 0.0
        %454 = vmatpush1.msra.mxu0 0.0
        %455 = vmatprep.subr.mxu0 0.0
        %456 = vmatpush1.msra.mxu0 0.0
        %457 = vmatprep.subr.mxu0 0.0
        %458 = vmatpush1.msra.mxu0 0.0
        %459 = vmatprep.subr.mxu0 0.0
        %460 = vmatpush1.msra.mxu0 0.0
        %461 = vmatprep.subr.mxu0 0.0
        %462 = vmatpush1.msra.mxu0 0.0
        %463 = vmatprep.subr.mxu0 0.0
        %464 = vmatpush1.msra.mxu0 0.0
        %465 = vmatprep.subr.mxu0 0.0
        %466 = vmatpush1.msra.mxu0 %v445
        %467 = vmatprep.subr.mxu0 0.0
        %468 = vmatpush1.msra.mxu0 %v434
        %469 = vmatprep.subr.mxu0 0.0
        %470 = vmatpush1.msra.mxu0 %v433
        %471 = vmatprep.subr.mxu0 0.0
        %472 = vmatpush1.msra.mxu0 %v432
        %473 = vmatprep.subr.mxu0 0.0
        %474 = vmatpush1.msra.mxu0 %v431
        %475 = vmatprep.subr.mxu0 0.0
        %476 = vmatpush1.msra.mxu0 %v430
        %477 = vmatprep.subr.mxu0 0.0
        %478 = vmatpush1.msra.mxu0 %v429
        %479 = vmatprep.subr.mxu0 0.0
        %480 = vmatpush2.msra.mxu0 0.0
        %481 = vmatprep.subr.mxu0 0.0
        %482 = vmatpush2.msra.mxu0 0.0
        %483 = vmatprep.subr.mxu0 0.0
        %484 = vmatpush2.msra.mxu0 0.0
        %485 = vmatprep.subr.mxu0 0.0
        %486 = vmatpush2.msra.mxu0 0.0
        %487 = vmatprep.subr.mxu0 0.0
        %488 = vmatpush2.msra.mxu0 0.0
        %489 = vmatprep.subr.mxu0 0.0
        %490 = vmatpush2.msra.mxu0 0.0
        %491 = vmatprep.subr.mxu0 0.0
        %492 = vmatpush2.msra.mxu0 0.0
        %493 = vmatprep.subr.mxu0 0.0
        %494 = vmatpush2.msra.mxu0 0.0
        %495 = vmatprep.subr.mxu0 0.0
        %496 = vmatpush2.msra.mxu0 0.0
        %497 = vmatprep.subr.mxu0 0.0
        %498 = vmatpush2.msra.mxu0 0.0
        %499 = vmatprep.subr.mxu0 0.0
        %500 = vmatpush2.msra.mxu0 0.0
        %501 = vmatprep.subr.mxu0 0.0
        %502 = vmatpush2.msra.mxu0 0.0
        %503 = vmatprep.subr.mxu0 0.0
        %504 = vmatpush2.msra.mxu0 0.0
        %505 = vmatprep.subr.mxu0 0.0
        %506 = vmatpush2.msra.mxu0 0.0
        %507 = vmatprep.subr.mxu0 0.0
        %508 = vmatpush2.msra.mxu0 0.0
        %509 = vmatprep.subr.mxu0 0.0
        %510 = vmatpush2.msra.mxu0 0.0
        %511 = vmatprep.mubr.f32.mxu0 0.0
        %512 = vmatmul.mubr.f32.gmra.mxu0 %v438
        %v513 = vpop.f32.mrf.mxu0
        %v514 = vadd.f32 0.0, %v513
        %v515 = vpop.f32.mrf.mxu0
        %516 = vmatprep.mubr.f32.mxu0 0.0
        %517 = vmatmul.mubr.f32.gmra.mxu0 %v441
        %v518 = vpop.f32.mrf.mxu0
        %v519 = vadd.f32 0.0, %v518
        %v520 = vpop.f32.mrf.mxu0
        %521 = vdwg.mxu0
        %v522 = vlaneseq
        %v523 = vshrl.u32 %v522, 7
        %v524 = vadd.s32 %v523, 8
        %v525 = vsub.s32 %v523, 1
        %v526 = vsub.s32 %v524, 1
        %vm527 = vcmp.eq.s32.totalorder %v416, %v525
        %vm528 = vcmp.eq.s32.totalorder %v416, %v526
        %v529 = vsel %vm527, 1, 0
        %v530 = vsel %vm528, 1, 0
        %v531 = vcvt.s32.f32 %v529
        %v532 = vcvt.s32.f32 %v530
        %v533 = vadd.s32 %v523, 1
        %v534 = vadd.s32 %v524, 1
        %vm535 = vcmp.eq.s32.totalorder %v416, %v533
        %vm536 = vcmp.eq.s32.totalorder %v416, %v534
        %v537 = vsel %vm535, 1, 0
        %v538 = vsel %vm536, 1, 0
        %v539 = vcvt.s32.f32 %v537
        %v540 = vcvt.s32.f32 %v538
        %v541 = vld [vmem:[%s2] sm:$0xff]
        %v542 = vld [vmem:[%s2 + $0x8] sm:$0xff]
        %v543 = vld [vmem:[%s2 + $0x10] sm:$0xff]
        %v544 = vld [vmem:[%s2 + $0x18] sm:$0xff]
        %v545 = vld [vmem:[%s2 + $0x20] sm:$0xff]
        %v546 = vld [vmem:[%s2 + $0x28] sm:$0xff]
        %v547 = vld [vmem:[%s3] sm:$0x1]
        %vm548 = vcmask 130048
        %v550 = vsel %vm548, %v531, 0
        %v553 = vsel %vm548, %v532, 0
        %555 = vmatprep.subr.mxu0 0.0
        %556 = vmatpush1.msra.mxu0 0.0
        %557 = vmatprep.subr.mxu0 0.0
        %558 = vmatpush1.msra.mxu0 0.0
        %559 = vmatprep.subr.mxu0 0.0
        %560 = vmatpush1.msra.mxu0 0.0
        %561 = vmatprep.subr.mxu0 0.0
        %562 = vmatpush1.msra.mxu0 0.0
        %563 = vmatprep.subr.mxu0 0.0
        %564 = vmatpush1.msra.mxu0 0.0
        %565 = vmatprep.subr.mxu0 0.0
        %566 = vmatpush1.msra.mxu0 0.0
        %567 = vmatprep.subr.mxu0 0.0
        %568 = vmatpush1.msra.mxu0 0.0
        %569 = vmatprep.subr.mxu0 0.0
        %570 = vmatpush1.msra.mxu0 0.0
        %571 = vmatprep.subr.mxu0 0.0
        %572 = vmatpush1.msra.mxu0 0.0
        %573 = vmatprep.subr.mxu0 0.0
        %574 = vmatpush1.msra.mxu0 0.0
        %575 = vmatprep.subr.mxu0 0.0
        %576 = vmatpush1.msra.mxu0 0.0
        %577 = vmatprep.subr.mxu0 0.0
        %578 = vmatpush1.msra.mxu0 0.0
        %579 = vmatprep.subr.mxu0 0.0
        %580 = vmatpush1.msra.mxu0 0.0
        %581 = vmatprep.subr.mxu0 0.0
        %582 = vmatpush1.msra.mxu0 0.0
        %583 = vmatprep.subr.mxu0 0.0
        %584 = vmatpush1.msra.mxu0 %v519
        %585 = vmatprep.subr.mxu0 0.0
        %586 = vmatpush1.msra.mxu0 %v514
        %587 = vmatprep.subr.mxu0 0.0
        %588 = vmatpush2.msra.mxu0 0.0
        %589 = vmatprep.subr.mxu0 0.0
        %590 = vmatpush2.msra.mxu0 0.0
        %591 = vmatprep.subr.mxu0 0.0
        %592 = vmatpush2.msra.mxu0 0.0
        %593 = vmatprep.subr.mxu0 0.0
        %594 = vmatpush2.msra.mxu0 0.0
        %595 = vmatprep.subr.mxu0 0.0
        %596 = vmatpush2.msra.mxu0 0.0
        %597 = vmatprep.subr.mxu0 0.0
        %598 = vmatpush2.msra.mxu0 0.0
        %599 = vmatprep.subr.mxu0 0.0
        %600 = vmatpush2.msra.mxu0 0.0
        %601 = vmatprep.subr.mxu0 0.0
        %602 = vmatpush2.msra.mxu0 0.0
        %603 = vmatprep.subr.mxu0 0.0
        %604 = vmatpush2.msra.mxu0 0.0
        %605 = vmatprep.subr.mxu0 0.0
        %606 = vmatpush2.msra.mxu0 0.0
        %607 = vmatprep.subr.mxu0 0.0
        %608 = vmatpush2.msra.mxu0 0.0
        %609 = vmatprep.subr.mxu0 0.0
        %610 = vmatpush2.msra.mxu0 0.0
        %611 = vmatprep.subr.mxu0 0.0
        %612 = vmatpush2.msra.mxu0 0.0
        %613 = vmatprep.subr.mxu0 0.0
        %614 = vmatpush2.msra.mxu0 0.0
        %615 = vmatprep.subr.mxu0 0.0
        %616 = vmatpush2.msra.mxu0 0.0
        %617 = vmatprep.subr.mxu0 0.0
        %618 = vmatpush2.msra.mxu0 0.0
        %619 = vmatprep.mubr.f32.mxu0 0.0
        %620 = vmatmul.mubr.f32.gmra.mxu0 %v550
        %v621 = vpop.f32.mrf.mxu0
        %v622 = vadd.f32 0.0, %v621
        %v623 = vpop.f32.mrf.mxu0
        %624 = vmatprep.mubr.f32.mxu0 0.0
        %625 = vmatmul.mubr.f32.gmra.mxu0 %v553
        %v626 = vpop.f32.mrf.mxu0
        %v627 = vadd.f32 0.0, %v626
        %v628 = vpop.f32.mrf.mxu0
        %629 = vdwg.mxu0
        %v631 = vsel %vm548, %v539, 0
        %v634 = vsel %vm548, %v540, 0
        %636 = vmatprep.subr.mxu0 0.0
        %637 = vmatpush1.msra.mxu0 0.0
        %638 = vmatprep.subr.mxu0 0.0
        %639 = vmatpush1.msra.mxu0 0.0
        %640 = vmatprep.subr.mxu0 0.0
        %641 = vmatpush1.msra.mxu0 0.0
        %642 = vmatprep.subr.mxu0 0.0
        %643 = vmatpush1.msra.mxu0 0.0
        %644 = vmatprep.subr.mxu0 0.0
        %645 = vmatpush1.msra.mxu0 0.0
        %646 = vmatprep.subr.mxu0 0.0
        %647 = vmatpush1.msra.mxu0 0.0
        %648 = vmatprep.subr.mxu0 0.0
        %649 = vmatpush1.msra.mxu0 0.0
        %650 = vmatprep.subr.mxu0 0.0
        %651 = vmatpush1.msra.mxu0 0.0
        %652 = vmatprep.subr.mxu0 0.0
        %653 = vmatpush1.msra.mxu0 0.0
        %654 = vmatprep.subr.mxu0 0.0
        %655 = vmatpush1.msra.mxu0 0.0
        %656 = vmatprep.subr.mxu0 0.0
        %657 = vmatpush1.msra.mxu0 0.0
        %658 = vmatprep.subr.mxu0 0.0
        %659 = vmatpush1.msra.mxu0 0.0
        %660 = vmatprep.subr.mxu0 0.0
        %661 = vmatpush1.msra.mxu0 0.0
        %662 = vmatprep.subr.mxu0 0.0
        %663 = vmatpush1.msra.mxu0 0.0
        %664 = vmatprep.subr.mxu0 0.0
        %665 = vmatpush1.msra.mxu0 %v519
        %666 = vmatprep.subr.mxu0 0.0
        %667 = vmatpush1.msra.mxu0 %v514
        %668 = vmatprep.subr.mxu0 0.0
        %669 = vmatpush2.msra.mxu0 0.0
        %670 = vmatprep.subr.mxu0 0.0
        %671 = vmatpush2.msra.mxu0 0.0
        %672 = vmatprep.subr.mxu0 0.0
        %673 = vmatpush2.msra.mxu0 0.0
        %674 = vmatprep.subr.mxu0 0.0
        %675 = vmatpush2.msra.mxu0 0.0
        %676 = vmatprep.subr.mxu0 0.0
        %677 = vmatpush2.msra.mxu0 0.0
        %678 = vmatprep.subr.mxu0 0.0
        %679 = vmatpush2.msra.mxu0 0.0
        %680 = vmatprep.subr.mxu0 0.0
        %681 = vmatpush2.msra.mxu0 0.0
        %682 = vmatprep.subr.mxu0 0.0
        %683 = vmatpush2.msra.mxu0 0.0
        %684 = vmatprep.subr.mxu0 0.0
        %685 = vmatpush2.msra.mxu0 0.0
        %686 = vmatprep.subr.mxu0 0.0
        %687 = vmatpush2.msra.mxu0 0.0
        %688 = vmatprep.subr.mxu0 0.0
        %689 = vmatpush2.msra.mxu0 0.0
        %690 = vmatprep.subr.mxu0 0.0
        %691 = vmatpush2.msra.mxu0 0.0
        %692 = vmatprep.subr.mxu0 0.0
        %693 = vmatpush2.msra.mxu0 0.0
        %694 = vmatprep.subr.mxu0 0.0
        %695 = vmatpush2.msra.mxu0 0.0
        %696 = vmatprep.subr.mxu0 0.0
        %697 = vmatpush2.msra.mxu0 0.0
        %698 = vmatprep.subr.mxu0 0.0
        %699 = vmatpush2.msra.mxu0 0.0
        %700 = vmatprep.mubr.f32.mxu0 0.0
        %701 = vmatmul.mubr.f32.gmra.mxu0 %v631
        %v702 = vpop.f32.mrf.mxu0
        %v703 = vadd.f32 0.0, %v702
        %v704 = vpop.f32.mrf.mxu0
        %705 = vmatprep.mubr.f32.mxu0 0.0
        %706 = vmatmul.mubr.f32.gmra.mxu0 %v634
        %v707 = vpop.f32.mrf.mxu0
        %v708 = vadd.f32 0.0, %v707
        %v709 = vpop.f32.mrf.mxu0
        %710 = vdwg.mxu0
        %713 = vrot.lane.b32.xlu0 %v514, 16
        %v714 = vpop.permute.xlu0 %713
        %715 = vrot.lane.b32.xlu0 %v519, 16
        %v716 = vpop.permute.xlu0 %715
        %721 = vrot.lane.b32.xlu0 %v703, 32
        %v722 = vpop.permute.xlu0 %721
        %723 = vrot.lane.b32.xlu0 %v708, 32
        %v724 = vpop.permute.xlu0 %723
        %v727 = vsel %vm548, %v622, %v714
        %v728 = vsel %vm548, %v627, %v716
        %vm729 = vcmask 261120
        %v730 = vsel %vm729, %v727, %v722
        %v731 = vsel %vm729, %v728, %v724
        %v733 = vlaneseq
        %v734 = vshrl.u32 %v733, 7
        %v735 = vsub.s32 0, %v734
        %v736 = vrot.slane %v547, %v735
        %vm738 = vcmask 392192
        %v740 = vsel %vm738, %v730, 0
        %v743 = vsel %vm738, %v731, 0
        %745 = vmatprep.subr.mxu0 0.0
        %746 = vmatpush1.msra.mxu0 0.0
        %747 = vmatprep.subr.mxu0 0.0
        %748 = vmatpush1.msra.mxu0 0.0
        %749 = vmatprep.subr.mxu0 0.0
        %750 = vmatpush1.msra.mxu0 0.0
        %751 = vmatprep.subr.mxu0 0.0
        %752 = vmatpush1.msra.mxu0 0.0
        %753 = vmatprep.subr.mxu0 0.0
        %754 = vmatpush1.msra.mxu0 0.0
        %755 = vmatprep.subr.mxu0 0.0
        %756 = vmatpush1.msra.mxu0 0.0
        %757 = vmatprep.subr.mxu0 0.0
        %758 = vmatpush1.msra.mxu0 0.0
        %759 = vmatprep.subr.mxu0 0.0
        %760 = vmatpush1.msra.mxu0 0.0
        %761 = vmatprep.subr.mxu0 0.0
        %762 = vmatpush1.msra.mxu0 0.0
        %763 = vmatprep.subr.mxu0 0.0
        %764 = vmatpush1.msra.mxu0 0.0
        %765 = vmatprep.subr.mxu0 0.0
        %766 = vmatpush1.msra.mxu0 %v546
        %767 = vmatprep.subr.mxu0 0.0
        %768 = vmatpush1.msra.mxu0 %v545
        %769 = vmatprep.subr.mxu0 0.0
        %770 = vmatpush1.msra.mxu0 %v544
        %771 = vmatprep.subr.mxu0 0.0
        %772 = vmatpush1.msra.mxu0 %v543
        %773 = vmatprep.subr.mxu0 0.0
        %774 = vmatpush1.msra.mxu0 %v542
        %775 = vmatprep.subr.mxu0 0.0
        %776 = vmatpush1.msra.mxu0 %v541
        %777 = vmatprep.subr.mxu0 0.0
        %778 = vmatpush2.msra.mxu0 0.0
        %779 = vmatprep.subr.mxu0 0.0
        %780 = vmatpush2.msra.mxu0 0.0
        %781 = vmatprep.subr.mxu0 0.0
        %782 = vmatpush2.msra.mxu0 0.0
        %783 = vmatprep.subr.mxu0 0.0
        %784 = vmatpush2.msra.mxu0 0.0
        %785 = vmatprep.subr.mxu0 0.0
        %786 = vmatpush2.msra.mxu0 0.0
        %787 = vmatprep.subr.mxu0 0.0
        %788 = vmatpush2.msra.mxu0 0.0
        %789 = vmatprep.subr.mxu0 0.0
        %790 = vmatpush2.msra.mxu0 0.0
        %791 = vmatprep.subr.mxu0 0.0
        %792 = vmatpush2.msra.mxu0 0.0
        %793 = vmatprep.subr.mxu0 0.0
        %794 = vmatpush2.msra.mxu0 0.0
        %795 = vmatprep.subr.mxu0 0.0
        %796 = vmatpush2.msra.mxu0 0.0
        %797 = vmatprep.subr.mxu0 0.0
        %798 = vmatpush2.msra.mxu0 0.0
        %799 = vmatprep.subr.mxu0 0.0
        %800 = vmatpush2.msra.mxu0 0.0
        %801 = vmatprep.subr.mxu0 0.0
        %802 = vmatpush2.msra.mxu0 0.0
        %803 = vmatprep.subr.mxu0 0.0
        %804 = vmatpush2.msra.mxu0 0.0
        %805 = vmatprep.subr.mxu0 0.0
        %806 = vmatpush2.msra.mxu0 0.0
        %807 = vmatprep.subr.mxu0 0.0
        %808 = vmatpush2.msra.mxu0 0.0
        %809 = vmatprep.mubr.f32.mxu0 0.0
        %810 = vmatmul.mubr.f32.gmra.mxu0 %v740
        %v811 = vpop.f32.mrf.mxu0
        %v812 = vadd.f32 %v736, %v811
        %v813 = vpop.f32.mrf.mxu0
        %814 = vmatprep.mubr.f32.mxu0 0.0
        %815 = vmatmul.mubr.f32.gmra.mxu0 %v743
        %v816 = vpop.f32.mrf.mxu0
        %v817 = vadd.f32 %v736, %v816
        %v818 = vpop.f32.mrf.mxu0
        %819 = vdwg.mxu0
        %v820 = vmax.f32 %v812, 0.0
        %v821 = vmax.f32 %v817, 0.0
        %v822 = vld [vmem:[%s4] sm:$0x1]
        %v824 = vlaneseq
        %v825 = vshrl.u32 %v824, 7
        %v826 = vsub.s32 0, %v825
        %v827 = vrot.slane %v822, %v826
        %v829 = vmul.f32 %v820, %v827
        %v830 = vmul.f32 %v821, %v827
        %v831 = vld [vmem:[%s5] sm:$0x1]
        %v833 = vlaneseq
        %v834 = vshrl.u32 %v833, 7
        %v835 = vsub.s32 0, %v834
        %v836 = vrot.slane %v831, %v835
        %v838 = vadd.f32 %v829, %v836
        %v839 = vadd.f32 %v830, %v836
        %v840 = vmax.f32 %v838, 0.0
        %v841 = vmax.f32 %v839, 0.0
        %v842 = vld [vmem:[%s6] sm:$0xff]
        %v843 = vld [vmem:[%s6 + $0x8] sm:$0xff]
        %v844 = vld [vmem:[%s6 + $0x10] sm:$0xff]
        %v845 = vld [vmem:[%s7] sm:$0x1]
        %846 = vmatprep.subr.mxu0 0.0
        %847 = vmatpush1.msra.mxu0 0.0
        %848 = vmatprep.subr.mxu0 0.0
        %849 = vmatpush1.msra.mxu0 0.0
        %850 = vmatprep.subr.mxu0 0.0
        %851 = vmatpush1.msra.mxu0 0.0
        %852 = vmatprep.subr.mxu0 0.0
        %853 = vmatpush1.msra.mxu0 0.0
        %854 = vmatprep.subr.mxu0 0.0
        %855 = vmatpush1.msra.mxu0 0.0
        %856 = vmatprep.subr.mxu0 0.0
        %857 = vmatpush1.msra.mxu0 0.0
        %858 = vmatprep.subr.mxu0 0.0
        %859 = vmatpush1.msra.mxu0 0.0
        %860 = vmatprep.subr.mxu0 0.0
        %861 = vmatpush1.msra.mxu0 0.0
        %862 = vmatprep.subr.mxu0 0.0
        %863 = vmatpush1.msra.mxu0 0.0
        %864 = vmatprep.subr.mxu0 0.0
        %865 = vmatpush1.msra.mxu0 0.0
        %866 = vmatprep.subr.mxu0 0.0
        %867 = vmatpush1.msra.mxu0 0.0
        %868 = vmatprep.subr.mxu0 0.0
        %869 = vmatpush1.msra.mxu0 0.0
        %870 = vmatprep.subr.mxu0 0.0
        %871 = vmatpush1.msra.mxu0 0.0
        %872 = vmatprep.subr.mxu0 0.0
        %873 = vmatpush1.msra.mxu0 0.0
        %874 = vmatprep.subr.mxu0 0.0
        %875 = vmatpush1.msra.mxu0 %v841
        %876 = vmatprep.subr.mxu0 0.0
        %877 = vmatpush1.msra.mxu0 %v840
        %878 = vmatprep.subr.mxu0 0.0
        %879 = vmatpush2.msra.mxu0 0.0
        %880 = vmatprep.subr.mxu0 0.0
        %881 = vmatpush2.msra.mxu0 0.0
        %882 = vmatprep.subr.mxu0 0.0
        %883 = vmatpush2.msra.mxu0 0.0
        %884 = vmatprep.subr.mxu0 0.0
        %885 = vmatpush2.msra.mxu0 0.0
        %886 = vmatprep.subr.mxu0 0.0
        %887 = vmatpush2.msra.mxu0 0.0
        %888 = vmatprep.subr.mxu0 0.0
        %889 = vmatpush2.msra.mxu0 0.0
        %890 = vmatprep.subr.mxu0 0.0
        %891 = vmatpush2.msra.mxu0 0.0
        %892 = vmatprep.subr.mxu0 0.0
        %893 = vmatpush2.msra.mxu0 0.0
        %894 = vmatprep.subr.mxu0 0.0
        %895 = vmatpush2.msra.mxu0 0.0
        %896 = vmatprep.subr.mxu0 0.0
        %897 = vmatpush2.msra.mxu0 0.0
        %898 = vmatprep.subr.mxu0 0.0
        %899 = vmatpush2.msra.mxu0 0.0
        %900 = vmatprep.subr.mxu0 0.0
        %901 = vmatpush2.msra.mxu0 0.0
        %902 = vmatprep.subr.mxu0 0.0
        %903 = vmatpush2.msra.mxu0 0.0
        %904 = vmatprep.subr.mxu0 0.0
        %905 = vmatpush2.msra.mxu0 0.0
        %906 = vmatprep.subr.mxu0 0.0
        %907 = vmatpush2.msra.mxu0 0.0
        %908 = vmatprep.subr.mxu0 0.0
        %909 = vmatpush2.msra.mxu0 0.0
        %910 = vmatprep.mubr.f32.mxu0 0.0
        %911 = vmatmul.mubr.f32.gmra.mxu0 %v550
        %v912 = vpop.f32.mrf.mxu0
        %v913 = vadd.f32 0.0, %v912
        %v914 = vpop.f32.mrf.mxu0
        %915 = vmatprep.mubr.f32.mxu0 0.0
        %916 = vmatmul.mubr.f32.gmra.mxu0 %v553
        %v917 = vpop.f32.mrf.mxu0
        %v918 = vadd.f32 0.0, %v917
        %v919 = vpop.f32.mrf.mxu0
        %920 = vdwg.mxu0
        %921 = vmatprep.subr.mxu0 0.0
        %922 = vmatpush1.msra.mxu0 0.0
        %923 = vmatprep.subr.mxu0 0.0
        %924 = vmatpush1.msra.mxu0 0.0
        %925 = vmatprep.subr.mxu0 0.0
        %926 = vmatpush1.msra.mxu0 0.0
        %927 = vmatprep.subr.mxu0 0.0
        %928 = vmatpush1.msra.mxu0 0.0
        %929 = vmatprep.subr.mxu0 0.0
        %930 = vmatpush1.msra.mxu0 0.0
        %931 = vmatprep.subr.mxu0 0.0
        %932 = vmatpush1.msra.mxu0 0.0
        %933 = vmatprep.subr.mxu0 0.0
        %934 = vmatpush1.msra.mxu0 0.0
        %935 = vmatprep.subr.mxu0 0.0
        %936 = vmatpush1.msra.mxu0 0.0
        %937 = vmatprep.subr.mxu0 0.0
        %938 = vmatpush1.msra.mxu0 0.0
        %939 = vmatprep.subr.mxu0 0.0
        %940 = vmatpush1.msra.mxu0 0.0
        %941 = vmatprep.subr.mxu0 0.0
        %942 = vmatpush1.msra.mxu0 0.0
        %943 = vmatprep.subr.mxu0 0.0
        %944 = vmatpush1.msra.mxu0 0.0
        %945 = vmatprep.subr.mxu0 0.0
        %946 = vmatpush1.msra.mxu0 0.0
        %947 = vmatprep.subr.mxu0 0.0
        %948 = vmatpush1.msra.mxu0 0.0
        %949 = vmatprep.subr.mxu0 0.0
        %950 = vmatpush1.msra.mxu0 %v841
        %951 = vmatprep.subr.mxu0 0.0
        %952 = vmatpush1.msra.mxu0 %v840
        %953 = vmatprep.subr.mxu0 0.0
        %954 = vmatpush2.msra.mxu0 0.0
        %955 = vmatprep.subr.mxu0 0.0
        %956 = vmatpush2.msra.mxu0 0.0
        %957 = vmatprep.subr.mxu0 0.0
        %958 = vmatpush2.msra.mxu0 0.0
        %959 = vmatprep.subr.mxu0 0.0
        %960 = vmatpush2.msra.mxu0 0.0
        %961 = vmatprep.subr.mxu0 0.0
        %962 = vmatpush2.msra.mxu0 0.0
        %963 = vmatprep.subr.mxu0 0.0
        %964 = vmatpush2.msra.mxu0 0.0
        %965 = vmatprep.subr.mxu0 0.0
        %966 = vmatpush2.msra.mxu0 0.0
        %967 = vmatprep.subr.mxu0 0.0
        %968 = vmatpush2.msra.mxu0 0.0
        %969 = vmatprep.subr.mxu0 0.0
        %970 = vmatpush2.msra.mxu0 0.0
        %971 = vmatprep.subr.mxu0 0.0
        %972 = vmatpush2.msra.mxu0 0.0
        %973 = vmatprep.subr.mxu0 0.0
        %974 = vmatpush2.msra.mxu0 0.0
        %975 = vmatprep.subr.mxu0 0.0
        %976 = vmatpush2.msra.mxu0 0.0
        %977 = vmatprep.subr.mxu0 0.0
        %978 = vmatpush2.msra.mxu0 0.0
        %979 = vmatprep.subr.mxu0 0.0
        %980 = vmatpush2.msra.mxu0 0.0
        %981 = vmatprep.subr.mxu0 0.0
        %982 = vmatpush2.msra.mxu0 0.0
        %983 = vmatprep.subr.mxu0 0.0
        %984 = vmatpush2.msra.mxu0 0.0
        %985 = vmatprep.mubr.f32.mxu0 0.0
        %986 = vmatmul.mubr.f32.gmra.mxu0 %v631
        %v987 = vpop.f32.mrf.mxu0
        %v988 = vadd.f32 0.0, %v987
        %v989 = vpop.f32.mrf.mxu0
        %990 = vmatprep.mubr.f32.mxu0 0.0
        %991 = vmatmul.mubr.f32.gmra.mxu0 %v634
        %v992 = vpop.f32.mrf.mxu0
        %v993 = vadd.f32 0.0, %v992
        %v994 = vpop.f32.mrf.mxu0
        %995 = vdwg.mxu0
        %998 = vrot.lane.b32.xlu0 %v840, 8
        %v999 = vpop.permute.xlu0 %998
        %1000 = vrot.lane.b32.xlu0 %v841, 8
        %v1001 = vpop.permute.xlu0 %1000
        %1006 = vrot.lane.b32.xlu0 %v988, 16
        %v1007 = vpop.permute.xlu0 %1006
        %1008 = vrot.lane.b32.xlu0 %v993, 16
        %v1009 = vpop.permute.xlu0 %1008
        %vm1012 = vcmask 64512
        %v1013 = vsel %vm1012, %v913, %v999
        %v1014 = vsel %vm1012, %v918, %v1001
        %v1015 = vsel %vm548, %v1013, %v1007
        %v1016 = vsel %vm548, %v1014, %v1009
        %v1018 = vlaneseq
        %v1019 = vshrl.u32 %v1018, 7
        %v1020 = vsub.s32 0, %v1019
        %v1021 = vrot.slane %v845, %v1020
        %vm1023 = vcmask 195584
        %v1025 = vsel %vm1023, %v1015, 0
        %v1028 = vsel %vm1023, %v1016, 0
        %1030 = vmatprep.subr.mxu0 0.0
        %1031 = vmatpush1.msra.mxu0 0.0
        %1032 = vmatprep.subr.mxu0 0.0
        %1033 = vmatpush1.msra.mxu0 0.0
        %1034 = vmatprep.subr.mxu0 0.0
        %1035 = vmatpush1.msra.mxu0 0.0
        %1036 = vmatprep.subr.mxu0 0.0
        %1037 = vmatpush1.msra.mxu0 0.0
        %1038 = vmatprep.subr.mxu0 0.0
        %1039 = vmatpush1.msra.mxu0 0.0
        %1040 = vmatprep.subr.mxu0 0.0
        %1041 = vmatpush1.msra.mxu0 0.0
        %1042 = vmatprep.subr.mxu0 0.0
        %1043 = vmatpush1.msra.mxu0 0.0
        %1044 = vmatprep.subr.mxu0 0.0
        %1045 = vmatpush1.msra.mxu0 0.0
        %1046 = vmatprep.subr.mxu0 0.0
        %1047 = vmatpush1.msra.mxu0 0.0
        %1048 = vmatprep.subr.mxu0 0.0
        %1049 = vmatpush1.msra.mxu0 0.0
        %1050 = vmatprep.subr.mxu0 0.0
        %1051 = vmatpush1.msra.mxu0 0.0
        %1052 = vmatprep.subr.mxu0 0.0
        %1053 = vmatpush1.msra.mxu0 0.0
        %1054 = vmatprep.subr.mxu0 0.0
        %1055 = vmatpush1.msra.mxu0 0.0
        %1056 = vmatprep.subr.mxu0 0.0
        %1057 = vmatpush1.msra.mxu0 %v844
        %1058 = vmatprep.subr.mxu0 0.0
        %1059 = vmatpush1.msra.mxu0 %v843
        %1060 = vmatprep.subr.mxu0 0.0
        %1061 = vmatpush1.msra.mxu0 %v842
        %1062 = vmatprep.subr.mxu0 0.0
        %1063 = vmatpush2.msra.mxu0 0.0
        %1064 = vmatprep.subr.mxu0 0.0
        %1065 = vmatpush2.msra.mxu0 0.0
        %1066 = vmatprep.subr.mxu0 0.0
        %1067 = vmatpush2.msra.mxu0 0.0
        %1068 = vmatprep.subr.mxu0 0.0
        %1069 = vmatpush2.msra.mxu0 0.0
        %1070 = vmatprep.subr.mxu0 0.0
        %1071 = vmatpush2.msra.mxu0 0.0
        %1072 = vmatprep.subr.mxu0 0.0
        %1073 = vmatpush2.msra.mxu0 0.0
        %1074 = vmatprep.subr.mxu0 0.0
        %1075 = vmatpush2.msra.mxu0 0.0
        %1076 = vmatprep.subr.mxu0 0.0
        %1077 = vmatpush2.msra.mxu0 0.0
        %1078 = vmatprep.subr.mxu0 0.0
        %1079 = vmatpush2.msra.mxu0 0.0
        %1080 = vmatprep.subr.mxu0 0.0
        %1081 = vmatpush2.msra.mxu0 0.0
        %1082 = vmatprep.subr.mxu0 0.0
        %1083 = vmatpush2.msra.mxu0 0.0
        %1084 = vmatprep.subr.mxu0 0.0
        %1085 = vmatpush2.msra.mxu0 0.0
        %1086 = vmatprep.subr.mxu0 0.0
        %1087 = vmatpush2.msra.mxu0 0.0
        %1088 = vmatprep.subr.mxu0 0.0
        %1089 = vmatpush2.msra.mxu0 0.0
        %1090 = vmatprep.subr.mxu0 0.0
        %1091 = vmatpush2.msra.mxu0 0.0
        %1092 = vmatprep.subr.mxu0 0.0
        %1093 = vmatpush2.msra.mxu0 0.0
        %1094 = vmatprep.mubr.f32.mxu0 0.0
        %1095 = vmatmul.mubr.f32.gmra.mxu0 %v1025
        %v1096 = vpop.f32.mrf.mxu0
        %v1097 = vadd.f32 %v1021, %v1096
        %v1098 = vpop.f32.mrf.mxu0
        %1099 = vmatprep.mubr.f32.mxu0 0.0
        %1100 = vmatmul.mubr.f32.gmra.mxu0 %v1028
        %v1101 = vpop.f32.mrf.mxu0
        %v1102 = vadd.f32 %v1021, %v1101
        %v1103 = vpop.f32.mrf.mxu0
        %1104 = vdwg.mxu0
        %s1105 = scalar_lea.vmem %s4, 1
        %v1106 = vld [vmem:[%s1105] sm:$0x1]
        %v1108 = vlaneseq
        %v1109 = vshrl.u32 %v1108, 7
        %v1110 = vsub.s32 0, %v1109
        %v1111 = vrot.slane %v1106, %v1110
        %v1113 = vmul.f32 %v1097, %v1111
        %v1114 = vmul.f32 %v1102, %v1111
        %s1115 = scalar_lea.vmem %s5, 1
        %v1116 = vld [vmem:[%s1115] sm:$0x1]
        %v1118 = vlaneseq
        %v1119 = vshrl.u32 %v1118, 7
        %v1120 = vsub.s32 0, %v1119
        %v1121 = vrot.slane %v1116, %v1120
        %v1123 = vadd.f32 %v1113, %v1121
        %v1124 = vadd.f32 %v1114, %v1121
        %v1125 = vmax.f32 %v1123, 0.0
        %v1126 = vmax.f32 %v1124, 0.0
        %s1127 = scalar_lea.vmem %s6, 24
        %v1128 = vld [vmem:[%s1127] sm:$0xff]
        %v1129 = vld [vmem:[%s1127 + $0x8] sm:$0xff]
        %v1130 = vld [vmem:[%s1127 + $0x10] sm:$0xff]
        %s1131 = scalar_lea.vmem %s7, 1
        %v1132 = vld [vmem:[%s1131] sm:$0x1]
        %1133 = vmatprep.subr.mxu0 0.0
        %1134 = vmatpush1.msra.mxu0 0.0
        %1135 = vmatprep.subr.mxu0 0.0
        %1136 = vmatpush1.msra.mxu0 0.0
        %1137 = vmatprep.subr.mxu0 0.0
        %1138 = vmatpush1.msra.mxu0 0.0
        %1139 = vmatprep.subr.mxu0 0.0
        %1140 = vmatpush1.msra.mxu0 0.0
        %1141 = vmatprep.subr.mxu0 0.0
        %1142 = vmatpush1.msra.mxu0 0.0
        %1143 = vmatprep.subr.mxu0 0.0
        %1144 = vmatpush1.msra.mxu0 0.0
        %1145 = vmatprep.subr.mxu0 0.0
        %1146 = vmatpush1.msra.mxu0 0.0
        %1147 = vmatprep.subr.mxu0 0.0
        %1148 = vmatpush1.msra.mxu0 0.0
        %1149 = vmatprep.subr.mxu0 0.0
        %1150 = vmatpush1.msra.mxu0 0.0
        %1151 = vmatprep.subr.mxu0 0.0
        %1152 = vmatpush1.msra.mxu0 0.0
        %1153 = vmatprep.subr.mxu0 0.0
        %1154 = vmatpush1.msra.mxu0 0.0
        %1155 = vmatprep.subr.mxu0 0.0
        %1156 = vmatpush1.msra.mxu0 0.0
        %1157 = vmatprep.subr.mxu0 0.0
        %1158 = vmatpush1.msra.mxu0 0.0
        %1159 = vmatprep.subr.mxu0 0.0
        %1160 = vmatpush1.msra.mxu0 0.0
        %1161 = vmatprep.subr.mxu0 0.0
        %1162 = vmatpush1.msra.mxu0 %v1126
        %1163 = vmatprep.subr.mxu0 0.0
        %1164 = vmatpush1.msra.mxu0 %v1125
        %1165 = vmatprep.subr.mxu0 0.0
        %1166 = vmatpush2.msra.mxu0 0.0
        %1167 = vmatprep.subr.mxu0 0.0
        %1168 = vmatpush2.msra.mxu0 0.0
        %1169 = vmatprep.subr.mxu0 0.0
        %1170 = vmatpush2.msra.mxu0 0.0
        %1171 = vmatprep.subr.mxu0 0.0
        %1172 = vmatpush2.msra.mxu0 0.0
        %1173 = vmatprep.subr.mxu0 0.0
        %1174 = vmatpush2.msra.mxu0 0.0
        %1175 = vmatprep.subr.mxu0 0.0
        %1176 = vmatpush2.msra.mxu0 0.0
        %1177 = vmatprep.subr.mxu0 0.0
        %1178 = vmatpush2.msra.mxu0 0.0
        %1179 = vmatprep.subr.mxu0 0.0
        %1180 = vmatpush2.msra.mxu0 0.0
        %1181 = vmatprep.subr.mxu0 0.0
        %1182 = vmatpush2.msra.mxu0 0.0
        %1183 = vmatprep.subr.mxu0 0.0
        %1184 = vmatpush2.msra.mxu0 0.0
        %1185 = vmatprep.subr.mxu0 0.0
        %1186 = vmatpush2.msra.mxu0 0.0
        %1187 = vmatprep.subr.mxu0 0.0
        %1188 = vmatpush2.msra.mxu0 0.0
        %1189 = vmatprep.subr.mxu0 0.0
        %1190 = vmatpush2.msra.mxu0 0.0
        %1191 = vmatprep.subr.mxu0 0.0
        %1192 = vmatpush2.msra.mxu0 0.0
        %1193 = vmatprep.subr.mxu0 0.0
        %1194 = vmatpush2.msra.mxu0 0.0
        %1195 = vmatprep.subr.mxu0 0.0
        %1196 = vmatpush2.msra.mxu0 0.0
        %1197 = vmatprep.mubr.f32.mxu0 0.0
        %1198 = vmatmul.mubr.f32.gmra.mxu0 %v550
        %v1199 = vpop.f32.mrf.mxu0
        %v1200 = vadd.f32 0.0, %v1199
        %v1201 = vpop.f32.mrf.mxu0
        %1202 = vmatprep.mubr.f32.mxu0 0.0
        %1203 = vmatmul.mubr.f32.gmra.mxu0 %v553
        %v1204 = vpop.f32.mrf.mxu0
        %v1205 = vadd.f32 0.0, %v1204
        %v1206 = vpop.f32.mrf.mxu0
        %1207 = vdwg.mxu0
        %1208 = vmatprep.subr.mxu0 0.0
        %1209 = vmatpush1.msra.mxu0 0.0
        %1210 = vmatprep.subr.mxu0 0.0
        %1211 = vmatpush1.msra.mxu0 0.0
        %1212 = vmatprep.subr.mxu0 0.0
        %1213 = vmatpush1.msra.mxu0 0.0
        %1214 = vmatprep.subr.mxu0 0.0
        %1215 = vmatpush1.msra.mxu0 0.0
        %1216 = vmatprep.subr.mxu0 0.0
        %1217 = vmatpush1.msra.mxu0 0.0
        %1218 = vmatprep.subr.mxu0 0.0
        %1219 = vmatpush1.msra.mxu0 0.0
        %1220 = vmatprep.subr.mxu0 0.0
        %1221 = vmatpush1.msra.mxu0 0.0
        %1222 = vmatprep.subr.mxu0 0.0
        %1223 = vmatpush1.msra.mxu0 0.0
        %1224 = vmatprep.subr.mxu0 0.0
        %1225 = vmatpush1.msra.mxu0 0.0
        %1226 = vmatprep.subr.mxu0 0.0
        %1227 = vmatpush1.msra.mxu0 0.0
        %1228 = vmatprep.subr.mxu0 0.0
        %1229 = vmatpush1.msra.mxu0 0.0
        %1230 = vmatprep.subr.mxu0 0.0
        %1231 = vmatpush1.msra.mxu0 0.0
        %1232 = vmatprep.subr.mxu0 0.0
        %1233 = vmatpush1.msra.mxu0 0.0
        %1234 = vmatprep.subr.mxu0 0.0
        %1235 = vmatpush1.msra.mxu0 0.0
        %1236 = vmatprep.subr.mxu0 0.0
        %1237 = vmatpush1.msra.mxu0 %v1126
        %1238 = vmatprep.subr.mxu0 0.0
        %1239 = vmatpush1.msra.mxu0 %v1125
        %1240 = vmatprep.subr.mxu0 0.0
        %1241 = vmatpush2.msra.mxu0 0.0
        %1242 = vmatprep.subr.mxu0 0.0
        %1243 = vmatpush2.msra.mxu0 0.0
        %1244 = vmatprep.subr.mxu0 0.0
        %1245 = vmatpush2.msra.mxu0 0.0
        %1246 = vmatprep.subr.mxu0 0.0
        %1247 = vmatpush2.msra.mxu0 0.0
        %1248 = vmatprep.subr.mxu0 0.0
        %1249 = vmatpush2.msra.mxu0 0.0
        %1250 = vmatprep.subr.mxu0 0.0
        %1251 = vmatpush2.msra.mxu0 0.0
        %1252 = vmatprep.subr.mxu0 0.0
        %1253 = vmatpush2.msra.mxu0 0.0
        %1254 = vmatprep.subr.mxu0 0.0
        %1255 = vmatpush2.msra.mxu0 0.0
        %1256 = vmatprep.subr.mxu0 0.0
        %1257 = vmatpush2.msra.mxu0 0.0
        %1258 = vmatprep.subr.mxu0 0.0
        %1259 = vmatpush2.msra.mxu0 0.0
        %1260 = vmatprep.subr.mxu0 0.0
        %1261 = vmatpush2.msra.mxu0 0.0
        %1262 = vmatprep.subr.mxu0 0.0
        %1263 = vmatpush2.msra.mxu0 0.0
        %1264 = vmatprep.subr.mxu0 0.0
        %1265 = vmatpush2.msra.mxu0 0.0
        %1266 = vmatprep.subr.mxu0 0.0
        %1267 = vmatpush2.msra.mxu0 0.0
        %1268 = vmatprep.subr.mxu0 0.0
        %1269 = vmatpush2.msra.mxu0 0.0
        %1270 = vmatprep.subr.mxu0 0.0
        %1271 = vmatpush2.msra.mxu0 0.0
        %1272 = vmatprep.mubr.f32.mxu0 0.0
        %1273 = vmatmul.mubr.f32.gmra.mxu0 %v631
        %v1274 = vpop.f32.mrf.mxu0
        %v1275 = vadd.f32 0.0, %v1274
        %v1276 = vpop.f32.mrf.mxu0
        %1277 = vmatprep.mubr.f32.mxu0 0.0
        %1278 = vmatmul.mubr.f32.gmra.mxu0 %v634
        %v1279 = vpop.f32.mrf.mxu0
        %v1280 = vadd.f32 0.0, %v1279
        %v1281 = vpop.f32.mrf.mxu0
        %1282 = vdwg.mxu0
        %1285 = vrot.lane.b32.xlu0 %v1125, 8
        %v1286 = vpop.permute.xlu0 %1285
        %1287 = vrot.lane.b32.xlu0 %v1126, 8
        %v1288 = vpop.permute.xlu0 %1287
        %1293 = vrot.lane.b32.xlu0 %v1275, 16
        %v1294 = vpop.permute.xlu0 %1293
        %1295 = vrot.lane.b32.xlu0 %v1280, 16
        %v1296 = vpop.permute.xlu0 %1295
        %v1299 = vsel %vm1012, %v1200, %v1286
        %v1300 = vsel %vm1012, %v1205, %v1288
        %v1301 = vsel %vm548, %v1299, %v1294
        %v1302 = vsel %vm548, %v1300, %v1296
        %v1304 = vlaneseq
        %v1305 = vshrl.u32 %v1304, 7
        %v1306 = vsub.s32 0, %v1305
        %v1307 = vrot.slane %v1132, %v1306
        %v1310 = vsel %vm1023, %v1301, 0
        %v1313 = vsel %vm1023, %v1302, 0
        %1315 = vmatprep.subr.mxu0 0.0
        %1316 = vmatpush1.msra.mxu0 0.0
        %1317 = vmatprep.subr.mxu0 0.0
        %1318 = vmatpush1.msra.mxu0 0.0
        %1319 = vmatprep.subr.mxu0 0.0
        %1320 = vmatpush1.msra.mxu0 0.0
        %1321 = vmatprep.subr.mxu0 0.0
        %1322 = vmatpush1.msra.mxu0 0.0
        %1323 = vmatprep.subr.mxu0 0.0
        %1324 = vmatpush1.msra.mxu0 0.0
        %1325 = vmatprep.subr.mxu0 0.0
        %1326 = vmatpush1.msra.mxu0 0.0
        %1327 = vmatprep.subr.mxu0 0.0
        %1328 = vmatpush1.msra.mxu0 0.0
        %1329 = vmatprep.subr.mxu0 0.0
        %1330 = vmatpush1.msra.mxu0 0.0
        %1331 = vmatprep.subr.mxu0 0.0
        %1332 = vmatpush1.msra.mxu0 0.0
        %1333 = vmatprep.subr.mxu0 0.0
        %1334 = vmatpush1.msra.mxu0 0.0
        %1335 = vmatprep.subr.mxu0 0.0
        %1336 = vmatpush1.msra.mxu0 0.0
        %1337 = vmatprep.subr.mxu0 0.0
        %1338 = vmatpush1.msra.mxu0 0.0
        %1339 = vmatprep.subr.mxu0 0.0
        %1340 = vmatpush1.msra.mxu0 0.0
        %1341 = vmatprep.subr.mxu0 0.0
        %1342 = vmatpush1.msra.mxu0 %v1130
        %1343 = vmatprep.subr.mxu0 0.0
        %1344 = vmatpush1.msra.mxu0 %v1129
        %1345 = vmatprep.subr.mxu0 0.0
        %1346 = vmatpush1.msra.mxu0 %v1128
        %1347 = vmatprep.subr.mxu0 0.0
        %1348 = vmatpush2.msra.mxu0 0.0
        %1349 = vmatprep.subr.mxu0 0.0
        %1350 = vmatpush2.msra.mxu0 0.0
        %1351 = vmatprep.subr.mxu0 0.0
        %1352 = vmatpush2.msra.mxu0 0.0
        %1353 = vmatprep.subr.mxu0 0.0
        %1354 = vmatpush2.msra.mxu0 0.0
        %1355 = vmatprep.subr.mxu0 0.0
        %1356 = vmatpush2.msra.mxu0 0.0
        %1357 = vmatprep.subr.mxu0 0.0
        %1358 = vmatpush2.msra.mxu0 0.0
        %1359 = vmatprep.subr.mxu0 0.0
        %1360 = vmatpush2.msra.mxu0 0.0
        %1361 = vmatprep.subr.mxu0 0.0
        %1362 = vmatpush2.msra.mxu0 0.0
        %1363 = vmatprep.subr.mxu0 0.0
        %1364 = vmatpush2.msra.mxu0 0.0
        %1365 = vmatprep.subr.mxu0 0.0
        %1366 = vmatpush2.msra.mxu0 0.0
        %1367 = vmatprep.subr.mxu0 0.0
        %1368 = vmatpush2.msra.mxu0 0.0
        %1369 = vmatprep.subr.mxu0 0.0
        %1370 = vmatpush2.msra.mxu0 0.0
        %1371 = vmatprep.subr.mxu0 0.0
        %1372 = vmatpush2.msra.mxu0 0.0
        %1373 = vmatprep.subr.mxu0 0.0
        %1374 = vmatpush2.msra.mxu0 0.0
        %1375 = vmatprep.subr.mxu0 0.0
        %1376 = vmatpush2.msra.mxu0 0.0
        %1377 = vmatprep.subr.mxu0 0.0
        %1378 = vmatpush2.msra.mxu0 0.0
        %1379 = vmatprep.mubr.f32.mxu0 0.0
        %1380 = vmatmul.mubr.f32.gmra.mxu0 %v1310
        %v1381 = vpop.f32.mrf.mxu0
        %v1382 = vadd.f32 %v1307, %v1381
        %v1383 = vpop.f32.mrf.mxu0
        %1384 = vmatprep.mubr.f32.mxu0 0.0
        %1385 = vmatmul.mubr.f32.gmra.mxu0 %v1313
        %v1386 = vpop.f32.mrf.mxu0
        %v1387 = vadd.f32 %v1307, %v1386
        %v1388 = vpop.f32.mrf.mxu0
        %1389 = vdwg.mxu0
        %v1390 = vmul.u32 %v523, 2
        %vm1391 = vcmp.eq.s32.totalorder %v416, %v1390
        %v1392 = vsel %vm1391, 1, 0
        %v1393 = vcvt.s32.f32 %v1392
        %v1394 = vadd.s32 %v1390, 1
        %vm1395 = vcmp.eq.s32.totalorder %v416, %v1394
        %v1396 = vsel %vm1395, 1, 0
        %v1397 = vcvt.s32.f32 %v1396
        %v1398 = vadd.s32 %v1390, 2
        %vm1399 = vcmp.eq.s32.totalorder %v416, %v1398
        %v1400 = vsel %vm1399, 1, 0
        %v1401 = vcvt.s32.f32 %v1400
        %v1403 = vsel %vm548, %v1393, 0
        %1405 = vmatprep.subr.mxu0 0.0
        %1406 = vmatpush1.msra.mxu0 0.0
        %1407 = vmatprep.subr.mxu0 0.0
        %1408 = vmatpush1.msra.mxu0 0.0
        %1409 = vmatprep.subr.mxu0 0.0
        %1410 = vmatpush1.msra.mxu0 0.0
        %1411 = vmatprep.subr.mxu0 0.0
        %1412 = vmatpush1.msra.mxu0 0.0
        %1413 = vmatprep.subr.mxu0 0.0
        %1414 = vmatpush1.msra.mxu0 0.0
        %1415 = vmatprep.subr.mxu0 0.0
        %1416 = vmatpush1.msra.mxu0 0.0
        %1417 = vmatprep.subr.mxu0 0.0
        %1418 = vmatpush1.msra.mxu0 0.0
        %1419 = vmatprep.subr.mxu0 0.0
        %1420 = vmatpush1.msra.mxu0 0.0
        %1421 = vmatprep.subr.mxu0 0.0
        %1422 = vmatpush1.msra.mxu0 0.0
        %1423 = vmatprep.subr.mxu0 0.0
        %1424 = vmatpush1.msra.mxu0 0.0
        %1425 = vmatprep.subr.mxu0 0.0
        %1426 = vmatpush1.msra.mxu0 0.0
        %1427 = vmatprep.subr.mxu0 0.0
        %1428 = vmatpush1.msra.mxu0 0.0
        %1429 = vmatprep.subr.mxu0 0.0
        %1430 = vmatpush1.msra.mxu0 0.0
        %1431 = vmatprep.subr.mxu0 0.0
        %1432 = vmatpush1.msra.mxu0 0.0
        %1433 = vmatprep.subr.mxu0 0.0
        %1434 = vmatpush1.msra.mxu0 %v1387
        %1435 = vmatprep.subr.mxu0 0.0
        %1436 = vmatpush1.msra.mxu0 %v1382
        %1437 = vmatprep.subr.mxu0 0.0
        %1438 = vmatpush2.msra.mxu0 0.0
        %1439 = vmatprep.subr.mxu0 0.0
        %1440 = vmatpush2.msra.mxu0 0.0
        %1441 = vmatprep.subr.mxu0 0.0
        %1442 = vmatpush2.msra.mxu0 0.0
        %1443 = vmatprep.subr.mxu0 0.0
        %1444 = vmatpush2.msra.mxu0 0.0
        %1445 = vmatprep.subr.mxu0 0.0
        %1446 = vmatpush2.msra.mxu0 0.0
        %1447 = vmatprep.subr.mxu0 0.0
        %1448 = vmatpush2.msra.mxu0 0.0
        %1449 = vmatprep.subr.mxu0 0.0
        %1450 = vmatpush2.msra.mxu0 0.0
        %1451 = vmatprep.subr.mxu0 0.0
        %1452 = vmatpush2.msra.mxu0 0.0
        %1453 = vmatprep.subr.mxu0 0.0
        %1454 = vmatpush2.msra.mxu0 0.0
        %1455 = vmatprep.subr.mxu0 0.0
        %1456 = vmatpush2.msra.mxu0 0.0
        %1457 = vmatprep.subr.mxu0 0.0
        %1458 = vmatpush2.msra.mxu0 0.0
        %1459 = vmatprep.subr.mxu0 0.0
        %1460 = vmatpush2.msra.mxu0 0.0
        %1461 = vmatprep.subr.mxu0 0.0
        %1462 = vmatpush2.msra.mxu0 0.0
        %1463 = vmatprep.subr.mxu0 0.0
        %1464 = vmatpush2.msra.mxu0 0.0
        %1465 = vmatprep.subr.mxu0 0.0
        %1466 = vmatpush2.msra.mxu0 0.0
        %1467 = vmatprep.subr.mxu0 0.0
        %1468 = vmatpush2.msra.mxu0 0.0
        %1469 = vmatprep.mubr.f32.mxu0 0.0
        %1470 = vmatmul.mubr.f32.gmra.mxu0 %v1403
        %v1471 = vpop.f32.mrf.mxu0
        %v1472 = vadd.f32 0.0, %v1471
        %v1473 = vpop.f32.mrf.mxu0
        %1474 = vdwg.mxu0
        %v1476 = vsel %vm548, %v1397, 0
        %1478 = vmatprep.subr.mxu0 0.0
        %1479 = vmatpush1.msra.mxu0 0.0
        %1480 = vmatprep.subr.mxu0 0.0
        %1481 = vmatpush1.msra.mxu0 0.0
        %1482 = vmatprep.subr.mxu0 0.0
        %1483 = vmatpush1.msra.mxu0 0.0
        %1484 = vmatprep.subr.mxu0 0.0
        %1485 = vmatpush1.msra.mxu0 0.0
        %1486 = vmatprep.subr.mxu0 0.0
        %1487 = vmatpush1.msra.mxu0 0.0
        %1488 = vmatprep.subr.mxu0 0.0
        %1489 = vmatpush1.msra.mxu0 0.0
        %1490 = vmatprep.subr.mxu0 0.0
        %1491 = vmatpush1.msra.mxu0 0.0
        %1492 = vmatprep.subr.mxu0 0.0
        %1493 = vmatpush1.msra.mxu0 0.0
        %1494 = vmatprep.subr.mxu0 0.0
        %1495 = vmatpush1.msra.mxu0 0.0
        %1496 = vmatprep.subr.mxu0 0.0
        %1497 = vmatpush1.msra.mxu0 0.0
        %1498 = vmatprep.subr.mxu0 0.0
        %1499 = vmatpush1.msra.mxu0 0.0
        %1500 = vmatprep.subr.mxu0 0.0
        %1501 = vmatpush1.msra.mxu0 0.0
        %1502 = vmatprep.subr.mxu0 0.0
        %1503 = vmatpush1.msra.mxu0 0.0
        %1504 = vmatprep.subr.mxu0 0.0
        %1505 = vmatpush1.msra.mxu0 0.0
        %1506 = vmatprep.subr.mxu0 0.0
        %1507 = vmatpush1.msra.mxu0 %v1387
        %1508 = vmatprep.subr.mxu0 0.0
        %1509 = vmatpush1.msra.mxu0 %v1382
        %1510 = vmatprep.subr.mxu0 0.0
        %1511 = vmatpush2.msra.mxu0 0.0
        %1512 = vmatprep.subr.mxu0 0.0
        %1513 = vmatpush2.msra.mxu0 0.0
        %1514 = vmatprep.subr.mxu0 0.0
        %1515 = vmatpush2.msra.mxu0 0.0
        %1516 = vmatprep.subr.mxu0 0.0
        %1517 = vmatpush2.msra.mxu0 0.0
        %1518 = vmatprep.subr.mxu0 0.0
        %1519 = vmatpush2.msra.mxu0 0.0
        %1520 = vmatprep.subr.mxu0 0.0
        %1521 = vmatpush2.msra.mxu0 0.0
        %1522 = vmatprep.subr.mxu0 0.0
        %1523 = vmatpush2.msra.mxu0 0.0
        %1524 = vmatprep.subr.mxu0 0.0
        %1525 = vmatpush2.msra.mxu0 0.0
        %1526 = vmatprep.subr.mxu0 0.0
        %1527 = vmatpush2.msra.mxu0 0.0
        %1528 = vmatprep.subr.mxu0 0.0
        %1529 = vmatpush2.msra.mxu0 0.0
        %1530 = vmatprep.subr.mxu0 0.0
        %1531 = vmatpush2.msra.mxu0 0.0
        %1532 = vmatprep.subr.mxu0 0.0
        %1533 = vmatpush2.msra.mxu0 0.0
        %1534 = vmatprep.subr.mxu0 0.0
        %1535 = vmatpush2.msra.mxu0 0.0
        %1536 = vmatprep.subr.mxu0 0.0
        %1537 = vmatpush2.msra.mxu0 0.0
        %1538 = vmatprep.subr.mxu0 0.0
        %1539 = vmatpush2.msra.mxu0 0.0
        %1540 = vmatprep.subr.mxu0 0.0
        %1541 = vmatpush2.msra.mxu0 0.0
        %1542 = vmatprep.mubr.f32.mxu0 0.0
        %1543 = vmatmul.mubr.f32.gmra.mxu0 %v1476
        %v1544 = vpop.f32.mrf.mxu0
        %v1545 = vadd.f32 0.0, %v1544
        %v1546 = vpop.f32.mrf.mxu0
        %1547 = vdwg.mxu0
        %v1549 = vsel %vm548, %v1401, 0
        %1551 = vmatprep.subr.mxu0 0.0
        %1552 = vmatpush1.msra.mxu0 0.0
        %1553 = vmatprep.subr.mxu0 0.0
        %1554 = vmatpush1.msra.mxu0 0.0
        %1555 = vmatprep.subr.mxu0 0.0
        %1556 = vmatpush1.msra.mxu0 0.0
        %1557 = vmatprep.subr.mxu0 0.0
        %1558 = vmatpush1.msra.mxu0 0.0
        %1559 = vmatprep.subr.mxu0 0.0
        %1560 = vmatpush1.msra.mxu0 0.0
        %1561 = vmatprep.subr.mxu0 0.0
        %1562 = vmatpush1.msra.mxu0 0.0
        %1563 = vmatprep.subr.mxu0 0.0
        %1564 = vmatpush1.msra.mxu0 0.0
        %1565 = vmatprep.subr.mxu0 0.0
        %1566 = vmatpush1.msra.mxu0 0.0
        %1567 = vmatprep.subr.mxu0 0.0
        %1568 = vmatpush1.msra.mxu0 0.0
        %1569 = vmatprep.subr.mxu0 0.0
        %1570 = vmatpush1.msra.mxu0 0.0
        %1571 = vmatprep.subr.mxu0 0.0
        %1572 = vmatpush1.msra.mxu0 0.0
        %1573 = vmatprep.subr.mxu0 0.0
        %1574 = vmatpush1.msra.mxu0 0.0
        %1575 = vmatprep.subr.mxu0 0.0
        %1576 = vmatpush1.msra.mxu0 0.0
        %1577 = vmatprep.subr.mxu0 0.0
        %1578 = vmatpush1.msra.mxu0 0.0
        %1579 = vmatprep.subr.mxu0 0.0
        %1580 = vmatpush1.msra.mxu0 %v1387
        %1581 = vmatprep.subr.mxu0 0.0
        %1582 = vmatpush1.msra.mxu0 %v1382
        %1583 = vmatprep.subr.mxu0 0.0
        %1584 = vmatpush2.msra.mxu0 0.0
        %1585 = vmatprep.subr.mxu0 0.0
        %1586 = vmatpush2.msra.mxu0 0.0
        %1587 = vmatprep.subr.mxu0 0.0
        %1588 = vmatpush2.msra.mxu0 0.0
        %1589 = vmatprep.subr.mxu0 0.0
        %1590 = vmatpush2.msra.mxu0 0.0
        %1591 = vmatprep.subr.mxu0 0.0
        %1592 = vmatpush2.msra.mxu0 0.0
        %1593 = vmatprep.subr.mxu0 0.0
        %1594 = vmatpush2.msra.mxu0 0.0
        %1595 = vmatprep.subr.mxu0 0.0
        %1596 = vmatpush2.msra.mxu0 0.0
        %1597 = vmatprep.subr.mxu0 0.0
        %1598 = vmatpush2.msra.mxu0 0.0
        %1599 = vmatprep.subr.mxu0 0.0
        %1600 = vmatpush2.msra.mxu0 0.0
        %1601 = vmatprep.subr.mxu0 0.0
        %1602 = vmatpush2.msra.mxu0 0.0
        %1603 = vmatprep.subr.mxu0 0.0
        %1604 = vmatpush2.msra.mxu0 0.0
        %1605 = vmatprep.subr.mxu0 0.0
        %1606 = vmatpush2.msra.mxu0 0.0
        %1607 = vmatprep.subr.mxu0 0.0
        %1608 = vmatpush2.msra.mxu0 0.0
        %1609 = vmatprep.subr.mxu0 0.0
        %1610 = vmatpush2.msra.mxu0 0.0
        %1611 = vmatprep.subr.mxu0 0.0
        %1612 = vmatpush2.msra.mxu0 0.0
        %1613 = vmatprep.subr.mxu0 0.0
        %1614 = vmatpush2.msra.mxu0 0.0
        %1615 = vmatprep.mubr.f32.mxu0 0.0
        %1616 = vmatmul.mubr.f32.gmra.mxu0 %v1549
        %v1617 = vpop.f32.mrf.mxu0
        %v1618 = vadd.f32 0.0, %v1617
        %v1619 = vpop.f32.mrf.mxu0
        %1620 = vdwg.mxu0
        %v1621 = vmax.f32 %v1472, %v1545
        %v1622 = vmax.f32 %v1621, %v1618
        %s1623 = scalar_lea.vmem %s4, 2
        %v1624 = vld [vmem:[%s1623] sm:$0x1]
        %v1626 = vlaneseq
        %v1627 = vshrl.u32 %v1626, 7
        %v1628 = vsub.s32 0, %v1627
        %v1629 = vrot.slane %v1624, %v1628
        %v1631 = vmul.f32 %v1622, %v1629
        %s1632 = scalar_lea.vmem %s5, 2
        %v1633 = vld [vmem:[%s1632] sm:$0x1]
        %v1635 = vlaneseq
        %v1636 = vshrl.u32 %v1635, 7
        %v1637 = vsub.s32 0, %v1636
        %v1638 = vrot.slane %v1633, %v1637
        %v1640 = vadd.f32 %v1631, %v1638
        %v1641 = vmax.f32 %v1640, 0.0
        %s1642 = scalar_lea.vmem %s6, 48
        %v1643 = vld [vmem:[%s1642] sm:$0xff]
        %v1644 = vld [vmem:[%s1642 + $0x8] sm:$0xff]
        %v1645 = vld [vmem:[%s1642 + $0x10] sm:$0xff]
        %s1646 = scalar_lea.vmem %s7, 2
        %v1647 = vld [vmem:[%s1646] sm:$0x1]
        %v1648 = vsel %vm1012, %v531, 0
        %1650 = vmatprep.subr.mxu0 0.0
        %1651 = vmatpush1.msra.mxu0 0.0
        %1652 = vmatprep.subr.mxu0 0.0
        %1653 = vmatpush1.msra.mxu0 0.0
        %1654 = vmatprep.subr.mxu0 0.0
        %1655 = vmatpush1.msra.mxu0 0.0
        %1656 = vmatprep.subr.mxu0 0.0
        %1657 = vmatpush1.msra.mxu0 0.0
        %1658 = vmatprep.subr.mxu0 0.0
        %1659 = vmatpush1.msra.mxu0 0.0
        %1660 = vmatprep.subr.mxu0 0.0
        %1661 = vmatpush1.msra.mxu0 0.0
        %1662 = vmatprep.subr.mxu0 0.0
        %1663 = vmatpush1.msra.mxu0 0.0
        %1664 = vmatprep.subr.mxu0 0.0
        %1665 = vmatpush1.msra.mxu0 0.0
        %1666 = vmatprep.subr.mxu0 0.0
        %1667 = vmatpush1.msra.mxu0 0.0
        %1668 = vmatprep.subr.mxu0 0.0
        %1669 = vmatpush1.msra.mxu0 0.0
        %1670 = vmatprep.subr.mxu0 0.0
        %1671 = vmatpush1.msra.mxu0 0.0
        %1672 = vmatprep.subr.mxu0 0.0
        %1673 = vmatpush1.msra.mxu0 0.0
        %1674 = vmatprep.subr.mxu0 0.0
        %1675 = vmatpush1.msra.mxu0 0.0
        %1676 = vmatprep.subr.mxu0 0.0
        %1677 = vmatpush1.msra.mxu0 0.0
        %1678 = vmatprep.subr.mxu0 0.0
        %1679 = vmatpush1.msra.mxu0 0.0
        %1680 = vmatprep.subr.mxu0 0.0
        %1681 = vmatpush1.msra.mxu0 %v1641
        %1682 = vmatprep.subr.mxu0 0.0
        %1683 = vmatpush2.msra.mxu0 0.0
        %1684 = vmatprep.subr.mxu0 0.0
        %1685 = vmatpush2.msra.mxu0 0.0
        %1686 = vmatprep.subr.mxu0 0.0
        %1687 = vmatpush2.msra.mxu0 0.0
        %1688 = vmatprep.subr.mxu0 0.0
        %1689 = vmatpush2.msra.mxu0 0.0
        %1690 = vmatprep.subr.mxu0 0.0
        %1691 = vmatpush2.msra.mxu0 0.0
        %1692 = vmatprep.subr.mxu0 0.0
        %1693 = vmatpush2.msra.mxu0 0.0
        %1694 = vmatprep.subr.mxu0 0.0
        %1695 = vmatpush2.msra.mxu0 0.0
        %1696 = vmatprep.subr.mxu0 0.0
        %1697 = vmatpush2.msra.mxu0 0.0
        %1698 = vmatprep.subr.mxu0 0.0
        %1699 = vmatpush2.msra.mxu0 0.0
        %1700 = vmatprep.subr.mxu0 0.0
        %1701 = vmatpush2.msra.mxu0 0.0
        %1702 = vmatprep.subr.mxu0 0.0
        %1703 = vmatpush2.msra.mxu0 0.0
        %1704 = vmatprep.subr.mxu0 0.0
        %1705 = vmatpush2.msra.mxu0 0.0
        %1706 = vmatprep.subr.mxu0 0.0
        %1707 = vmatpush2.msra.mxu0 0.0
        %1708 = vmatprep.subr.mxu0 0.0
        %1709 = vmatpush2.msra.mxu0 0.0
        %1710 = vmatprep.subr.mxu0 0.0
        %1711 = vmatpush2.msra.mxu0 0.0
        %1712 = vmatprep.subr.mxu0 0.0
        %1713 = vmatpush2.msra.mxu0 0.0
        %1714 = vmatprep.mubr.f32.mxu0 0.0
        %1715 = vmatmul.mubr.f32.gmra.mxu0 %v1648
        %v1716 = vpop.f32.mrf.mxu0
        %v1717 = vadd.f32 0.0, %v1716
        %v1718 = vpop.f32.mrf.mxu0
        %1719 = vdwg.mxu0
        %v1720 = vsel %vm1012, %v539, 0
        %1722 = vmatprep.subr.mxu0 0.0
        %1723 = vmatpush1.msra.mxu0 0.0
        %1724 = vmatprep.subr.mxu0 0.0
        %1725 = vmatpush1.msra.mxu0 0.0
        %1726 = vmatprep.subr.mxu0 0.0
        %1727 = vmatpush1.msra.mxu0 0.0
        %1728 = vmatprep.subr.mxu0 0.0
        %1729 = vmatpush1.msra.mxu0 0.0
        %1730 = vmatprep.subr.mxu0 0.0
        %1731 = vmatpush1.msra.mxu0 0.0
        %1732 = vmatprep.subr.mxu0 0.0
        %1733 = vmatpush1.msra.mxu0 0.0
        %1734 = vmatprep.subr.mxu0 0.0
        %1735 = vmatpush1.msra.mxu0 0.0
        %1736 = vmatprep.subr.mxu0 0.0
        %1737 = vmatpush1.msra.mxu0 0.0
        %1738 = vmatprep.subr.mxu0 0.0
        %1739 = vmatpush1.msra.mxu0 0.0
        %1740 = vmatprep.subr.mxu0 0.0
        %1741 = vmatpush1.msra.mxu0 0.0
        %1742 = vmatprep.subr.mxu0 0.0
        %1743 = vmatpush1.msra.mxu0 0.0
        %1744 = vmatprep.subr.mxu0 0.0
        %1745 = vmatpush1.msra.mxu0 0.0
        %1746 = vmatprep.subr.mxu0 0.0
        %1747 = vmatpush1.msra.mxu0 0.0
        %1748 = vmatprep.subr.mxu0 0.0
        %1749 = vmatpush1.msra.mxu0 0.0
        %1750 = vmatprep.subr.mxu0 0.0
        %1751 = vmatpush1.msra.mxu0 0.0
        %1752 = vmatprep.subr.mxu0 0.0
        %1753 = vmatpush1.msra.mxu0 %v1641
        %1754 = vmatprep.subr.mxu0 0.0
        %1755 = vmatpush2.msra.mxu0 0.0
        %1756 = vmatprep.subr.mxu0 0.0
        %1757 = vmatpush2.msra.mxu0 0.0
        %1758 = vmatprep.subr.mxu0 0.0
        %1759 = vmatpush2.msra.mxu0 0.0
        %1760 = vmatprep.subr.mxu0 0.0
        %1761 = vmatpush2.msra.mxu0 0.0
        %1762 = vmatprep.subr.mxu0 0.0
        %1763 = vmatpush2.msra.mxu0 0.0
        %1764 = vmatprep.subr.mxu0 0.0
        %1765 = vmatpush2.msra.mxu0 0.0
        %1766 = vmatprep.subr.mxu0 0.0
        %1767 = vmatpush2.msra.mxu0 0.0
        %1768 = vmatprep.subr.mxu0 0.0
        %1769 = vmatpush2.msra.mxu0 0.0
        %1770 = vmatprep.subr.mxu0 0.0
        %1771 = vmatpush2.msra.mxu0 0.0
        %1772 = vmatprep.subr.mxu0 0.0
        %1773 = vmatpush2.msra.mxu0 0.0
        %1774 = vmatprep.subr.mxu0 0.0
        %1775 = vmatpush2.msra.mxu0 0.0
        %1776 = vmatprep.subr.mxu0 0.0
        %1777 = vmatpush2.msra.mxu0 0.0
        %1778 = vmatprep.subr.mxu0 0.0
        %1779 = vmatpush2.msra.mxu0 0.0
        %1780 = vmatprep.subr.mxu0 0.0
        %1781 = vmatpush2.msra.mxu0 0.0
        %1782 = vmatprep.subr.mxu0 0.0
        %1783 = vmatpush2.msra.mxu0 0.0
        %1784 = vmatprep.subr.mxu0 0.0
        %1785 = vmatpush2.msra.mxu0 0.0
        %1786 = vmatprep.mubr.f32.mxu0 0.0
        %1787 = vmatmul.mubr.f32.gmra.mxu0 %v1720
        %v1788 = vpop.f32.mrf.mxu0
        %v1789 = vadd.f32 0.0, %v1788
        %v1790 = vpop.f32.mrf.mxu0
        %1791 = vdwg.mxu0
        %1793 = vrot.lane.b32.xlu0 %v1641, 8
        %v1794 = vpop.permute.xlu0 %1793
        %1797 = vrot.lane.b32.xlu0 %v1789, 16
        %v1798 = vpop.permute.xlu0 %1797
        %v1800 = vsel %vm1012, %v1717, %v1794
        %v1801 = vsel %vm548, %v1800, %v1798
        %v1803 = vlaneseq
        %v1804 = vshrl.u32 %v1803, 7
        %v1805 = vsub.s32 0, %v1804
        %v1806 = vrot.slane %v1647, %v1805
        %v1809 = vsel %vm1023, %v1801, 0
        %1811 = vmatprep.subr.mxu0 0.0
        %1812 = vmatpush1.msra.mxu0 0.0
        %1813 = vmatprep.subr.mxu0 0.0
        %1814 = vmatpush1.msra.mxu0 0.0
        %1815 = vmatprep.subr.mxu0 0.0
        %1816 = vmatpush1.msra.mxu0 0.0
        %1817 = vmatprep.subr.mxu0 0.0
        %1818 = vmatpush1.msra.mxu0 0.0
        %1819 = vmatprep.subr.mxu0 0.0
        %1820 = vmatpush1.msra.mxu0 0.0
        %1821 = vmatprep.subr.mxu0 0.0
        %1822 = vmatpush1.msra.mxu0 0.0
        %1823 = vmatprep.subr.mxu0 0.0
        %1824 = vmatpush1.msra.mxu0 0.0
        %1825 = vmatprep.subr.mxu0 0.0
        %1826 = vmatpush1.msra.mxu0 0.0
        %1827 = vmatprep.subr.mxu0 0.0
        %1828 = vmatpush1.msra.mxu0 0.0
        %1829 = vmatprep.subr.mxu0 0.0
        %1830 = vmatpush1.msra.mxu0 0.0
        %1831 = vmatprep.subr.mxu0 0.0
        %1832 = vmatpush1.msra.mxu0 0.0
        %1833 = vmatprep.subr.mxu0 0.0
        %1834 = vmatpush1.msra.mxu0 0.0
        %1835 = vmatprep.subr.mxu0 0.0
        %1836 = vmatpush1.msra.mxu0 0.0
        %1837 = vmatprep.subr.mxu0 0.0
        %1838 = vmatpush1.msra.mxu0 %v1645
        %1839 = vmatprep.subr.mxu0 0.0
        %1840 = vmatpush1.msra.mxu0 %v1644
        %1841 = vmatprep.subr.mxu0 0.0
        %1842 = vmatpush1.msra.mxu0 %v1643
        %1843 = vmatprep.subr.mxu0 0.0
        %1844 = vmatpush2.msra.mxu0 0.0
        %1845 = vmatprep.subr.mxu0 0.0
        %1846 = vmatpush2.msra.mxu0 0.0
        %1847 = vmatprep.subr.mxu0 0.0
        %1848 = vmatpush2.msra.mxu0 0.0
        %1849 = vmatprep.subr.mxu0 0.0
        %1850 = vmatpush2.msra.mxu0 0.0
        %1851 = vmatprep.subr.mxu0 0.0
        %1852 = vmatpush2.msra.mxu0 0.0
        %1853 = vmatprep.subr.mxu0 0.0
        %1854 = vmatpush2.msra.mxu0 0.0
        %1855 = vmatprep.subr.mxu0 0.0
        %1856 = vmatpush2.msra.mxu0 0.0
        %1857 = vmatprep.subr.mxu0 0.0
        %1858 = vmatpush2.msra.mxu0 0.0
        %1859 = vmatprep.subr.mxu0 0.0
        %1860 = vmatpush2.msra.mxu0 0.0
        %1861 = vmatprep.subr.mxu0 0.0
        %1862 = vmatpush2.msra.mxu0 0.0
        %1863 = vmatprep.subr.mxu0 0.0
        %1864 = vmatpush2.msra.mxu0 0.0
        %1865 = vmatprep.subr.mxu0 0.0
        %1866 = vmatpush2.msra.mxu0 0.0
        %1867 = vmatprep.subr.mxu0 0.0
        %1868 = vmatpush2.msra.mxu0 0.0
        %1869 = vmatprep.subr.mxu0 0.0
        %1870 = vmatpush2.msra.mxu0 0.0
        %1871 = vmatprep.subr.mxu0 0.0
        %1872 = vmatpush2.msra.mxu0 0.0
        %1873 = vmatprep.subr.mxu0 0.0
        %1874 = vmatpush2.msra.mxu0 0.0
        %1875 = vmatprep.mubr.f32.mxu0 0.0
        %1876 = vmatmul.mubr.f32.gmra.mxu0 %v1809
        %v1877 = vpop.f32.mrf.mxu0
        %v1878 = vadd.f32 %v1806, %v1877
        %v1879 = vpop.f32.mrf.mxu0
        %1880 = vdwg.mxu0
        %s1881 = scalar_lea.vmem %s4, 3
        %v1882 = vld [vmem:[%s1881] sm:$0x1]
        %v1884 = vlaneseq
        %v1885 = vshrl.u32 %v1884, 7
        %v1886 = vsub.s32 0, %v1885
        %v1887 = vrot.slane %v1882, %v1886
        %v1889 = vmul.f32 %v1878, %v1887
        %s1890 = scalar_lea.vmem %s5, 3
        %v1891 = vld [vmem:[%s1890] sm:$0x1]
        %v1893 = vlaneseq
        %v1894 = vshrl.u32 %v1893, 7
        %v1895 = vsub.s32 0, %v1894
        %v1896 = vrot.slane %v1891, %v1895
        %v1898 = vadd.f32 %v1889, %v1896
        %v1899 = vmax.f32 %v1898, 0.0
        %s1900 = scalar_lea.vmem %s6, 72
        %v1901 = vld [vmem:[%s1900] sm:$0xff]
        %v1902 = vld [vmem:[%s1900 + $0x8] sm:$0xff]
        %v1903 = vld [vmem:[%s1900 + $0x10] sm:$0xff]
        %s1904 = scalar_lea.vmem %s7, 3
        %v1905 = vld [vmem:[%s1904] sm:$0x1]
        %1906 = vmatprep.subr.mxu0 0.0
        %1907 = vmatpush1.msra.mxu0 0.0
        %1908 = vmatprep.subr.mxu0 0.0
        %1909 = vmatpush1.msra.mxu0 0.0
        %1910 = vmatprep.subr.mxu0 0.0
        %1911 = vmatpush1.msra.mxu0 0.0
        %1912 = vmatprep.subr.mxu0 0.0
        %1913 = vmatpush1.msra.mxu0 0.0
        %1914 = vmatprep.subr.mxu0 0.0
        %1915 = vmatpush1.msra.mxu0 0.0
        %1916 = vmatprep.subr.mxu0 0.0
        %1917 = vmatpush1.msra.mxu0 0.0
        %1918 = vmatprep.subr.mxu0 0.0
        %1919 = vmatpush1.msra.mxu0 0.0
        %1920 = vmatprep.subr.mxu0 0.0
        %1921 = vmatpush1.msra.mxu0 0.0
        %1922 = vmatprep.subr.mxu0 0.0
        %1923 = vmatpush1.msra.mxu0 0.0
        %1924 = vmatprep.subr.mxu0 0.0
        %1925 = vmatpush1.msra.mxu0 0.0
        %1926 = vmatprep.subr.mxu0 0.0
        %1927 = vmatpush1.msra.mxu0 0.0
        %1928 = vmatprep.subr.mxu0 0.0
        %1929 = vmatpush1.msra.mxu0 0.0
        %1930 = vmatprep.subr.mxu0 0.0
        %1931 = vmatpush1.msra.mxu0 0.0
        %1932 = vmatprep.subr.mxu0 0.0
        %1933 = vmatpush1.msra.mxu0 0.0
        %1934 = vmatprep.subr.mxu0 0.0
        %1935 = vmatpush1.msra.mxu0 0.0
        %1936 = vmatprep.subr.mxu0 0.0
        %1937 = vmatpush1.msra.mxu0 %v1899
        %1938 = vmatprep.subr.mxu0 0.0
        %1939 = vmatpush2.msra.mxu0 0.0
        %1940 = vmatprep.subr.mxu0 0.0
        %1941 = vmatpush2.msra.mxu0 0.0
        %1942 = vmatprep.subr.mxu0 0.0
        %1943 = vmatpush2.msra.mxu0 0.0
        %1944 = vmatprep.subr.mxu0 0.0
        %1945 = vmatpush2.msra.mxu0 0.0
        %1946 = vmatprep.subr.mxu0 0.0
        %1947 = vmatpush2.msra.mxu0 0.0
        %1948 = vmatprep.subr.mxu0 0.0
        %1949 = vmatpush2.msra.mxu0 0.0
        %1950 = vmatprep.subr.mxu0 0.0
        %1951 = vmatpush2.msra.mxu0 0.0
        %1952 = vmatprep.subr.mxu0 0.0
        %1953 = vmatpush2.msra.mxu0 0.0
        %1954 = vmatprep.subr.mxu0 0.0
        %1955 = vmatpush2.msra.mxu0 0.0
        %1956 = vmatprep.subr.mxu0 0.0
        %1957 = vmatpush2.msra.mxu0 0.0
        %1958 = vmatprep.subr.mxu0 0.0
        %1959 = vmatpush2.msra.mxu0 0.0
        %1960 = vmatprep.subr.mxu0 0.0
        %1961 = vmatpush2.msra.mxu0 0.0
        %1962 = vmatprep.subr.mxu0 0.0
        %1963 = vmatpush2.msra.mxu0 0.0
        %1964 = vmatprep.subr.mxu0 0.0
        %1965 = vmatpush2.msra.mxu0 0.0
        %1966 = vmatprep.subr.mxu0 0.0
        %1967 = vmatpush2.msra.mxu0 0.0
        %1968 = vmatprep.subr.mxu0 0.0
        %1969 = vmatpush2.msra.mxu0 0.0
        %1970 = vmatprep.mubr.f32.mxu0 0.0
        %1971 = vmatmul.mubr.f32.gmra.mxu0 %v1648
        %v1972 = vpop.f32.mrf.mxu0
        %v1973 = vadd.f32 0.0, %v1972
        %v1974 = vpop.f32.mrf.mxu0
        %1975 = vdwg.mxu0
        %1976 = vmatprep.subr.mxu0 0.0
        %1977 = vmatpush1.msra.mxu0 0.0
        %1978 = vmatprep.subr.mxu0 0.0
        %1979 = vmatpush1.msra.mxu0 0.0
        %1980 = vmatprep.subr.mxu0 0.0
        %1981 = vmatpush1.msra.mxu0 0.0
        %1982 = vmatprep.subr.mxu0 0.0
        %1983 = vmatpush1.msra.mxu0 0.0
        %1984 = vmatprep.subr.mxu0 0.0
        %1985 = vmatpush1.msra.mxu0 0.0
        %1986 = vmatprep.subr.mxu0 0.0
        %1987 = vmatpush1.msra.mxu0 0.0
        %1988 = vmatprep.subr.mxu0 0.0
        %1989 = vmatpush1.msra.mxu0 0.0
        %1990 = vmatprep.subr.mxu0 0.0
        %1991 = vmatpush1.msra.mxu0 0.0
        %1992 = vmatprep.subr.mxu0 0.0
        %1993 = vmatpush1.msra.mxu0 0.0
        %1994 = vmatprep.subr.mxu0 0.0
        %1995 = vmatpush1.msra.mxu0 0.0
        %1996 = vmatprep.subr.mxu0 0.0
        %1997 = vmatpush1.msra.mxu0 0.0
        %1998 = vmatprep.subr.mxu0 0.0
        %1999 = vmatpush1.msra.mxu0 0.0
        %2000 = vmatprep.subr.mxu0 0.0
        %2001 = vmatpush1.msra.mxu0 0.0
        %2002 = vmatprep.subr.mxu0 0.0
        %2003 = vmatpush1.msra.mxu0 0.0
        %2004 = vmatprep.subr.mxu0 0.0
        %2005 = vmatpush1.msra.mxu0 0.0
        %2006 = vmatprep.subr.mxu0 0.0
        %2007 = vmatpush1.msra.mxu0 %v1899
        %2008 = vmatprep.subr.mxu0 0.0
        %2009 = vmatpush2.msra.mxu0 0.0
        %2010 = vmatprep.subr.mxu0 0.0
        %2011 = vmatpush2.msra.mxu0 0.0
        %2012 = vmatprep.subr.mxu0 0.0
        %2013 = vmatpush2.msra.mxu0 0.0
        %2014 = vmatprep.subr.mxu0 0.0
        %2015 = vmatpush2.msra.mxu0 0.0
        %2016 = vmatprep.subr.mxu0 0.0
        %2017 = vmatpush2.msra.mxu0 0.0
        %2018 = vmatprep.subr.mxu0 0.0
        %2019 = vmatpush2.msra.mxu0 0.0
        %2020 = vmatprep.subr.mxu0 0.0
        %2021 = vmatpush2.msra.mxu0 0.0
        %2022 = vmatprep.subr.mxu0 0.0
        %2023 = vmatpush2.msra.mxu0 0.0
        %2024 = vmatprep.subr.mxu0 0.0
        %2025 = vmatpush2.msra.mxu0 0.0
        %2026 = vmatprep.subr.mxu0 0.0
        %2027 = vmatpush2.msra.mxu0 0.0
        %2028 = vmatprep.subr.mxu0 0.0
        %2029 = vmatpush2.msra.mxu0 0.0
        %2030 = vmatprep.subr.mxu0 0.0
        %2031 = vmatpush2.msra.mxu0 0.0
        %2032 = vmatprep.subr.mxu0 0.0
        %2033 = vmatpush2.msra.mxu0 0.0
        %2034 = vmatprep.subr.mxu0 0.0
        %2035 = vmatpush2.msra.mxu0 0.0
        %2036 = vmatprep.subr.mxu0 0.0
        %2037 = vmatpush2.msra.mxu0 0.0
        %2038 = vmatprep.subr.mxu0 0.0
        %2039 = vmatpush2.msra.mxu0 0.0
        %2040 = vmatprep.mubr.f32.mxu0 0.0
        %2041 = vmatmul.mubr.f32.gmra.mxu0 %v1720
        %v2042 = vpop.f32.mrf.mxu0
        %v2043 = vadd.f32 0.0, %v2042
        %v2044 = vpop.f32.mrf.mxu0
        %2045 = vdwg.mxu0
        %2047 = vrot.lane.b32.xlu0 %v1899, 8
        %v2048 = vpop.permute.xlu0 %2047
        %2051 = vrot.lane.b32.xlu0 %v2043, 16
        %v2052 = vpop.permute.xlu0 %2051
        %v2054 = vsel %vm1012, %v1973, %v2048
        %v2055 = vsel %vm548, %v2054, %v2052
        %v2057 = vlaneseq
        %v2058 = vshrl.u32 %v2057, 7
        %v2059 = vsub.s32 0, %v2058
        %v2060 = vrot.slane %v1905, %v2059
        %v2063 = vsel %vm1023, %v2055, 0
        %2065 = vmatprep.subr.mxu0 0.0
        %2066 = vmatpush1.msra.mxu0 0.0
        %2067 = vmatprep.subr.mxu0 0.0
        %2068 = vmatpush1.msra.mxu0 0.0
        %2069 = vmatprep.subr.mxu0 0.0
        %2070 = vmatpush1.msra.mxu0 0.0
        %2071 = vmatprep.subr.mxu0 0.0
        %2072 = vmatpush1.msra.mxu0 0.0
        %2073 = vmatprep.subr.mxu0 0.0
        %2074 = vmatpush1.msra.mxu0 0.0
        %2075 = vmatprep.subr.mxu0 0.0
        %2076 = vmatpush1.msra.mxu0 0.0
        %2077 = vmatprep.subr.mxu0 0.0
        %2078 = vmatpush1.msra.mxu0 0.0
        %2079 = vmatprep.subr.mxu0 0.0
        %2080 = vmatpush1.msra.mxu0 0.0
        %2081 = vmatprep.subr.mxu0 0.0
        %2082 = vmatpush1.msra.mxu0 0.0
        %2083 = vmatprep.subr.mxu0 0.0
        %2084 = vmatpush1.msra.mxu0 0.0
        %2085 = vmatprep.subr.mxu0 0.0
        %2086 = vmatpush1.msra.mxu0 0.0
        %2087 = vmatprep.subr.mxu0 0.0
        %2088 = vmatpush1.msra.mxu0 0.0
        %2089 = vmatprep.subr.mxu0 0.0
        %2090 = vmatpush1.msra.mxu0 0.0
        %2091 = vmatprep.subr.mxu0 0.0
        %2092 = vmatpush1.msra.mxu0 %v1903
        %2093 = vmatprep.subr.mxu0 0.0
        %2094 = vmatpush1.msra.mxu0 %v1902
        %2095 = vmatprep.subr.mxu0 0.0
        %2096 = vmatpush1.msra.mxu0 %v1901
        %2097 = vmatprep.subr.mxu0 0.0
        %2098 = vmatpush2.msra.mxu0 0.0
        %2099 = vmatprep.subr.mxu0 0.0
        %2100 = vmatpush2.msra.mxu0 0.0
        %2101 = vmatprep.subr.mxu0 0.0
        %2102 = vmatpush2.msra.mxu0 0.0
        %2103 = vmatprep.subr.mxu0 0.0
        %2104 = vmatpush2.msra.mxu0 0.0
        %2105 = vmatprep.subr.mxu0 0.0
        %2106 = vmatpush2.msra.mxu0 0.0
        %2107 = vmatprep.subr.mxu0 0.0
        %2108 = vmatpush2.msra.mxu0 0.0
        %2109 = vmatprep.subr.mxu0 0.0
        %2110 = vmatpush2.msra.mxu0 0.0
        %2111 = vmatprep.subr.mxu0 0.0
        %2112 = vmatpush2.msra.mxu0 0.0
        %2113 = vmatprep.subr.mxu0 0.0
        %2114 = vmatpush2.msra.mxu0 0.0
        %2115 = vmatprep.subr.mxu0 0.0
        %2116 = vmatpush2.msra.mxu0 0.0
        %2117 = vmatprep.subr.mxu0 0.0
        %2118 = vmatpush2.msra.mxu0 0.0
        %2119 = vmatprep.subr.mxu0 0.0
        %2120 = vmatpush2.msra.mxu0 0.0
        %2121 = vmatprep.subr.mxu0 0.0
        %2122 = vmatpush2.msra.mxu0 0.0
        %2123 = vmatprep.subr.mxu0 0.0
        %2124 = vmatpush2.msra.mxu0 0.0
        %2125 = vmatprep.subr.mxu0 0.0
        %2126 = vmatpush2.msra.mxu0 0.0
        %2127 = vmatprep.subr.mxu0 0.0
        %2128 = vmatpush2.msra.mxu0 0.0
        %2129 = vmatprep.mubr.f32.mxu0 0.0
        %2130 = vmatmul.mubr.f32.gmra.mxu0 %v2063
        %v2131 = vpop.f32.mrf.mxu0
        %v2132 = vadd.f32 %v2060, %v2131
        %v2133 = vpop.f32.mrf.mxu0
        %2134 = vdwg.mxu0
        %v2135 = vadd.f32 %v2132, %v1622
        %v2136 = vsel %vm1012, %v1393, 0
        %2138 = vmatprep.subr.mxu0 0.0
        %2139 = vmatpush1.msra.mxu0 0.0
        %2140 = vmatprep.subr.mxu0 0.0
        %2141 = vmatpush1.msra.mxu0 0.0
        %2142 = vmatprep.subr.mxu0 0.0
        %2143 = vmatpush1.msra.mxu0 0.0
        %2144 = vmatprep.subr.mxu0 0.0
        %2145 = vmatpush1.msra.mxu0 0.0
        %2146 = vmatprep.subr.mxu0 0.0
        %2147 = vmatpush1.msra.mxu0 0.0
        %2148 = vmatprep.subr.mxu0 0.0
        %2149 = vmatpush1.msra.mxu0 0.0
        %2150 = vmatprep.subr.mxu0 0.0
        %2151 = vmatpush1.msra.mxu0 0.0
        %2152 = vmatprep.subr.mxu0 0.0
        %2153 = vmatpush1.msra.mxu0 0.0
        %2154 = vmatprep.subr.mxu0 0.0
        %2155 = vmatpush1.msra.mxu0 0.0
        %2156 = vmatprep.subr.mxu0 0.0
        %2157 = vmatpush1.msra.mxu0 0.0
        %2158 = vmatprep.subr.mxu0 0.0
        %2159 = vmatpush1.msra.mxu0 0.0
        %2160 = vmatprep.subr.mxu0 0.0
        %2161 = vmatpush1.msra.mxu0 0.0
        %2162 = vmatprep.subr.mxu0 0.0
        %2163 = vmatpush1.msra.mxu0 0.0
        %2164 = vmatprep.subr.mxu0 0.0
        %2165 = vmatpush1.msra.mxu0 0.0
        %2166 = vmatprep.subr.mxu0 0.0
        %2167 = vmatpush1.msra.mxu0 0.0
        %2168 = vmatprep.subr.mxu0 0.0
        %2169 = vmatpush1.msra.mxu0 %v2135
        %2170 = vmatprep.subr.mxu0 0.0
        %2171 = vmatpush2.msra.mxu0 0.0
        %2172 = vmatprep.subr.mxu0 0.0
        %2173 = vmatpush2.msra.mxu0 0.0
        %2174 = vmatprep.subr.mxu0 0.0
        %2175 = vmatpush2.msra.mxu0 0.0
        %2176 = vmatprep.subr.mxu0 0.0
        %2177 = vmatpush2.msra.mxu0 0.0
        %2178 = vmatprep.subr.mxu0 0.0
        %2179 = vmatpush2.msra.mxu0 0.0
        %2180 = vmatprep.subr.mxu0 0.0
        %2181 = vmatpush2.msra.mxu0 0.0
        %2182 = vmatprep.subr.mxu0 0.0
        %2183 = vmatpush2.msra.mxu0 0.0
        %2184 = vmatprep.subr.mxu0 0.0
        %2185 = vmatpush2.msra.mxu0 0.0
        %2186 = vmatprep.subr.mxu0 0.0
        %2187 = vmatpush2.msra.mxu0 0.0
        %2188 = vmatprep.subr.mxu0 0.0
        %2189 = vmatpush2.msra.mxu0 0.0
        %2190 = vmatprep.subr.mxu0 0.0
        %2191 = vmatpush2.msra.mxu0 0.0
        %2192 = vmatprep.subr.mxu0 0.0
        %2193 = vmatpush2.msra.mxu0 0.0
        %2194 = vmatprep.subr.mxu0 0.0
        %2195 = vmatpush2.msra.mxu0 0.0
        %2196 = vmatprep.subr.mxu0 0.0
        %2197 = vmatpush2.msra.mxu0 0.0
        %2198 = vmatprep.subr.mxu0 0.0
        %2199 = vmatpush2.msra.mxu0 0.0
        %2200 = vmatprep.subr.mxu0 0.0
        %2201 = vmatpush2.msra.mxu0 0.0
        %2202 = vmatprep.mubr.f32.mxu0 0.0
        %2203 = vmatmul.mubr.f32.gmra.mxu0 %v2136
        %v2204 = vpop.f32.mrf.mxu0
        %v2205 = vadd.f32 0.0, %v2204
        %v2206 = vpop.f32.mrf.mxu0
        %2207 = vdwg.mxu0
        %v2208 = vsel %vm1012, %v1397, 0
        %2210 = vmatprep.subr.mxu0 0.0
        %2211 = vmatpush1.msra.mxu0 0.0
        %2212 = vmatprep.subr.mxu0 0.0
        %2213 = vmatpush1.msra.mxu0 0.0
        %2214 = vmatprep.subr.mxu0 0.0
        %2215 = vmatpush1.msra.mxu0 0.0
        %2216 = vmatprep.subr.mxu0 0.0
        %2217 = vmatpush1.msra.mxu0 0.0
        %2218 = vmatprep.subr.mxu0 0.0
        %2219 = vmatpush1.msra.mxu0 0.0
        %2220 = vmatprep.subr.mxu0 0.0
        %2221 = vmatpush1.msra.mxu0 0.0
        %2222 = vmatprep.subr.mxu0 0.0
        %2223 = vmatpush1.msra.mxu0 0.0
        %2224 = vmatprep.subr.mxu0 0.0
        %2225 = vmatpush1.msra.mxu0 0.0
        %2226 = vmatprep.subr.mxu0 0.0
        %2227 = vmatpush1.msra.mxu0 0.0
        %2228 = vmatprep.subr.mxu0 0.0
        %2229 = vmatpush1.msra.mxu0 0.0
        %2230 = vmatprep.subr.mxu0 0.0
        %2231 = vmatpush1.msra.mxu0 0.0
        %2232 = vmatprep.subr.mxu0 0.0
        %2233 = vmatpush1.msra.mxu0 0.0
        %2234 = vmatprep.subr.mxu0 0.0
        %2235 = vmatpush1.msra.mxu0 0.0
        %2236 = vmatprep.subr.mxu0 0.0
        %2237 = vmatpush1.msra.mxu0 0.0
        %2238 = vmatprep.subr.mxu0 0.0
        %2239 = vmatpush1.msra.mxu0 0.0
        %2240 = vmatprep.subr.mxu0 0.0
        %2241 = vmatpush1.msra.mxu0 %v2135
        %2242 = vmatprep.subr.mxu0 0.0
        %2243 = vmatpush2.msra.mxu0 0.0
        %2244 = vmatprep.subr.mxu0 0.0
        %2245 = vmatpush2.msra.mxu0 0.0
        %2246 = vmatprep.subr.mxu0 0.0
        %2247 = vmatpush2.msra.mxu0 0.0
        %2248 = vmatprep.subr.mxu0 0.0
        %2249 = vmatpush2.msra.mxu0 0.0
        %2250 = vmatprep.subr.mxu0 0.0
        %2251 = vmatpush2.msra.mxu0 0.0
        %2252 = vmatprep.subr.mxu0 0.0
        %2253 = vmatpush2.msra.mxu0 0.0
        %2254 = vmatprep.subr.mxu0 0.0
        %2255 = vmatpush2.msra.mxu0 0.0
        %2256 = vmatprep.subr.mxu0 0.0
        %2257 = vmatpush2.msra.mxu0 0.0
        %2258 = vmatprep.subr.mxu0 0.0
        %2259 = vmatpush2.msra.mxu0 0.0
        %2260 = vmatprep.subr.mxu0 0.0
        %2261 = vmatpush2.msra.mxu0 0.0
        %2262 = vmatprep.subr.mxu0 0.0
        %2263 = vmatpush2.msra.mxu0 0.0
        %2264 = vmatprep.subr.mxu0 0.0
        %2265 = vmatpush2.msra.mxu0 0.0
        %2266 = vmatprep.subr.mxu0 0.0
        %2267 = vmatpush2.msra.mxu0 0.0
        %2268 = vmatprep.subr.mxu0 0.0
        %2269 = vmatpush2.msra.mxu0 0.0
        %2270 = vmatprep.subr.mxu0 0.0
        %2271 = vmatpush2.msra.mxu0 0.0
        %2272 = vmatprep.subr.mxu0 0.0
        %2273 = vmatpush2.msra.mxu0 0.0
        %2274 = vmatprep.mubr.f32.mxu0 0.0
        %2275 = vmatmul.mubr.f32.gmra.mxu0 %v2208
        %v2276 = vpop.f32.mrf.mxu0
        %v2277 = vadd.f32 0.0, %v2276
        %v2278 = vpop.f32.mrf.mxu0
        %2279 = vdwg.mxu0
        %v2280 = vsel %vm1012, %v1401, 0
        %2282 = vmatprep.subr.mxu0 0.0
        %2283 = vmatpush1.msra.mxu0 0.0
        %2284 = vmatprep.subr.mxu0 0.0
        %2285 = vmatpush1.msra.mxu0 0.0
        %2286 = vmatprep.subr.mxu0 0.0
        %2287 = vmatpush1.msra.mxu0 0.0
        %2288 = vmatprep.subr.mxu0 0.0
        %2289 = vmatpush1.msra.mxu0 0.0
        %2290 = vmatprep.subr.mxu0 0.0
        %2291 = vmatpush1.msra.mxu0 0.0
        %2292 = vmatprep.subr.mxu0 0.0
        %2293 = vmatpush1.msra.mxu0 0.0
        %2294 = vmatprep.subr.mxu0 0.0
        %2295 = vmatpush1.msra.mxu0 0.0
        %2296 = vmatprep.subr.mxu0 0.0
        %2297 = vmatpush1.msra.mxu0 0.0
        %2298 = vmatprep.subr.mxu0 0.0
        %2299 = vmatpush1.msra.mxu0 0.0
        %2300 = vmatprep.subr.mxu0 0.0
        %2301 = vmatpush1.msra.mxu0 0.0
        %2302 = vmatprep.subr.mxu0 0.0
        %2303 = vmatpush1.msra.mxu0 0.0
        %2304 = vmatprep.subr.mxu0 0.0
        %2305 = vmatpush1.msra.mxu0 0.0
        %2306 = vmatprep.subr.mxu0 0.0
        %2307 = vmatpush1.msra.mxu0 0.0
        %2308 = vmatprep.subr.mxu0 0.0
        %2309 = vmatpush1.msra.mxu0 0.0
        %2310 = vmatprep.subr.mxu0 0.0
        %2311 = vmatpush1.msra.mxu0 0.0
        %2312 = vmatprep.subr.mxu0 0.0
        %2313 = vmatpush1.msra.mxu0 %v2135
        %2314 = vmatprep.subr.mxu0 0.0
        %2315 = vmatpush2.msra.mxu0 0.0
        %2316 = vmatprep.subr.mxu0 0.0
        %2317 = vmatpush2.msra.mxu0 0.0
        %2318 = vmatprep.subr.mxu0 0.0
        %2319 = vmatpush2.msra.mxu0 0.0
        %2320 = vmatprep.subr.mxu0 0.0
        %2321 = vmatpush2.msra.mxu0 0.0
        %2322 = vmatprep.subr.mxu0 0.0
        %2323 = vmatpush2.msra.mxu0 0.0
        %2324 = vmatprep.subr.mxu0 0.0
        %2325 = vmatpush2.msra.mxu0 0.0
        %2326 = vmatprep.subr.mxu0 0.0
        %2327 = vmatpush2.msra.mxu0 0.0
        %2328 = vmatprep.subr.mxu0 0.0
        %2329 = vmatpush2.msra.mxu0 0.0
        %2330 = vmatprep.subr.mxu0 0.0
        %2331 = vmatpush2.msra.mxu0 0.0
        %2332 = vmatprep.subr.mxu0 0.0
        %2333 = vmatpush2.msra.mxu0 0.0
        %2334 = vmatprep.subr.mxu0 0.0
        %2335 = vmatpush2.msra.mxu0 0.0
        %2336 = vmatprep.subr.mxu0 0.0
        %2337 = vmatpush2.msra.mxu0 0.0
        %2338 = vmatprep.subr.mxu0 0.0
        %2339 = vmatpush2.msra.mxu0 0.0
        %2340 = vmatprep.subr.mxu0 0.0
        %2341 = vmatpush2.msra.mxu0 0.0
        %2342 = vmatprep.subr.mxu0 0.0
        %2343 = vmatpush2.msra.mxu0 0.0
        %2344 = vmatprep.subr.mxu0 0.0
        %2345 = vmatpush2.msra.mxu0 0.0
        %2346 = vmatprep.mubr.f32.mxu0 0.0
        %2347 = vmatmul.mubr.f32.gmra.mxu0 %v2280
        %v2348 = vpop.f32.mrf.mxu0
        %v2349 = vadd.f32 0.0, %v2348
        %v2350 = vpop.f32.mrf.mxu0
        %2351 = vdwg.mxu0
        %v2352 = vmax.f32 %v2205, %v2277
        %v2353 = vmax.f32 %v2352, %v2349
        %s2354 = scalar_lea.vmem %s4, 4
        %v2355 = vld [vmem:[%s2354] sm:$0x1]
        %v2357 = vlaneseq
        %v2358 = vshrl.u32 %v2357, 7
        %v2359 = vsub.s32 0, %v2358
        %v2360 = vrot.slane %v2355, %v2359
        %v2362 = vmul.f32 %v2353, %v2360
        %s2363 = scalar_lea.vmem %s5, 4
        %v2364 = vld [vmem:[%s2363] sm:$0x1]
        %v2366 = vlaneseq
        %v2367 = vshrl.u32 %v2366, 7
        %v2368 = vsub.s32 0, %v2367
        %v2369 = vrot.slane %v2364, %v2368
        %v2371 = vadd.f32 %v2362, %v2369
        %v2372 = vmax.f32 %v2371, 0.0
        %s2373 = scalar_lea.vmem %s6, 96
        %v2374 = vld [vmem:[%s2373] sm:$0xff]
        %v2375 = vld [vmem:[%s2373 + $0x8] sm:$0xff]
        %v2376 = vld [vmem:[%s2373 + $0x10] sm:$0xff]
        %s2377 = scalar_lea.vmem %s7, 4
        %v2378 = vld [vmem:[%s2377] sm:$0x1]
        %vm2379 = vcmask 31744
        %v2380 = vsel %vm2379, %v531, 0
        %vm2382 = vcmask 1043456
        %v2384 = vsel %vm2382, %v2372, 0
        %2386 = vmatprep.subr.mxu0 0.0
        %2387 = vmatpush1.msra.mxu0 0.0
        %2388 = vmatprep.subr.mxu0 0.0
        %2389 = vmatpush1.msra.mxu0 0.0
        %2390 = vmatprep.subr.mxu0 0.0
        %2391 = vmatpush1.msra.mxu0 0.0
        %2392 = vmatprep.subr.mxu0 0.0
        %2393 = vmatpush1.msra.mxu0 0.0
        %2394 = vmatprep.subr.mxu0 0.0
        %2395 = vmatpush1.msra.mxu0 0.0
        %2396 = vmatprep.subr.mxu0 0.0
        %2397 = vmatpush1.msra.mxu0 0.0
        %2398 = vmatprep.subr.mxu0 0.0
        %2399 = vmatpush1.msra.mxu0 0.0
        %2400 = vmatprep.subr.mxu0 0.0
        %2401 = vmatpush1.msra.mxu0 0.0
        %2402 = vmatprep.subr.mxu0 0.0
        %2403 = vmatpush1.msra.mxu0 0.0
        %2404 = vmatprep.subr.mxu0 0.0
        %2405 = vmatpush1.msra.mxu0 0.0
        %2406 = vmatprep.subr.mxu0 0.0
        %2407 = vmatpush1.msra.mxu0 0.0
        %2408 = vmatprep.subr.mxu0 0.0
        %2409 = vmatpush1.msra.mxu0 0.0
        %2410 = vmatprep.subr.mxu0 0.0
        %2411 = vmatpush1.msra.mxu0 0.0
        %2412 = vmatprep.subr.mxu0 0.0
        %2413 = vmatpush1.msra.mxu0 0.0
        %2414 = vmatprep.subr.mxu0 0.0
        %2415 = vmatpush1.msra.mxu0 0.0
        %2416 = vmatprep.subr.mxu0 0.0
        %2417 = vmatpush1.msra.mxu0 %v2384
        %2418 = vmatprep.subr.mxu0 0.0
        %2419 = vmatpush2.msra.mxu0 0.0
        %2420 = vmatprep.subr.mxu0 0.0
        %2421 = vmatpush2.msra.mxu0 0.0
        %2422 = vmatprep.subr.mxu0 0.0
        %2423 = vmatpush2.msra.mxu0 0.0
        %2424 = vmatprep.subr.mxu0 0.0
        %2425 = vmatpush2.msra.mxu0 0.0
        %2426 = vmatprep.subr.mxu0 0.0
        %2427 = vmatpush2.msra.mxu0 0.0
        %2428 = vmatprep.subr.mxu0 0.0
        %2429 = vmatpush2.msra.mxu0 0.0
        %2430 = vmatprep.subr.mxu0 0.0
        %2431 = vmatpush2.msra.mxu0 0.0
        %2432 = vmatprep.subr.mxu0 0.0
        %2433 = vmatpush2.msra.mxu0 0.0
        %2434 = vmatprep.subr.mxu0 0.0
        %2435 = vmatpush2.msra.mxu0 0.0
        %2436 = vmatprep.subr.mxu0 0.0
        %2437 = vmatpush2.msra.mxu0 0.0
        %2438 = vmatprep.subr.mxu0 0.0
        %2439 = vmatpush2.msra.mxu0 0.0
        %2440 = vmatprep.subr.mxu0 0.0
        %2441 = vmatpush2.msra.mxu0 0.0
        %2442 = vmatprep.subr.mxu0 0.0
        %2443 = vmatpush2.msra.mxu0 0.0
        %2444 = vmatprep.subr.mxu0 0.0
        %2445 = vmatpush2.msra.mxu0 0.0
        %2446 = vmatprep.subr.mxu0 0.0
        %2447 = vmatpush2.msra.mxu0 0.0
        %2448 = vmatprep.subr.mxu0 0.0
        %2449 = vmatpush2.msra.mxu0 0.0
        %2450 = vmatprep.mubr.f32.mxu0 0.0
        %2451 = vmatmul.mubr.f32.gmra.mxu0 %v2380
        %v2452 = vpop.f32.mrf.mxu0
        %v2453 = vadd.f32 0.0, %v2452
        %v2454 = vpop.f32.mrf.mxu0
        %2455 = vdwg.mxu0
        %v2456 = vsel %vm2379, %v539, 0
        %2458 = vmatprep.subr.mxu0 0.0
        %2459 = vmatpush1.msra.mxu0 0.0
        %2460 = vmatprep.subr.mxu0 0.0
        %2461 = vmatpush1.msra.mxu0 0.0
        %2462 = vmatprep.subr.mxu0 0.0
        %2463 = vmatpush1.msra.mxu0 0.0
        %2464 = vmatprep.subr.mxu0 0.0
        %2465 = vmatpush1.msra.mxu0 0.0
        %2466 = vmatprep.subr.mxu0 0.0
        %2467 = vmatpush1.msra.mxu0 0.0
        %2468 = vmatprep.subr.mxu0 0.0
        %2469 = vmatpush1.msra.mxu0 0.0
        %2470 = vmatprep.subr.mxu0 0.0
        %2471 = vmatpush1.msra.mxu0 0.0
        %2472 = vmatprep.subr.mxu0 0.0
        %2473 = vmatpush1.msra.mxu0 0.0
        %2474 = vmatprep.subr.mxu0 0.0
        %2475 = vmatpush1.msra.mxu0 0.0
        %2476 = vmatprep.subr.mxu0 0.0
        %2477 = vmatpush1.msra.mxu0 0.0
        %2478 = vmatprep.subr.mxu0 0.0
        %2479 = vmatpush1.msra.mxu0 0.0
        %2480 = vmatprep.subr.mxu0 0.0
        %2481 = vmatpush1.msra.mxu0 0.0
        %2482 = vmatprep.subr.mxu0 0.0
        %2483 = vmatpush1.msra.mxu0 0.0
        %2484 = vmatprep.subr.mxu0 0.0
        %2485 = vmatpush1.msra.mxu0 0.0
        %2486 = vmatprep.subr.mxu0 0.0
        %2487 = vmatpush1.msra.mxu0 0.0
        %2488 = vmatprep.subr.mxu0 0.0
        %2489 = vmatpush1.msra.mxu0 %v2384
        %2490 = vmatprep.subr.mxu0 0.0
        %2491 = vmatpush2.msra.mxu0 0.0
        %2492 = vmatprep.subr.mxu0 0.0
        %2493 = vmatpush2.msra.mxu0 0.0
        %2494 = vmatprep.subr.mxu0 0.0
        %2495 = vmatpush2.msra.mxu0 0.0
        %2496 = vmatprep.subr.mxu0 0.0
        %2497 = vmatpush2.msra.mxu0 0.0
        %2498 = vmatprep.subr.mxu0 0.0
        %2499 = vmatpush2.msra.mxu0 0.0
        %2500 = vmatprep.subr.mxu0 0.0
        %2501 = vmatpush2.msra.mxu0 0.0
        %2502 = vmatprep.subr.mxu0 0.0
        %2503 = vmatpush2.msra.mxu0 0.0
        %2504 = vmatprep.subr.mxu0 0.0
        %2505 = vmatpush2.msra.mxu0 0.0
        %2506 = vmatprep.subr.mxu0 0.0
        %2507 = vmatpush2.msra.mxu0 0.0
        %2508 = vmatprep.subr.mxu0 0.0
        %2509 = vmatpush2.msra.mxu0 0.0
        %2510 = vmatprep.subr.mxu0 0.0
        %2511 = vmatpush2.msra.mxu0 0.0
        %2512 = vmatprep.subr.mxu0 0.0
        %2513 = vmatpush2.msra.mxu0 0.0
        %2514 = vmatprep.subr.mxu0 0.0
        %2515 = vmatpush2.msra.mxu0 0.0
        %2516 = vmatprep.subr.mxu0 0.0
        %2517 = vmatpush2.msra.mxu0 0.0
        %2518 = vmatprep.subr.mxu0 0.0
        %2519 = vmatpush2.msra.mxu0 0.0
        %2520 = vmatprep.subr.mxu0 0.0
        %2521 = vmatpush2.msra.mxu0 0.0
        %2522 = vmatprep.mubr.f32.mxu0 0.0
        %2523 = vmatmul.mubr.f32.gmra.mxu0 %v2456
        %v2524 = vpop.f32.mrf.mxu0
        %v2525 = vadd.f32 0.0, %v2524
        %v2526 = vpop.f32.mrf.mxu0
        %2527 = vdwg.mxu0
        %2528 = vrot.lane.b32.xlu0 %v2372, 8
        %v2529 = vpop.permute.xlu0 %2528
        %2532 = vrot.lane.b32.xlu0 %v2525, 16
        %v2533 = vpop.permute.xlu0 %2532
        %v2535 = vsel %vm1012, %v2453, %v2529
        %v2536 = vsel %vm548, %v2535, %v2533
        %v2538 = vlaneseq
        %v2539 = vshrl.u32 %v2538, 7
        %v2540 = vsub.s32 0, %v2539
        %v2541 = vrot.slane %v2378, %v2540
        %v2544 = vsel %vm1023, %v2536, 0
        %2546 = vmatprep.subr.mxu0 0.0
        %2547 = vmatpush1.msra.mxu0 0.0
        %2548 = vmatprep.subr.mxu0 0.0
        %2549 = vmatpush1.msra.mxu0 0.0
        %2550 = vmatprep.subr.mxu0 0.0
        %2551 = vmatpush1.msra.mxu0 0.0
        %2552 = vmatprep.subr.mxu0 0.0
        %2553 = vmatpush1.msra.mxu0 0.0
        %2554 = vmatprep.subr.mxu0 0.0
        %2555 = vmatpush1.msra.mxu0 0.0
        %2556 = vmatprep.subr.mxu0 0.0
        %2557 = vmatpush1.msra.mxu0 0.0
        %2558 = vmatprep.subr.mxu0 0.0
        %2559 = vmatpush1.msra.mxu0 0.0
        %2560 = vmatprep.subr.mxu0 0.0
        %2561 = vmatpush1.msra.mxu0 0.0
        %2562 = vmatprep.subr.mxu0 0.0
        %2563 = vmatpush1.msra.mxu0 0.0
        %2564 = vmatprep.subr.mxu0 0.0
        %2565 = vmatpush1.msra.mxu0 0.0
        %2566 = vmatprep.subr.mxu0 0.0
        %2567 = vmatpush1.msra.mxu0 0.0
        %2568 = vmatprep.subr.mxu0 0.0
        %2569 = vmatpush1.msra.mxu0 0.0
        %2570 = vmatprep.subr.mxu0 0.0
        %2571 = vmatpush1.msra.mxu0 0.0
        %2572 = vmatprep.subr.mxu0 0.0
        %2573 = vmatpush1.msra.mxu0 %v2376
        %2574 = vmatprep.subr.mxu0 0.0
        %2575 = vmatpush1.msra.mxu0 %v2375
        %2576 = vmatprep.subr.mxu0 0.0
        %2577 = vmatpush1.msra.mxu0 %v2374
        %2578 = vmatprep.subr.mxu0 0.0
        %2579 = vmatpush2.msra.mxu0 0.0
        %2580 = vmatprep.subr.mxu0 0.0
        %2581 = vmatpush2.msra.mxu0 0.0
        %2582 = vmatprep.subr.mxu0 0.0
        %2583 = vmatpush2.msra.mxu0 0.0
        %2584 = vmatprep.subr.mxu0 0.0
        %2585 = vmatpush2.msra.mxu0 0.0
        %2586 = vmatprep.subr.mxu0 0.0
        %2587 = vmatpush2.msra.mxu0 0.0
        %2588 = vmatprep.subr.mxu0 0.0
        %2589 = vmatpush2.msra.mxu0 0.0
        %2590 = vmatprep.subr.mxu0 0.0
        %2591 = vmatpush2.msra.mxu0 0.0
        %2592 = vmatprep.subr.mxu0 0.0
        %2593 = vmatpush2.msra.mxu0 0.0
        %2594 = vmatprep.subr.mxu0 0.0
        %2595 = vmatpush2.msra.mxu0 0.0
        %2596 = vmatprep.subr.mxu0 0.0
        %2597 = vmatpush2.msra.mxu0 0.0
        %2598 = vmatprep.subr.mxu0 0.0
        %2599 = vmatpush2.msra.mxu0 0.0
        %2600 = vmatprep.subr.mxu0 0.0
        %2601 = vmatpush2.msra.mxu0 0.0
        %2602 = vmatprep.subr.mxu0 0.0
        %2603 = vmatpush2.msra.mxu0 0.0
        %2604 = vmatprep.subr.mxu0 0.0
        %2605 = vmatpush2.msra.mxu0 0.0
        %2606 = vmatprep.subr.mxu0 0.0
        %2607 = vmatpush2.msra.mxu0 0.0
        %2608 = vmatprep.subr.mxu0 0.0
        %2609 = vmatpush2.msra.mxu0 0.0
        %2610 = vmatprep.mubr.f32.mxu0 0.0
        %2611 = vmatmul.mubr.f32.gmra.mxu0 %v2544
        %v2612 = vpop.f32.mrf.mxu0
        %v2613 = vadd.f32 %v2541, %v2612
        %v2614 = vpop.f32.mrf.mxu0
        %2615 = vdwg.mxu0
        %s2616 = scalar_lea.vmem %s4, 5
        %v2617 = vld [vmem:[%s2616] sm:$0x1]
        %v2619 = vlaneseq
        %v2620 = vshrl.u32 %v2619, 7
        %v2621 = vsub.s32 0, %v2620
        %v2622 = vrot.slane %v2617, %v2621
        %v2624 = vmul.f32 %v2613, %v2622
        %s2625 = scalar_lea.vmem %s5, 5
        %v2626 = vld [vmem:[%s2625] sm:$0x1]
        %v2628 = vlaneseq
        %v2629 = vshrl.u32 %v2628, 7
        %v2630 = vsub.s32 0, %v2629
        %v2631 = vrot.slane %v2626, %v2630
        %v2633 = vadd.f32 %v2624, %v2631
        %v2634 = vmax.f32 %v2633, 0.0
        %s2635 = scalar_lea.vmem %s6, 120
        %v2636 = vld [vmem:[%s2635] sm:$0xff]
        %v2637 = vld [vmem:[%s2635 + $0x8] sm:$0xff]
        %v2638 = vld [vmem:[%s2635 + $0x10] sm:$0xff]
        %s2639 = scalar_lea.vmem %s7, 5
        %v2640 = vld [vmem:[%s2639] sm:$0x1]
        %v2642 = vsel %vm2382, %v2634, 0
        %2644 = vmatprep.subr.mxu0 0.0
        %2645 = vmatpush1.msra.mxu0 0.0
        %2646 = vmatprep.subr.mxu0 0.0
        %2647 = vmatpush1.msra.mxu0 0.0
        %2648 = vmatprep.subr.mxu0 0.0
        %2649 = vmatpush1.msra.mxu0 0.0
        %2650 = vmatprep.subr.mxu0 0.0
        %2651 = vmatpush1.msra.mxu0 0.0
        %2652 = vmatprep.subr.mxu0 0.0
        %2653 = vmatpush1.msra.mxu0 0.0
        %2654 = vmatprep.subr.mxu0 0.0
        %2655 = vmatpush1.msra.mxu0 0.0
        %2656 = vmatprep.subr.mxu0 0.0
        %2657 = vmatpush1.msra.mxu0 0.0
        %2658 = vmatprep.subr.mxu0 0.0
        %2659 = vmatpush1.msra.mxu0 0.0
        %2660 = vmatprep.subr.mxu0 0.0
        %2661 = vmatpush1.msra.mxu0 0.0
        %2662 = vmatprep.subr.mxu0 0.0
        %2663 = vmatpush1.msra.mxu0 0.0
        %2664 = vmatprep.subr.mxu0 0.0
        %2665 = vmatpush1.msra.mxu0 0.0
        %2666 = vmatprep.subr.mxu0 0.0
        %2667 = vmatpush1.msra.mxu0 0.0
        %2668 = vmatprep.subr.mxu0 0.0
        %2669 = vmatpush1.msra.mxu0 0.0
        %2670 = vmatprep.subr.mxu0 0.0
        %2671 = vmatpush1.msra.mxu0 0.0
        %2672 = vmatprep.subr.mxu0 0.0
        %2673 = vmatpush1.msra.mxu0 0.0
        %2674 = vmatprep.subr.mxu0 0.0
        %2675 = vmatpush1.msra.mxu0 %v2642
        %2676 = vmatprep.subr.mxu0 0.0
        %2677 = vmatpush2.msra.mxu0 0.0
        %2678 = vmatprep.subr.mxu0 0.0
        %2679 = vmatpush2.msra.mxu0 0.0
        %2680 = vmatprep.subr.mxu0 0.0
        %2681 = vmatpush2.msra.mxu0 0.0
        %2682 = vmatprep.subr.mxu0 0.0
        %2683 = vmatpush2.msra.mxu0 0.0
        %2684 = vmatprep.subr.mxu0 0.0
        %2685 = vmatpush2.msra.mxu0 0.0
        %2686 = vmatprep.subr.mxu0 0.0
        %2687 = vmatpush2.msra.mxu0 0.0
        %2688 = vmatprep.subr.mxu0 0.0
        %2689 = vmatpush2.msra.mxu0 0.0
        %2690 = vmatprep.subr.mxu0 0.0
        %2691 = vmatpush2.msra.mxu0 0.0
        %2692 = vmatprep.subr.mxu0 0.0
        %2693 = vmatpush2.msra.mxu0 0.0
        %2694 = vmatprep.subr.mxu0 0.0
        %2695 = vmatpush2.msra.mxu0 0.0
        %2696 = vmatprep.subr.mxu0 0.0
        %2697 = vmatpush2.msra.mxu0 0.0
        %2698 = vmatprep.subr.mxu0 0.0
        %2699 = vmatpush2.msra.mxu0 0.0
        %2700 = vmatprep.subr.mxu0 0.0
        %2701 = vmatpush2.msra.mxu0 0.0
        %2702 = vmatprep.subr.mxu0 0.0
        %2703 = vmatpush2.msra.mxu0 0.0
        %2704 = vmatprep.subr.mxu0 0.0
        %2705 = vmatpush2.msra.mxu0 0.0
        %2706 = vmatprep.subr.mxu0 0.0
        %2707 = vmatpush2.msra.mxu0 0.0
        %2708 = vmatprep.mubr.f32.mxu0 0.0
        %2709 = vmatmul.mubr.f32.gmra.mxu0 %v2380
        %v2710 = vpop.f32.mrf.mxu0
        %v2711 = vadd.f32 0.0, %v2710
        %v2712 = vpop.f32.mrf.mxu0
        %2713 = vdwg.mxu0
        %2714 = vmatprep.subr.mxu0 0.0
        %2715 = vmatpush1.msra.mxu0 0.0
        %2716 = vmatprep.subr.mxu0 0.0
        %2717 = vmatpush1.msra.mxu0 0.0
        %2718 = vmatprep.subr.mxu0 0.0
        %2719 = vmatpush1.msra.mxu0 0.0
        %2720 = vmatprep.subr.mxu0 0.0
        %2721 = vmatpush1.msra.mxu0 0.0
        %2722 = vmatprep.subr.mxu0 0.0
        %2723 = vmatpush1.msra.mxu0 0.0
        %2724 = vmatprep.subr.mxu0 0.0
        %2725 = vmatpush1.msra.mxu0 0.0
        %2726 = vmatprep.subr.mxu0 0.0
        %2727 = vmatpush1.msra.mxu0 0.0
        %2728 = vmatprep.subr.mxu0 0.0
        %2729 = vmatpush1.msra.mxu0 0.0
        %2730 = vmatprep.subr.mxu0 0.0
        %2731 = vmatpush1.msra.mxu0 0.0
        %2732 = vmatprep.subr.mxu0 0.0
        %2733 = vmatpush1.msra.mxu0 0.0
        %2734 = vmatprep.subr.mxu0 0.0
        %2735 = vmatpush1.msra.mxu0 0.0
        %2736 = vmatprep.subr.mxu0 0.0
        %2737 = vmatpush1.msra.mxu0 0.0
        %2738 = vmatprep.subr.mxu0 0.0
        %2739 = vmatpush1.msra.mxu0 0.0
        %2740 = vmatprep.subr.mxu0 0.0
        %2741 = vmatpush1.msra.mxu0 0.0
        %2742 = vmatprep.subr.mxu0 0.0
        %2743 = vmatpush1.msra.mxu0 0.0
        %2744 = vmatprep.subr.mxu0 0.0
        %2745 = vmatpush1.msra.mxu0 %v2642
        %2746 = vmatprep.subr.mxu0 0.0
        %2747 = vmatpush2.msra.mxu0 0.0
        %2748 = vmatprep.subr.mxu0 0.0
        %2749 = vmatpush2.msra.mxu0 0.0
        %2750 = vmatprep.subr.mxu0 0.0
        %2751 = vmatpush2.msra.mxu0 0.0
        %2752 = vmatprep.subr.mxu0 0.0
        %2753 = vmatpush2.msra.mxu0 0.0
        %2754 = vmatprep.subr.mxu0 0.0
        %2755 = vmatpush2.msra.mxu0 0.0
        %2756 = vmatprep.subr.mxu0 0.0
        %2757 = vmatpush2.msra.mxu0 0.0
        %2758 = vmatprep.subr.mxu0 0.0
        %2759 = vmatpush2.msra.mxu0 0.0
        %2760 = vmatprep.subr.mxu0 0.0
        %2761 = vmatpush2.msra.mxu0 0.0
        %2762 = vmatprep.subr.mxu0 0.0
        %2763 = vmatpush2.msra.mxu0 0.0
        %2764 = vmatprep.subr.mxu0 0.0
        %2765 = vmatpush2.msra.mxu0 0.0
        %2766 = vmatprep.subr.mxu0 0.0
        %2767 = vmatpush2.msra.mxu0 0.0
        %2768 = vmatprep.subr.mxu0 0.0
        %2769 = vmatpush2.msra.mxu0 0.0
        %2770 = vmatprep.subr.mxu0 0.0
        %2771 = vmatpush2.msra.mxu0 0.0
        %2772 = vmatprep.subr.mxu0 0.0
        %2773 = vmatpush2.msra.mxu0 0.0
        %2774 = vmatprep.subr.mxu0 0.0
        %2775 = vmatpush2.msra.mxu0 0.0
        %2776 = vmatprep.subr.mxu0 0.0
        %2777 = vmatpush2.msra.mxu0 0.0
        %2778 = vmatprep.mubr.f32.mxu0 0.0
        %2779 = vmatmul.mubr.f32.gmra.mxu0 %v2456
        %v2780 = vpop.f32.mrf.mxu0
        %v2781 = vadd.f32 0.0, %v2780
        %v2782 = vpop.f32.mrf.mxu0
        %2783 = vdwg.mxu0
        %2784 = vrot.lane.b32.xlu0 %v2634, 8
        %v2785 = vpop.permute.xlu0 %2784
        %2788 = vrot.lane.b32.xlu0 %v2781, 16
        %v2789 = vpop.permute.xlu0 %2788
        %v2791 = vsel %vm1012, %v2711, %v2785
        %v2792 = vsel %vm548, %v2791, %v2789
        %v2794 = vlaneseq
        %v2795 = vshrl.u32 %v2794, 7
        %v2796 = vsub.s32 0, %v2795
        %v2797 = vrot.slane %v2640, %v2796
        %v2800 = vsel %vm1023, %v2792, 0
        %2802 = vmatprep.subr.mxu0 0.0
        %2803 = vmatpush1.msra.mxu0 0.0
        %2804 = vmatprep.subr.mxu0 0.0
        %2805 = vmatpush1.msra.mxu0 0.0
        %2806 = vmatprep.subr.mxu0 0.0
        %2807 = vmatpush1.msra.mxu0 0.0
        %2808 = vmatprep.subr.mxu0 0.0
        %2809 = vmatpush1.msra.mxu0 0.0
        %2810 = vmatprep.subr.mxu0 0.0
        %2811 = vmatpush1.msra.mxu0 0.0
        %2812 = vmatprep.subr.mxu0 0.0
        %2813 = vmatpush1.msra.mxu0 0.0
        %2814 = vmatprep.subr.mxu0 0.0
        %2815 = vmatpush1.msra.mxu0 0.0
        %2816 = vmatprep.subr.mxu0 0.0
        %2817 = vmatpush1.msra.mxu0 0.0
        %2818 = vmatprep.subr.mxu0 0.0
        %2819 = vmatpush1.msra.mxu0 0.0
        %2820 = vmatprep.subr.mxu0 0.0
        %2821 = vmatpush1.msra.mxu0 0.0
        %2822 = vmatprep.subr.mxu0 0.0
        %2823 = vmatpush1.msra.mxu0 0.0
        %2824 = vmatprep.subr.mxu0 0.0
        %2825 = vmatpush1.msra.mxu0 0.0
        %2826 = vmatprep.subr.mxu0 0.0
        %2827 = vmatpush1.msra.mxu0 0.0
        %2828 = vmatprep.subr.mxu0 0.0
        %2829 = vmatpush1.msra.mxu0 %v2638
        %2830 = vmatprep.subr.mxu0 0.0
        %2831 = vmatpush1.msra.mxu0 %v2637
        %2832 = vmatprep.subr.mxu0 0.0
        %2833 = vmatpush1.msra.mxu0 %v2636
        %2834 = vmatprep.subr.mxu0 0.0
        %2835 = vmatpush2.msra.mxu0 0.0
        %2836 = vmatprep.subr.mxu0 0.0
        %2837 = vmatpush2.msra.mxu0 0.0
        %2838 = vmatprep.subr.mxu0 0.0
        %2839 = vmatpush2.msra.mxu0 0.0
        %2840 = vmatprep.subr.mxu0 0.0
        %2841 = vmatpush2.msra.mxu0 0.0
        %2842 = vmatprep.subr.mxu0 0.0
        %2843 = vmatpush2.msra.mxu0 0.0
        %2844 = vmatprep.subr.mxu0 0.0
        %2845 = vmatpush2.msra.mxu0 0.0
        %2846 = vmatprep.subr.mxu0 0.0
        %2847 = vmatpush2.msra.mxu0 0.0
        %2848 = vmatprep.subr.mxu0 0.0
        %2849 = vmatpush2.msra.mxu0 0.0
        %2850 = vmatprep.subr.mxu0 0.0
        %2851 = vmatpush2.msra.mxu0 0.0
        %2852 = vmatprep.subr.mxu0 0.0
        %2853 = vmatpush2.msra.mxu0 0.0
        %2854 = vmatprep.subr.mxu0 0.0
        %2855 = vmatpush2.msra.mxu0 0.0
        %2856 = vmatprep.subr.mxu0 0.0
        %2857 = vmatpush2.msra.mxu0 0.0
        %2858 = vmatprep.subr.mxu0 0.0
        %2859 = vmatpush2.msra.mxu0 0.0
        %2860 = vmatprep.subr.mxu0 0.0
        %2861 = vmatpush2.msra.mxu0 0.0
        %2862 = vmatprep.subr.mxu0 0.0
        %2863 = vmatpush2.msra.mxu0 0.0
        %2864 = vmatprep.subr.mxu0 0.0
        %2865 = vmatpush2.msra.mxu0 0.0
        %2866 = vmatprep.mubr.f32.mxu0 0.0
        %2867 = vmatmul.mubr.f32.gmra.mxu0 %v2800
        %v2868 = vpop.f32.mrf.mxu0
        %v2869 = vadd.f32 %v2797, %v2868
        %v2870 = vpop.f32.mrf.mxu0
        %2871 = vdwg.mxu0
        %v2872 = vadd.f32 %v2869, %v2353
        %v2873 = vsel %vm2379, %v1393, 0
        %v2876 = vsel %vm2382, %v2872, 0
        %2878 = vmatprep.subr.mxu0 0.0
        %2879 = vmatpush1.msra.mxu0 0.0
        %2880 = vmatprep.subr.mxu0 0.0
        %2881 = vmatpush1.msra.mxu0 0.0
        %2882 = vmatprep.subr.mxu0 0.0
        %2883 = vmatpush1.msra.mxu0 0.0
        %2884 = vmatprep.subr.mxu0 0.0
        %2885 = vmatpush1.msra.mxu0 0.0
        %2886 = vmatprep.subr.mxu0 0.0
        %2887 = vmatpush1.msra.mxu0 0.0
        %2888 = vmatprep.subr.mxu0 0.0
        %2889 = vmatpush1.msra.mxu0 0.0
        %2890 = vmatprep.subr.mxu0 0.0
        %2891 = vmatpush1.msra.mxu0 0.0
        %2892 = vmatprep.subr.mxu0 0.0
        %2893 = vmatpush1.msra.mxu0 0.0
        %2894 = vmatprep.subr.mxu0 0.0
        %2895 = vmatpush1.msra.mxu0 0.0
        %2896 = vmatprep.subr.mxu0 0.0
        %2897 = vmatpush1.msra.mxu0 0.0
        %2898 = vmatprep.subr.mxu0 0.0
        %2899 = vmatpush1.msra.mxu0 0.0
        %2900 = vmatprep.subr.mxu0 0.0
        %2901 = vmatpush1.msra.mxu0 0.0
        %2902 = vmatprep.subr.mxu0 0.0
        %2903 = vmatpush1.msra.mxu0 0.0
        %2904 = vmatprep.subr.mxu0 0.0
        %2905 = vmatpush1.msra.mxu0 0.0
        %2906 = vmatprep.subr.mxu0 0.0
        %2907 = vmatpush1.msra.mxu0 0.0
        %2908 = vmatprep.subr.mxu0 0.0
        %2909 = vmatpush1.msra.mxu0 %v2876
        %2910 = vmatprep.subr.mxu0 0.0
        %2911 = vmatpush2.msra.mxu0 0.0
        %2912 = vmatprep.subr.mxu0 0.0
        %2913 = vmatpush2.msra.mxu0 0.0
        %2914 = vmatprep.subr.mxu0 0.0
        %2915 = vmatpush2.msra.mxu0 0.0
        %2916 = vmatprep.subr.mxu0 0.0
        %2917 = vmatpush2.msra.mxu0 0.0
        %2918 = vmatprep.subr.mxu0 0.0
        %2919 = vmatpush2.msra.mxu0 0.0
        %2920 = vmatprep.subr.mxu0 0.0
        %2921 = vmatpush2.msra.mxu0 0.0
        %2922 = vmatprep.subr.mxu0 0.0
        %2923 = vmatpush2.msra.mxu0 0.0
        %2924 = vmatprep.subr.mxu0 0.0
        %2925 = vmatpush2.msra.mxu0 0.0
        %2926 = vmatprep.subr.mxu0 0.0
        %2927 = vmatpush2.msra.mxu0 0.0
        %2928 = vmatprep.subr.mxu0 0.0
        %2929 = vmatpush2.msra.mxu0 0.0
        %2930 = vmatprep.subr.mxu0 0.0
        %2931 = vmatpush2.msra.mxu0 0.0
        %2932 = vmatprep.subr.mxu0 0.0
        %2933 = vmatpush2.msra.mxu0 0.0
        %2934 = vmatprep.subr.mxu0 0.0
        %2935 = vmatpush2.msra.mxu0 0.0
        %2936 = vmatprep.subr.mxu0 0.0
        %2937 = vmatpush2.msra.mxu0 0.0
        %2938 = vmatprep.subr.mxu0 0.0
        %2939 = vmatpush2.msra.mxu0 0.0
        %2940 = vmatprep.subr.mxu0 0.0
        %2941 = vmatpush2.msra.mxu0 0.0
        %2942 = vmatprep.mubr.f32.mxu0 0.0
        %2943 = vmatmul.mubr.f32.gmra.mxu0 %v2873
        %v2944 = vpop.f32.mrf.mxu0
        %v2945 = vadd.f32 0.0, %v2944
        %v2946 = vpop.f32.mrf.mxu0
        %2947 = vdwg.mxu0
        %v2948 = vsel %vm2379, %v1397, 0
        %2950 = vmatprep.subr.mxu0 0.0
        %2951 = vmatpush1.msra.mxu0 0.0
        %2952 = vmatprep.subr.mxu0 0.0
        %2953 = vmatpush1.msra.mxu0 0.0
        %2954 = vmatprep.subr.mxu0 0.0
        %2955 = vmatpush1.msra.mxu0 0.0
        %2956 = vmatprep.subr.mxu0 0.0
        %2957 = vmatpush1.msra.mxu0 0.0
        %2958 = vmatprep.subr.mxu0 0.0
        %2959 = vmatpush1.msra.mxu0 0.0
        %2960 = vmatprep.subr.mxu0 0.0
        %2961 = vmatpush1.msra.mxu0 0.0
        %2962 = vmatprep.subr.mxu0 0.0
        %2963 = vmatpush1.msra.mxu0 0.0
        %2964 = vmatprep.subr.mxu0 0.0
        %2965 = vmatpush1.msra.mxu0 0.0
        %2966 = vmatprep.subr.mxu0 0.0
        %2967 = vmatpush1.msra.mxu0 0.0
        %2968 = vmatprep.subr.mxu0 0.0
        %2969 = vmatpush1.msra.mxu0 0.0
        %2970 = vmatprep.subr.mxu0 0.0
        %2971 = vmatpush1.msra.mxu0 0.0
        %2972 = vmatprep.subr.mxu0 0.0
        %2973 = vmatpush1.msra.mxu0 0.0
        %2974 = vmatprep.subr.mxu0 0.0
        %2975 = vmatpush1.msra.mxu0 0.0
        %2976 = vmatprep.subr.mxu0 0.0
        %2977 = vmatpush1.msra.mxu0 0.0
        %2978 = vmatprep.subr.mxu0 0.0
        %2979 = vmatpush1.msra.mxu0 0.0
        %2980 = vmatprep.subr.mxu0 0.0
        %2981 = vmatpush1.msra.mxu0 %v2876
        %2982 = vmatprep.subr.mxu0 0.0
        %2983 = vmatpush2.msra.mxu0 0.0
        %2984 = vmatprep.subr.mxu0 0.0
        %2985 = vmatpush2.msra.mxu0 0.0
        %2986 = vmatprep.subr.mxu0 0.0
        %2987 = vmatpush2.msra.mxu0 0.0
        %2988 = vmatprep.subr.mxu0 0.0
        %2989 = vmatpush2.msra.mxu0 0.0
        %2990 = vmatprep.subr.mxu0 0.0
        %2991 = vmatpush2.msra.mxu0 0.0
        %2992 = vmatprep.subr.mxu0 0.0
        %2993 = vmatpush2.msra.mxu0 0.0
        %2994 = vmatprep.subr.mxu0 0.0
        %2995 = vmatpush2.msra.mxu0 0.0
        %2996 = vmatprep.subr.mxu0 0.0
        %2997 = vmatpush2.msra.mxu0 0.0
        %2998 = vmatprep.subr.mxu0 0.0
        %2999 = vmatpush2.msra.mxu0 0.0
        %3000 = vmatprep.subr.mxu0 0.0
        %3001 = vmatpush2.msra.mxu0 0.0
        %3002 = vmatprep.subr.mxu0 0.0
        %3003 = vmatpush2.msra.mxu0 0.0
        %3004 = vmatprep.subr.mxu0 0.0
        %3005 = vmatpush2.msra.mxu0 0.0
        %3006 = vmatprep.subr.mxu0 0.0
        %3007 = vmatpush2.msra.mxu0 0.0
        %3008 = vmatprep.subr.mxu0 0.0
        %3009 = vmatpush2.msra.mxu0 0.0
        %3010 = vmatprep.subr.mxu0 0.0
        %3011 = vmatpush2.msra.mxu0 0.0
        %3012 = vmatprep.subr.mxu0 0.0
        %3013 = vmatpush2.msra.mxu0 0.0
        %3014 = vmatprep.mubr.f32.mxu0 0.0
        %3015 = vmatmul.mubr.f32.gmra.mxu0 %v2948
        %v3016 = vpop.f32.mrf.mxu0
        %v3017 = vadd.f32 0.0, %v3016
        %v3018 = vpop.f32.mrf.mxu0
        %3019 = vdwg.mxu0
        %v3020 = vsel %vm2379, %v1401, 0
        %3022 = vmatprep.subr.mxu0 0.0
        %3023 = vmatpush1.msra.mxu0 0.0
        %3024 = vmatprep.subr.mxu0 0.0
        %3025 = vmatpush1.msra.mxu0 0.0
        %3026 = vmatprep.subr.mxu0 0.0
        %3027 = vmatpush1.msra.mxu0 0.0
        %3028 = vmatprep.subr.mxu0 0.0
        %3029 = vmatpush1.msra.mxu0 0.0
        %3030 = vmatprep.subr.mxu0 0.0
        %3031 = vmatpush1.msra.mxu0 0.0
        %3032 = vmatprep.subr.mxu0 0.0
        %3033 = vmatpush1.msra.mxu0 0.0
        %3034 = vmatprep.subr.mxu0 0.0
        %3035 = vmatpush1.msra.mxu0 0.0
        %3036 = vmatprep.subr.mxu0 0.0
        %3037 = vmatpush1.msra.mxu0 0.0
        %3038 = vmatprep.subr.mxu0 0.0
        %3039 = vmatpush1.msra.mxu0 0.0
        %3040 = vmatprep.subr.mxu0 0.0
        %3041 = vmatpush1.msra.mxu0 0.0
        %3042 = vmatprep.subr.mxu0 0.0
        %3043 = vmatpush1.msra.mxu0 0.0
        %3044 = vmatprep.subr.mxu0 0.0
        %3045 = vmatpush1.msra.mxu0 0.0
        %3046 = vmatprep.subr.mxu0 0.0
        %3047 = vmatpush1.msra.mxu0 0.0
        %3048 = vmatprep.subr.mxu0 0.0
        %3049 = vmatpush1.msra.mxu0 0.0
        %3050 = vmatprep.subr.mxu0 0.0
        %3051 = vmatpush1.msra.mxu0 0.0
        %3052 = vmatprep.subr.mxu0 0.0
        %3053 = vmatpush1.msra.mxu0 %v2876
        %3054 = vmatprep.subr.mxu0 0.0
        %3055 = vmatpush2.msra.mxu0 0.0
        %3056 = vmatprep.subr.mxu0 0.0
        %3057 = vmatpush2.msra.mxu0 0.0
        %3058 = vmatprep.subr.mxu0 0.0
        %3059 = vmatpush2.msra.mxu0 0.0
        %3060 = vmatprep.subr.mxu0 0.0
        %3061 = vmatpush2.msra.mxu0 0.0
        %3062 = vmatprep.subr.mxu0 0.0
        %3063 = vmatpush2.msra.mxu0 0.0
        %3064 = vmatprep.subr.mxu0 0.0
        %3065 = vmatpush2.msra.mxu0 0.0
        %3066 = vmatprep.subr.mxu0 0.0
        %3067 = vmatpush2.msra.mxu0 0.0
        %3068 = vmatprep.subr.mxu0 0.0
        %3069 = vmatpush2.msra.mxu0 0.0
        %3070 = vmatprep.subr.mxu0 0.0
        %3071 = vmatpush2.msra.mxu0 0.0
        %3072 = vmatprep.subr.mxu0 0.0
        %3073 = vmatpush2.msra.mxu0 0.0
        %3074 = vmatprep.subr.mxu0 0.0
        %3075 = vmatpush2.msra.mxu0 0.0
        %3076 = vmatprep.subr.mxu0 0.0
        %3077 = vmatpush2.msra.mxu0 0.0
        %3078 = vmatprep.subr.mxu0 0.0
        %3079 = vmatpush2.msra.mxu0 0.0
        %3080 = vmatprep.subr.mxu0 0.0
        %3081 = vmatpush2.msra.mxu0 0.0
        %3082 = vmatprep.subr.mxu0 0.0
        %3083 = vmatpush2.msra.mxu0 0.0
        %3084 = vmatprep.subr.mxu0 0.0
        %3085 = vmatpush2.msra.mxu0 0.0
        %3086 = vmatprep.mubr.f32.mxu0 0.0
        %3087 = vmatmul.mubr.f32.gmra.mxu0 %v3020
        %v3088 = vpop.f32.mrf.mxu0
        %v3089 = vadd.f32 0.0, %v3088
        %v3090 = vpop.f32.mrf.mxu0
        %3091 = vdwg.mxu0
        %v3092 = vmax.f32 %v2945, %v3017
        %v3093 = vmax.f32 %v3092, %v3089
        %s3094 = scalar_lea.vmem %s4, 6
        %v3095 = vld [vmem:[%s3094] sm:$0x1]
        %v3097 = vlaneseq
        %v3098 = vshrl.u32 %v3097, 7
        %v3099 = vsub.s32 0, %v3098
        %v3100 = vrot.slane %v3095, %v3099
        %v3102 = vmul.f32 %v3093, %v3100
        %s3103 = scalar_lea.vmem %s5, 6
        %v3104 = vld [vmem:[%s3103] sm:$0x1]
        %v3106 = vlaneseq
        %v3107 = vshrl.u32 %v3106, 7
        %v3108 = vsub.s32 0, %v3107
        %v3109 = vrot.slane %v3104, %v3108
        %v3111 = vadd.f32 %v3102, %v3109
        %v3112 = vmax.f32 %v3111, 0.0
        %s3113 = scalar_lea.vmem %s6, 144
        %v3114 = vld [vmem:[%s3113] sm:$0xff]
        %v3115 = vld [vmem:[%s3113 + $0x8] sm:$0xff]
        %v3116 = vld [vmem:[%s3113 + $0x10] sm:$0xff]
        %s3117 = scalar_lea.vmem %s7, 6
        %v3118 = vld [vmem:[%s3117] sm:$0x1]
        %vm3119 = vcmask 15360
        %v3120 = vsel %vm3119, %v531, 0
        %v3123 = vsel %vm443, %v3112, 0
        %3125 = vmatprep.subr.mxu0 0.0
        %3126 = vmatpush1.msra.mxu0 0.0
        %3127 = vmatprep.subr.mxu0 0.0
        %3128 = vmatpush1.msra.mxu0 0.0
        %3129 = vmatprep.subr.mxu0 0.0
        %3130 = vmatpush1.msra.mxu0 0.0
        %3131 = vmatprep.subr.mxu0 0.0
        %3132 = vmatpush1.msra.mxu0 0.0
        %3133 = vmatprep.subr.mxu0 0.0
        %3134 = vmatpush1.msra.mxu0 0.0
        %3135 = vmatprep.subr.mxu0 0.0
        %3136 = vmatpush1.msra.mxu0 0.0
        %3137 = vmatprep.subr.mxu0 0.0
        %3138 = vmatpush1.msra.mxu0 0.0
        %3139 = vmatprep.subr.mxu0 0.0
        %3140 = vmatpush1.msra.mxu0 0.0
        %3141 = vmatprep.subr.mxu0 0.0
        %3142 = vmatpush1.msra.mxu0 0.0
        %3143 = vmatprep.subr.mxu0 0.0
        %3144 = vmatpush1.msra.mxu0 0.0
        %3145 = vmatprep.subr.mxu0 0.0
        %3146 = vmatpush1.msra.mxu0 0.0
        %3147 = vmatprep.subr.mxu0 0.0
        %3148 = vmatpush1.msra.mxu0 0.0
        %3149 = vmatprep.subr.mxu0 0.0
        %3150 = vmatpush1.msra.mxu0 0.0
        %3151 = vmatprep.subr.mxu0 0.0
        %3152 = vmatpush1.msra.mxu0 0.0
        %3153 = vmatprep.subr.mxu0 0.0
        %3154 = vmatpush1.msra.mxu0 0.0
        %3155 = vmatprep.subr.mxu0 0.0
        %3156 = vmatpush1.msra.mxu0 %v3123
        %3157 = vmatprep.subr.mxu0 0.0
        %3158 = vmatpush2.msra.mxu0 0.0
        %3159 = vmatprep.subr.mxu0 0.0
        %3160 = vmatpush2.msra.mxu0 0.0
        %3161 = vmatprep.subr.mxu0 0.0
        %3162 = vmatpush2.msra.mxu0 0.0
        %3163 = vmatprep.subr.mxu0 0.0
        %3164 = vmatpush2.msra.mxu0 0.0
        %3165 = vmatprep.subr.mxu0 0.0
        %3166 = vmatpush2.msra.mxu0 0.0
        %3167 = vmatprep.subr.mxu0 0.0
        %3168 = vmatpush2.msra.mxu0 0.0
        %3169 = vmatprep.subr.mxu0 0.0
        %3170 = vmatpush2.msra.mxu0 0.0
        %3171 = vmatprep.subr.mxu0 0.0
        %3172 = vmatpush2.msra.mxu0 0.0
        %3173 = vmatprep.subr.mxu0 0.0
        %3174 = vmatpush2.msra.mxu0 0.0
        %3175 = vmatprep.subr.mxu0 0.0
        %3176 = vmatpush2.msra.mxu0 0.0
        %3177 = vmatprep.subr.mxu0 0.0
        %3178 = vmatpush2.msra.mxu0 0.0
        %3179 = vmatprep.subr.mxu0 0.0
        %3180 = vmatpush2.msra.mxu0 0.0
        %3181 = vmatprep.subr.mxu0 0.0
        %3182 = vmatpush2.msra.mxu0 0.0
        %3183 = vmatprep.subr.mxu0 0.0
        %3184 = vmatpush2.msra.mxu0 0.0
        %3185 = vmatprep.subr.mxu0 0.0
        %3186 = vmatpush2.msra.mxu0 0.0
        %3187 = vmatprep.subr.mxu0 0.0
        %3188 = vmatpush2.msra.mxu0 0.0
        %3189 = vmatprep.mubr.f32.mxu0 0.0
        %3190 = vmatmul.mubr.f32.gmra.mxu0 %v3120
        %v3191 = vpop.f32.mrf.mxu0
        %v3192 = vadd.f32 0.0, %v3191
        %v3193 = vpop.f32.mrf.mxu0
        %3194 = vdwg.mxu0
        %v3195 = vsel %vm3119, %v539, 0
        %3197 = vmatprep.subr.mxu0 0.0
        %3198 = vmatpush1.msra.mxu0 0.0
        %3199 = vmatprep.subr.mxu0 0.0
        %3200 = vmatpush1.msra.mxu0 0.0
        %3201 = vmatprep.subr.mxu0 0.0
        %3202 = vmatpush1.msra.mxu0 0.0
        %3203 = vmatprep.subr.mxu0 0.0
        %3204 = vmatpush1.msra.mxu0 0.0
        %3205 = vmatprep.subr.mxu0 0.0
        %3206 = vmatpush1.msra.mxu0 0.0
        %3207 = vmatprep.subr.mxu0 0.0
        %3208 = vmatpush1.msra.mxu0 0.0
        %3209 = vmatprep.subr.mxu0 0.0
        %3210 = vmatpush1.msra.mxu0 0.0
        %3211 = vmatprep.subr.mxu0 0.0
        %3212 = vmatpush1.msra.mxu0 0.0
        %3213 = vmatprep.subr.mxu0 0.0
        %3214 = vmatpush1.msra.mxu0 0.0
        %3215 = vmatprep.subr.mxu0 0.0
        %3216 = vmatpush1.msra.mxu0 0.0
        %3217 = vmatprep.subr.mxu0 0.0
        %3218 = vmatpush1.msra.mxu0 0.0
        %3219 = vmatprep.subr.mxu0 0.0
        %3220 = vmatpush1.msra.mxu0 0.0
        %3221 = vmatprep.subr.mxu0 0.0
        %3222 = vmatpush1.msra.mxu0 0.0
        %3223 = vmatprep.subr.mxu0 0.0
        %3224 = vmatpush1.msra.mxu0 0.0
        %3225 = vmatprep.subr.mxu0 0.0
        %3226 = vmatpush1.msra.mxu0 0.0
        %3227 = vmatprep.subr.mxu0 0.0
        %3228 = vmatpush1.msra.mxu0 %v3123
        %3229 = vmatprep.subr.mxu0 0.0
        %3230 = vmatpush2.msra.mxu0 0.0
        %3231 = vmatprep.subr.mxu0 0.0
        %3232 = vmatpush2.msra.mxu0 0.0
        %3233 = vmatprep.subr.mxu0 0.0
        %3234 = vmatpush2.msra.mxu0 0.0
        %3235 = vmatprep.subr.mxu0 0.0
        %3236 = vmatpush2.msra.mxu0 0.0
        %3237 = vmatprep.subr.mxu0 0.0
        %3238 = vmatpush2.msra.mxu0 0.0
        %3239 = vmatprep.subr.mxu0 0.0
        %3240 = vmatpush2.msra.mxu0 0.0
        %3241 = vmatprep.subr.mxu0 0.0
        %3242 = vmatpush2.msra.mxu0 0.0
        %3243 = vmatprep.subr.mxu0 0.0
        %3244 = vmatpush2.msra.mxu0 0.0
        %3245 = vmatprep.subr.mxu0 0.0
        %3246 = vmatpush2.msra.mxu0 0.0
        %3247 = vmatprep.subr.mxu0 0.0
        %3248 = vmatpush2.msra.mxu0 0.0
        %3249 = vmatprep.subr.mxu0 0.0
        %3250 = vmatpush2.msra.mxu0 0.0
        %3251 = vmatprep.subr.mxu0 0.0
        %3252 = vmatpush2.msra.mxu0 0.0
        %3253 = vmatprep.subr.mxu0 0.0
        %3254 = vmatpush2.msra.mxu0 0.0
        %3255 = vmatprep.subr.mxu0 0.0
        %3256 = vmatpush2.msra.mxu0 0.0
        %3257 = vmatprep.subr.mxu0 0.0
        %3258 = vmatpush2.msra.mxu0 0.0
        %3259 = vmatprep.subr.mxu0 0.0
        %3260 = vmatpush2.msra.mxu0 0.0
        %3261 = vmatprep.mubr.f32.mxu0 0.0
        %3262 = vmatmul.mubr.f32.gmra.mxu0 %v3195
        %v3263 = vpop.f32.mrf.mxu0
        %v3264 = vadd.f32 0.0, %v3263
        %v3265 = vpop.f32.mrf.mxu0
        %3266 = vdwg.mxu0
        %3267 = vrot.lane.b32.xlu0 %v3112, 8
        %v3268 = vpop.permute.xlu0 %3267
        %3271 = vrot.lane.b32.xlu0 %v3264, 16
        %v3272 = vpop.permute.xlu0 %3271
        %v3274 = vsel %vm1012, %v3192, %v3268
        %v3275 = vsel %vm548, %v3274, %v3272
        %v3277 = vlaneseq
        %v3278 = vshrl.u32 %v3277, 7
        %v3279 = vsub.s32 0, %v3278
        %v3280 = vrot.slane %v3118, %v3279
        %v3283 = vsel %vm1023, %v3275, 0
        %3285 = vmatprep.subr.mxu0 0.0
        %3286 = vmatpush1.msra.mxu0 0.0
        %3287 = vmatprep.subr.mxu0 0.0
        %3288 = vmatpush1.msra.mxu0 0.0
        %3289 = vmatprep.subr.mxu0 0.0
        %3290 = vmatpush1.msra.mxu0 0.0
        %3291 = vmatprep.subr.mxu0 0.0
        %3292 = vmatpush1.msra.mxu0 0.0
        %3293 = vmatprep.subr.mxu0 0.0
        %3294 = vmatpush1.msra.mxu0 0.0
        %3295 = vmatprep.subr.mxu0 0.0
        %3296 = vmatpush1.msra.mxu0 0.0
        %3297 = vmatprep.subr.mxu0 0.0
        %3298 = vmatpush1.msra.mxu0 0.0
        %3299 = vmatprep.subr.mxu0 0.0
        %3300 = vmatpush1.msra.mxu0 0.0
        %3301 = vmatprep.subr.mxu0 0.0
        %3302 = vmatpush1.msra.mxu0 0.0
        %3303 = vmatprep.subr.mxu0 0.0
        %3304 = vmatpush1.msra.mxu0 0.0
        %3305 = vmatprep.subr.mxu0 0.0
        %3306 = vmatpush1.msra.mxu0 0.0
        %3307 = vmatprep.subr.mxu0 0.0
        %3308 = vmatpush1.msra.mxu0 0.0
        %3309 = vmatprep.subr.mxu0 0.0
        %3310 = vmatpush1.msra.mxu0 0.0
        %3311 = vmatprep.subr.mxu0 0.0
        %3312 = vmatpush1.msra.mxu0 %v3116
        %3313 = vmatprep.subr.mxu0 0.0
        %3314 = vmatpush1.msra.mxu0 %v3115
        %3315 = vmatprep.subr.mxu0 0.0
        %3316 = vmatpush1.msra.mxu0 %v3114
        %3317 = vmatprep.subr.mxu0 0.0
        %3318 = vmatpush2.msra.mxu0 0.0
        %3319 = vmatprep.subr.mxu0 0.0
        %3320 = vmatpush2.msra.mxu0 0.0
        %3321 = vmatprep.subr.mxu0 0.0
        %3322 = vmatpush2.msra.mxu0 0.0
        %3323 = vmatprep.subr.mxu0 0.0
        %3324 = vmatpush2.msra.mxu0 0.0
        %3325 = vmatprep.subr.mxu0 0.0
        %3326 = vmatpush2.msra.mxu0 0.0
        %3327 = vmatprep.subr.mxu0 0.0
        %3328 = vmatpush2.msra.mxu0 0.0
        %3329 = vmatprep.subr.mxu0 0.0
        %3330 = vmatpush2.msra.mxu0 0.0
        %3331 = vmatprep.subr.mxu0 0.0
        %3332 = vmatpush2.msra.mxu0 0.0
        %3333 = vmatprep.subr.mxu0 0.0
        %3334 = vmatpush2.msra.mxu0 0.0
        %3335 = vmatprep.subr.mxu0 0.0
        %3336 = vmatpush2.msra.mxu0 0.0
        %3337 = vmatprep.subr.mxu0 0.0
        %3338 = vmatpush2.msra.mxu0 0.0
        %3339 = vmatprep.subr.mxu0 0.0
        %3340 = vmatpush2.msra.mxu0 0.0
        %3341 = vmatprep.subr.mxu0 0.0
        %3342 = vmatpush2.msra.mxu0 0.0
        %3343 = vmatprep.subr.mxu0 0.0
        %3344 = vmatpush2.msra.mxu0 0.0
        %3345 = vmatprep.subr.mxu0 0.0
        %3346 = vmatpush2.msra.mxu0 0.0
        %3347 = vmatprep.subr.mxu0 0.0
        %3348 = vmatpush2.msra.mxu0 0.0
        %3349 = vmatprep.mubr.f32.mxu0 0.0
        %3350 = vmatmul.mubr.f32.gmra.mxu0 %v3283
        %v3351 = vpop.f32.mrf.mxu0
        %v3352 = vadd.f32 %v3280, %v3351
        %v3353 = vpop.f32.mrf.mxu0
        %3354 = vdwg.mxu0
        %s3355 = scalar_lea.vmem %s4, 7
        %v3356 = vld [vmem:[%s3355] sm:$0x1]
        %v3358 = vlaneseq
        %v3359 = vshrl.u32 %v3358, 7
        %v3360 = vsub.s32 0, %v3359
        %v3361 = vrot.slane %v3356, %v3360
        %v3363 = vmul.f32 %v3352, %v3361
        %s3364 = scalar_lea.vmem %s5, 7
        %v3365 = vld [vmem:[%s3364] sm:$0x1]
        %v3367 = vlaneseq
        %v3368 = vshrl.u32 %v3367, 7
        %v3369 = vsub.s32 0, %v3368
        %v3370 = vrot.slane %v3365, %v3369
        %v3372 = vadd.f32 %v3363, %v3370
        %v3373 = vmax.f32 %v3372, 0.0
        %s3374 = scalar_lea.vmem %s6, 168
        %v3375 = vld [vmem:[%s3374] sm:$0xff]
        %v3376 = vld [vmem:[%s3374 + $0x8] sm:$0xff]
        %v3377 = vld [vmem:[%s3374 + $0x10] sm:$0xff]
        %s3378 = scalar_lea.vmem %s7, 7
        %v3379 = vld [vmem:[%s3378] sm:$0x1]
        %v3381 = vsel %vm443, %v3373, 0
        %3383 = vmatprep.subr.mxu0 0.0
        %3384 = vmatpush1.msra.mxu0 0.0
        %3385 = vmatprep.subr.mxu0 0.0
        %3386 = vmatpush1.msra.mxu0 0.0
        %3387 = vmatprep.subr.mxu0 0.0
        %3388 = vmatpush1.msra.mxu0 0.0
        %3389 = vmatprep.subr.mxu0 0.0
        %3390 = vmatpush1.msra.mxu0 0.0
        %3391 = vmatprep.subr.mxu0 0.0
        %3392 = vmatpush1.msra.mxu0 0.0
        %3393 = vmatprep.subr.mxu0 0.0
        %3394 = vmatpush1.msra.mxu0 0.0
        %3395 = vmatprep.subr.mxu0 0.0
        %3396 = vmatpush1.msra.mxu0 0.0
        %3397 = vmatprep.subr.mxu0 0.0
        %3398 = vmatpush1.msra.mxu0 0.0
        %3399 = vmatprep.subr.mxu0 0.0
        %3400 = vmatpush1.msra.mxu0 0.0
        %3401 = vmatprep.subr.mxu0 0.0
        %3402 = vmatpush1.msra.mxu0 0.0
        %3403 = vmatprep.subr.mxu0 0.0
        %3404 = vmatpush1.msra.mxu0 0.0
        %3405 = vmatprep.subr.mxu0 0.0
        %3406 = vmatpush1.msra.mxu0 0.0
        %3407 = vmatprep.subr.mxu0 0.0
        %3408 = vmatpush1.msra.mxu0 0.0
        %3409 = vmatprep.subr.mxu0 0.0
        %3410 = vmatpush1.msra.mxu0 0.0
        %3411 = vmatprep.subr.mxu0 0.0
        %3412 = vmatpush1.msra.mxu0 0.0
        %3413 = vmatprep.subr.mxu0 0.0
        %3414 = vmatpush1.msra.mxu0 %v3381
        %3415 = vmatprep.subr.mxu0 0.0
        %3416 = vmatpush2.msra.mxu0 0.0
        %3417 = vmatprep.subr.mxu0 0.0
        %3418 = vmatpush2.msra.mxu0 0.0
        %3419 = vmatprep.subr.mxu0 0.0
        %3420 = vmatpush2.msra.mxu0 0.0
        %3421 = vmatprep.subr.mxu0 0.0
        %3422 = vmatpush2.msra.mxu0 0.0
        %3423 = vmatprep.subr.mxu0 0.0
        %3424 = vmatpush2.msra.mxu0 0.0
        %3425 = vmatprep.subr.mxu0 0.0
        %3426 = vmatpush2.msra.mxu0 0.0
        %3427 = vmatprep.subr.mxu0 0.0
        %3428 = vmatpush2.msra.mxu0 0.0
        %3429 = vmatprep.subr.mxu0 0.0
        %3430 = vmatpush2.msra.mxu0 0.0
        %3431 = vmatprep.subr.mxu0 0.0
        %3432 = vmatpush2.msra.mxu0 0.0
        %3433 = vmatprep.subr.mxu0 0.0
        %3434 = vmatpush2.msra.mxu0 0.0
        %3435 = vmatprep.subr.mxu0 0.0
        %3436 = vmatpush2.msra.mxu0 0.0
        %3437 = vmatprep.subr.mxu0 0.0
        %3438 = vmatpush2.msra.mxu0 0.0
        %3439 = vmatprep.subr.mxu0 0.0
        %3440 = vmatpush2.msra.mxu0 0.0
        %3441 = vmatprep.subr.mxu0 0.0
        %3442 = vmatpush2.msra.mxu0 0.0
        %3443 = vmatprep.subr.mxu0 0.0
        %3444 = vmatpush2.msra.mxu0 0.0
        %3445 = vmatprep.subr.mxu0 0.0
        %3446 = vmatpush2.msra.mxu0 0.0
        %3447 = vmatprep.mubr.f32.mxu0 0.0
        %3448 = vmatmul.mubr.f32.gmra.mxu0 %v3120
        %v3449 = vpop.f32.mrf.mxu0
        %v3450 = vadd.f32 0.0, %v3449
        %v3451 = vpop.f32.mrf.mxu0
        %3452 = vdwg.mxu0
        %3453 = vmatprep.subr.mxu0 0.0
        %3454 = vmatpush1.msra.mxu0 0.0
        %3455 = vmatprep.subr.mxu0 0.0
        %3456 = vmatpush1.msra.mxu0 0.0
        %3457 = vmatprep.subr.mxu0 0.0
        %3458 = vmatpush1.msra.mxu0 0.0
        %3459 = vmatprep.subr.mxu0 0.0
        %3460 = vmatpush1.msra.mxu0 0.0
        %3461 = vmatprep.subr.mxu0 0.0
        %3462 = vmatpush1.msra.mxu0 0.0
        %3463 = vmatprep.subr.mxu0 0.0
        %3464 = vmatpush1.msra.mxu0 0.0
        %3465 = vmatprep.subr.mxu0 0.0
        %3466 = vmatpush1.msra.mxu0 0.0
        %3467 = vmatprep.subr.mxu0 0.0
        %3468 = vmatpush1.msra.mxu0 0.0
        %3469 = vmatprep.subr.mxu0 0.0
        %3470 = vmatpush1.msra.mxu0 0.0
        %3471 = vmatprep.subr.mxu0 0.0
        %3472 = vmatpush1.msra.mxu0 0.0
        %3473 = vmatprep.subr.mxu0 0.0
        %3474 = vmatpush1.msra.mxu0 0.0
        %3475 = vmatprep.subr.mxu0 0.0
        %3476 = vmatpush1.msra.mxu0 0.0
        %3477 = vmatprep.subr.mxu0 0.0
        %3478 = vmatpush1.msra.mxu0 0.0
        %3479 = vmatprep.subr.mxu0 0.0
        %3480 = vmatpush1.msra.mxu0 0.0
        %3481 = vmatprep.subr.mxu0 0.0
        %3482 = vmatpush1.msra.mxu0 0.0
        %3483 = vmatprep.subr.mxu0 0.0
        %3484 = vmatpush1.msra.mxu0 %v3381
        %3485 = vmatprep.subr.mxu0 0.0
        %3486 = vmatpush2.msra.mxu0 0.0
        %3487 = vmatprep.subr.mxu0 0.0
        %3488 = vmatpush2.msra.mxu0 0.0
        %3489 = vmatprep.subr.mxu0 0.0
        %3490 = vmatpush2.msra.mxu0 0.0
        %3491 = vmatprep.subr.mxu0 0.0
        %3492 = vmatpush2.msra.mxu0 0.0
        %3493 = vmatprep.subr.mxu0 0.0
        %3494 = vmatpush2.msra.mxu0 0.0
        %3495 = vmatprep.subr.mxu0 0.0
        %3496 = vmatpush2.msra.mxu0 0.0
        %3497 = vmatprep.subr.mxu0 0.0
        %3498 = vmatpush2.msra.mxu0 0.0
        %3499 = vmatprep.subr.mxu0 0.0
        %3500 = vmatpush2.msra.mxu0 0.0
        %3501 = vmatprep.subr.mxu0 0.0
        %3502 = vmatpush2.msra.mxu0 0.0
        %3503 = vmatprep.subr.mxu0 0.0
        %3504 = vmatpush2.msra.mxu0 0.0
        %3505 = vmatprep.subr.mxu0 0.0
        %3506 = vmatpush2.msra.mxu0 0.0
        %3507 = vmatprep.subr.mxu0 0.0
        %3508 = vmatpush2.msra.mxu0 0.0
        %3509 = vmatprep.subr.mxu0 0.0
        %3510 = vmatpush2.msra.mxu0 0.0
        %3511 = vmatprep.subr.mxu0 0.0
        %3512 = vmatpush2.msra.mxu0 0.0
        %3513 = vmatprep.subr.mxu0 0.0
        %3514 = vmatpush2.msra.mxu0 0.0
        %3515 = vmatprep.subr.mxu0 0.0
        %3516 = vmatpush2.msra.mxu0 0.0
        %3517 = vmatprep.mubr.f32.mxu0 0.0
        %3518 = vmatmul.mubr.f32.gmra.mxu0 %v3195
        %v3519 = vpop.f32.mrf.mxu0
        %v3520 = vadd.f32 0.0, %v3519
        %v3521 = vpop.f32.mrf.mxu0
        %3522 = vdwg.mxu0
        %3523 = vrot.lane.b32.xlu0 %v3373, 8
        %v3524 = vpop.permute.xlu0 %3523
        %3527 = vrot.lane.b32.xlu0 %v3520, 16
        %v3528 = vpop.permute.xlu0 %3527
        %v3530 = vsel %vm1012, %v3450, %v3524
        %v3531 = vsel %vm548, %v3530, %v3528
        %v3533 = vlaneseq
        %v3534 = vshrl.u32 %v3533, 7
        %v3535 = vsub.s32 0, %v3534
        %v3536 = vrot.slane %v3379, %v3535
        %v3539 = vsel %vm1023, %v3531, 0
        %3541 = vmatprep.subr.mxu0 0.0
        %3542 = vmatpush1.msra.mxu0 0.0
        %3543 = vmatprep.subr.mxu0 0.0
        %3544 = vmatpush1.msra.mxu0 0.0
        %3545 = vmatprep.subr.mxu0 0.0
        %3546 = vmatpush1.msra.mxu0 0.0
        %3547 = vmatprep.subr.mxu0 0.0
        %3548 = vmatpush1.msra.mxu0 0.0
        %3549 = vmatprep.subr.mxu0 0.0
        %3550 = vmatpush1.msra.mxu0 0.0
        %3551 = vmatprep.subr.mxu0 0.0
        %3552 = vmatpush1.msra.mxu0 0.0
        %3553 = vmatprep.subr.mxu0 0.0
        %3554 = vmatpush1.msra.mxu0 0.0
        %3555 = vmatprep.subr.mxu0 0.0
        %3556 = vmatpush1.msra.mxu0 0.0
        %3557 = vmatprep.subr.mxu0 0.0
        %3558 = vmatpush1.msra.mxu0 0.0
        %3559 = vmatprep.subr.mxu0 0.0
        %3560 = vmatpush1.msra.mxu0 0.0
        %3561 = vmatprep.subr.mxu0 0.0
        %3562 = vmatpush1.msra.mxu0 0.0
        %3563 = vmatprep.subr.mxu0 0.0
        %3564 = vmatpush1.msra.mxu0 0.0
        %3565 = vmatprep.subr.mxu0 0.0
        %3566 = vmatpush1.msra.mxu0 0.0
        %3567 = vmatprep.subr.mxu0 0.0
        %3568 = vmatpush1.msra.mxu0 %v3377
        %3569 = vmatprep.subr.mxu0 0.0
        %3570 = vmatpush1.msra.mxu0 %v3376
        %3571 = vmatprep.subr.mxu0 0.0
        %3572 = vmatpush1.msra.mxu0 %v3375
        %3573 = vmatprep.subr.mxu0 0.0
        %3574 = vmatpush2.msra.mxu0 0.0
        %3575 = vmatprep.subr.mxu0 0.0
        %3576 = vmatpush2.msra.mxu0 0.0
        %3577 = vmatprep.subr.mxu0 0.0
        %3578 = vmatpush2.msra.mxu0 0.0
        %3579 = vmatprep.subr.mxu0 0.0
        %3580 = vmatpush2.msra.mxu0 0.0
        %3581 = vmatprep.subr.mxu0 0.0
        %3582 = vmatpush2.msra.mxu0 0.0
        %3583 = vmatprep.subr.mxu0 0.0
        %3584 = vmatpush2.msra.mxu0 0.0
        %3585 = vmatprep.subr.mxu0 0.0
        %3586 = vmatpush2.msra.mxu0 0.0
        %3587 = vmatprep.subr.mxu0 0.0
        %3588 = vmatpush2.msra.mxu0 0.0
        %3589 = vmatprep.subr.mxu0 0.0
        %3590 = vmatpush2.msra.mxu0 0.0
        %3591 = vmatprep.subr.mxu0 0.0
        %3592 = vmatpush2.msra.mxu0 0.0
        %3593 = vmatprep.subr.mxu0 0.0
        %3594 = vmatpush2.msra.mxu0 0.0
        %3595 = vmatprep.subr.mxu0 0.0
        %3596 = vmatpush2.msra.mxu0 0.0
        %3597 = vmatprep.subr.mxu0 0.0
        %3598 = vmatpush2.msra.mxu0 0.0
        %3599 = vmatprep.subr.mxu0 0.0
        %3600 = vmatpush2.msra.mxu0 0.0
        %3601 = vmatprep.subr.mxu0 0.0
        %3602 = vmatpush2.msra.mxu0 0.0
        %3603 = vmatprep.subr.mxu0 0.0
        %3604 = vmatpush2.msra.mxu0 0.0
        %3605 = vmatprep.mubr.f32.mxu0 0.0
        %3606 = vmatmul.mubr.f32.gmra.mxu0 %v3539
        %v3607 = vpop.f32.mrf.mxu0
        %v3608 = vadd.f32 %v3536, %v3607
        %v3609 = vpop.f32.mrf.mxu0
        %3610 = vdwg.mxu0
        %v3611 = vadd.f32 %v3608, %v3093
        %v3612 = vld [vmem:[%s9] sm:$0x1]
        %v3613 = vld [vmem:[%s8] sm:$0xff]
        %v3615 = vsel %vm1012, %v3611, 0
        %3617 = vmatprep.subr.mxu0 0.0
        %3618 = vmatpush1.msra.mxu0 0.0
        %3619 = vmatprep.subr.mxu0 0.0
        %3620 = vmatpush1.msra.mxu0 0.0
        %3621 = vmatprep.subr.mxu0 0.0
        %3622 = vmatpush1.msra.mxu0 0.0
        %3623 = vmatprep.subr.mxu0 0.0
        %3624 = vmatpush1.msra.mxu0 0.0
        %3625 = vmatprep.subr.mxu0 0.0
        %3626 = vmatpush1.msra.mxu0 0.0
        %3627 = vmatprep.subr.mxu0 0.0
        %3628 = vmatpush1.msra.mxu0 0.0
        %3629 = vmatprep.subr.mxu0 0.0
        %3630 = vmatpush1.msra.mxu0 0.0
        %3631 = vmatprep.subr.mxu0 0.0
        %3632 = vmatpush1.msra.mxu0 0.0
        %3633 = vmatprep.subr.mxu0 0.0
        %3634 = vmatpush1.msra.mxu0 0.0
        %3635 = vmatprep.subr.mxu0 0.0
        %3636 = vmatpush1.msra.mxu0 0.0
        %3637 = vmatprep.subr.mxu0 0.0
        %3638 = vmatpush1.msra.mxu0 0.0
        %3639 = vmatprep.subr.mxu0 0.0
        %3640 = vmatpush1.msra.mxu0 0.0
        %3641 = vmatprep.subr.mxu0 0.0
        %3642 = vmatpush1.msra.mxu0 0.0
        %3643 = vmatprep.subr.mxu0 0.0
        %3644 = vmatpush1.msra.mxu0 0.0
        %3645 = vmatprep.subr.mxu0 0.0
        %3646 = vmatpush1.msra.mxu0 0.0
        %3647 = vmatprep.subr.mxu0 0.0
        %3648 = vmatpush1.msra.mxu0 %v3613
        %3649 = vmatprep.subr.mxu0 0.0
        %3650 = vmatpush2.msra.mxu0 0.0
        %3651 = vmatprep.subr.mxu0 0.0
        %3652 = vmatpush2.msra.mxu0 0.0
        %3653 = vmatprep.subr.mxu0 0.0
        %3654 = vmatpush2.msra.mxu0 0.0
        %3655 = vmatprep.subr.mxu0 0.0
        %3656 = vmatpush2.msra.mxu0 0.0
        %3657 = vmatprep.subr.mxu0 0.0
        %3658 = vmatpush2.msra.mxu0 0.0
        %3659 = vmatprep.subr.mxu0 0.0
        %3660 = vmatpush2.msra.mxu0 0.0
        %3661 = vmatprep.subr.mxu0 0.0
        %3662 = vmatpush2.msra.mxu0 0.0
        %3663 = vmatprep.subr.mxu0 0.0
        %3664 = vmatpush2.msra.mxu0 0.0
        %3665 = vmatprep.subr.mxu0 0.0
        %3666 = vmatpush2.msra.mxu0 0.0
        %3667 = vmatprep.subr.mxu0 0.0
        %3668 = vmatpush2.msra.mxu0 0.0
        %3669 = vmatprep.subr.mxu0 0.0
        %3670 = vmatpush2.msra.mxu0 0.0
        %3671 = vmatprep.subr.mxu0 0.0
        %3672 = vmatpush2.msra.mxu0 0.0
        %3673 = vmatprep.subr.mxu0 0.0
        %3674 = vmatpush2.msra.mxu0 0.0
        %3675 = vmatprep.subr.mxu0 0.0
        %3676 = vmatpush2.msra.mxu0 0.0
        %3677 = vmatprep.subr.mxu0 0.0
        %3678 = vmatpush2.msra.mxu0 0.0
        %3679 = vmatprep.subr.mxu0 0.0
        %3680 = vmatpush2.msra.mxu0 0.0
        %3681 = vmatprep.mubr.f32.mxu0 0.0
        %3682 = vmatmul.mubr.f32.gmra.mxu0 %v3615
        %v3683 = vpop.f32.mrf.mxu0
        %v3684 = vadd.f32 0.0, %v3683
        %v3685 = vpop.f32.mrf.mxu0
        %3686 = vdwg.mxu0
        %v3687 = vadd.f32 %v3612, %v3684
        %s3688 = scalar_lea.vmem %s8, 8
        %v3689 = vld [vmem:[%s3688] sm:$0xff]
        %v3690 = vrot.slane %v3611, 1
        %v3691 = vsel %vm1012, %v3690, 0
        %3693 = vmatprep.subr.mxu0 0.0
        %3694 = vmatpush1.msra.mxu0 0.0
        %3695 = vmatprep.subr.mxu0 0.0
        %3696 = vmatpush1.msra.mxu0 0.0
        %3697 = vmatprep.subr.mxu0 0.0
        %3698 = vmatpush1.msra.mxu0 0.0
        %3699 = vmatprep.subr.mxu0 0.0
        %3700 = vmatpush1.msra.mxu0 0.0
        %3701 = vmatprep.subr.mxu0 0.0
        %3702 = vmatpush1.msra.mxu0 0.0
        %3703 = vmatprep.subr.mxu0 0.0
        %3704 = vmatpush1.msra.mxu0 0.0
        %3705 = vmatprep.subr.mxu0 0.0
        %3706 = vmatpush1.msra.mxu0 0.0
        %3707 = vmatprep.subr.mxu0 0.0
        %3708 = vmatpush1.msra.mxu0 0.0
        %3709 = vmatprep.subr.mxu0 0.0
        %3710 = vmatpush1.msra.mxu0 0.0
        %3711 = vmatprep.subr.mxu0 0.0
        %3712 = vmatpush1.msra.mxu0 0.0
        %3713 = vmatprep.subr.mxu0 0.0
        %3714 = vmatpush1.msra.mxu0 0.0
        %3715 = vmatprep.subr.mxu0 0.0
        %3716 = vmatpush1.msra.mxu0 0.0
        %3717 = vmatprep.subr.mxu0 0.0
        %3718 = vmatpush1.msra.mxu0 0.0
        %3719 = vmatprep.subr.mxu0 0.0
        %3720 = vmatpush1.msra.mxu0 0.0
        %3721 = vmatprep.subr.mxu0 0.0
        %3722 = vmatpush1.msra.mxu0 0.0
        %3723 = vmatprep.subr.mxu0 0.0
        %3724 = vmatpush1.msra.mxu0 %v3689
        %3725 = vmatprep.subr.mxu0 0.0
        %3726 = vmatpush2.msra.mxu0 0.0
        %3727 = vmatprep.subr.mxu0 0.0
        %3728 = vmatpush2.msra.mxu0 0.0
        %3729 = vmatprep.subr.mxu0 0.0
        %3730 = vmatpush2.msra.mxu0 0.0
        %3731 = vmatprep.subr.mxu0 0.0
        %3732 = vmatpush2.msra.mxu0 0.0
        %3733 = vmatprep.subr.mxu0 0.0
        %3734 = vmatpush2.msra.mxu0 0.0
        %3735 = vmatprep.subr.mxu0 0.0
        %3736 = vmatpush2.msra.mxu0 0.0
        %3737 = vmatprep.subr.mxu0 0.0
        %3738 = vmatpush2.msra.mxu0 0.0
        %3739 = vmatprep.subr.mxu0 0.0
        %3740 = vmatpush2.msra.mxu0 0.0
        %3741 = vmatprep.subr.mxu0 0.0
        %3742 = vmatpush2.msra.mxu0 0.0
        %3743 = vmatprep.subr.mxu0 0.0
        %3744 = vmatpush2.msra.mxu0 0.0
        %3745 = vmatprep.subr.mxu0 0.0
        %3746 = vmatpush2.msra.mxu0 0.0
        %3747 = vmatprep.subr.mxu0 0.0
        %3748 = vmatpush2.msra.mxu0 0.0
        %3749 = vmatprep.subr.mxu0 0.0
        %3750 = vmatpush2.msra.mxu0 0.0
        %3751 = vmatprep.subr.mxu0 0.0
        %3752 = vmatpush2.msra.mxu0 0.0
        %3753 = vmatprep.subr.mxu0 0.0
        %3754 = vmatpush2.msra.mxu0 0.0
        %3755 = vmatprep.subr.mxu0 0.0
        %3756 = vmatpush2.msra.mxu0 0.0
        %3757 = vmatprep.mubr.f32.mxu0 0.0
        %3758 = vmatmul.mubr.f32.gmra.mxu0 %v3691
        %v3759 = vpop.f32.mrf.mxu0
        %v3760 = vadd.f32 0.0, %v3759
        %v3761 = vpop.f32.mrf.mxu0
        %3762 = vdwg.mxu0
        %v3763 = vadd.f32 %v3687, %v3760
        %v3764 = vmax.f32 %v3763, 0.0
        %v3765 = vld [vmem:[%s10] sm:$0xf]
        %v3766 = vld [vmem:[%s11] sm:$0x1]
        %v3768 = vsel %vm2379, %v3764, 0
        %v3771 = vsel %vm2382, %v3765, 0
        %3773 = vmatprep.subr.mxu0 0.0
        %3774 = vmatpush1.msra.mxu0 0.0
        %3775 = vmatprep.subr.mxu0 0.0
        %3776 = vmatpush1.msra.mxu0 0.0
        %3777 = vmatprep.subr.mxu0 0.0
        %3778 = vmatpush1.msra.mxu0 0.0
        %3779 = vmatprep.subr.mxu0 0.0
        %3780 = vmatpush1.msra.mxu0 0.0
        %3781 = vmatprep.subr.mxu0 0.0
        %3782 = vmatpush1.msra.mxu0 0.0
        %3783 = vmatprep.subr.mxu0 0.0
        %3784 = vmatpush1.msra.mxu0 0.0
        %3785 = vmatprep.subr.mxu0 0.0
        %3786 = vmatpush1.msra.mxu0 0.0
        %3787 = vmatprep.subr.mxu0 0.0
        %3788 = vmatpush1.msra.mxu0 0.0
        %3789 = vmatprep.subr.mxu0 0.0
        %3790 = vmatpush1.msra.mxu0 0.0
        %3791 = vmatprep.subr.mxu0 0.0
        %3792 = vmatpush1.msra.mxu0 0.0
        %3793 = vmatprep.subr.mxu0 0.0
        %3794 = vmatpush1.msra.mxu0 0.0
        %3795 = vmatprep.subr.mxu0 0.0
        %3796 = vmatpush1.msra.mxu0 0.0
        %3797 = vmatprep.subr.mxu0 0.0
        %3798 = vmatpush1.msra.mxu0 0.0
        %3799 = vmatprep.subr.mxu0 0.0
        %3800 = vmatpush1.msra.mxu0 0.0
        %3801 = vmatprep.subr.mxu0 0.0
        %3802 = vmatpush1.msra.mxu0 0.0
        %3803 = vmatprep.subr.mxu0 0.0
        %3804 = vmatpush1.msra.mxu0 %v3771
        %3805 = vmatprep.subr.mxu0 0.0
        %3806 = vmatpush2.msra.mxu0 0.0
        %3807 = vmatprep.subr.mxu0 0.0
        %3808 = vmatpush2.msra.mxu0 0.0
        %3809 = vmatprep.subr.mxu0 0.0
        %3810 = vmatpush2.msra.mxu0 0.0
        %3811 = vmatprep.subr.mxu0 0.0
        %3812 = vmatpush2.msra.mxu0 0.0
        %3813 = vmatprep.subr.mxu0 0.0
        %3814 = vmatpush2.msra.mxu0 0.0
        %3815 = vmatprep.subr.mxu0 0.0
        %3816 = vmatpush2.msra.mxu0 0.0
        %3817 = vmatprep.subr.mxu0 0.0
        %3818 = vmatpush2.msra.mxu0 0.0
        %3819 = vmatprep.subr.mxu0 0.0
        %3820 = vmatpush2.msra.mxu0 0.0
        %3821 = vmatprep.subr.mxu0 0.0
        %3822 = vmatpush2.msra.mxu0 0.0
        %3823 = vmatprep.subr.mxu0 0.0
        %3824 = vmatpush2.msra.mxu0 0.0
        %3825 = vmatprep.subr.mxu0 0.0
        %3826 = vmatpush2.msra.mxu0 0.0
        %3827 = vmatprep.subr.mxu0 0.0
        %3828 = vmatpush2.msra.mxu0 0.0
        %3829 = vmatprep.subr.mxu0 0.0
        %3830 = vmatpush2.msra.mxu0 0.0
        %3831 = vmatprep.subr.mxu0 0.0
        %3832 = vmatpush2.msra.mxu0 0.0
        %3833 = vmatprep.subr.mxu0 0.0
        %3834 = vmatpush2.msra.mxu0 0.0
        %3835 = vmatprep.subr.mxu0 0.0
        %3836 = vmatpush2.msra.mxu0 0.0
        %3837 = vmatprep.mubr.f32.mxu0 0.0
        %3838 = vmatmul.mubr.f32.gmra.mxu0 %v3768
        %v3839 = vpop.f32.mrf.mxu0
        %v3840 = vadd.f32 %v3766, %v3839
        %v3841 = vpop.f32.mrf.mxu0
        %3842 = vdwg.mxu0
        %vm3843 = vcmask 24576
        %3844 = vst.msk [vmem:[%s406] sm:$0x1] %vm3843, %v3840
        %s3845 = sand.u32 %s291, 1
        %s3846 = scalar_lea.sflag [#allocation3], %s3845
        %s3847 = sand.u32 %s291, 1
        %s3848 = scalar_lea.vmem [#allocation2], %s3847
        // Predicated region
        $region69: #{dpcnn_forward.1} parent=67 // pred_check
          %p3849 = pneg %p301
        $region70: #{dpcnn_forward.1} parent=67 // pred_check_branch
          %3851 = sbr.rel (%p3849) target = $region72
        $region71: #{dpcnn_forward.1} parent=67 // pred_region
          %s3853 = ssub.s32 16, 16
          %3854 = vsyncadd %s3846, %s3853
          %s3855 = smul.addr %s26, 16
          %s3856 = scalar_lea.hbm %s12, %s3855
          %s3858 = sshll.u32 %s3848, 4
          %s3859 = int_to_ptr.vmem [resolvable:$true] %s3858
          %3861 = dma.vmem_to_hbm [thread:$0]  %s3859, 16, %s3856, %s3846
        $region72: #{dpcnn_forward.1} parent=67 // pred_fallthru
          _
      $region68: #{dpcnn_forward.1} parent=5 // pred_fallthru
        _
      %p3862 = scmp.le.s32.totalorder 2, %s21
      // Predicated region
      $region73: #{dpcnn_forward.1} parent=5 // pred_check
        %p3863 = pneg %p3862
      $region74: #{dpcnn_forward.1} parent=5 // pred_check_branch
        %3865 = sbr.rel (%p3863) target = $region76
      $region75: #{dpcnn_forward.1} parent=5 // pred_region
        %s3866 = ssub.s32 %s21, 2
        // Predicated region
        $region77: #{dpcnn_forward.1} parent=75 // pred_check
          %p3867 = pneg %p307
        $region78: #{dpcnn_forward.1} parent=75 // pred_check_branch
          %3869 = sbr.rel (%p3867) target = $region80
        $region79: #{dpcnn_forward.1} parent=75 // pred_region
          %s3870 = sand.u32 %s292, 1
          %s3871 = scalar_lea.sflag [#allocation3], %s3870
          %s3872 = sand.u32 %s292, 1
          %s3873 = scalar_lea.vmem [#allocation2], %s3872
          %3874 = dma.done %s3871, 16
        $region80: #{dpcnn_forward.1} parent=75 // pred_fallthru
          _
      $region76: #{dpcnn_forward.1} parent=5 // pred_fallthru
        _
    $region6: #{dpcnn_forward.1} parent=1 // loop_footer
      %s25 = sadd.s32 1, %s21
    $region7: #{dpcnn_forward.1} parent=1 // loop_footer_branch
      %20 = sbr.rel target = $region3
    $region8: #{dpcnn_forward.1} parent=1 // loop_exit
      _
    %3875 = vsyncpa [#allocation3], 1
    %s3876 = scalar_lea.sflag [#allocation3], 1
    %3877 = vsyncpa %s3876, 1

</llo_original>
